<compile_context>
chip_gen: v7x
topology: tpu7x:2x2x1
jax: 0.10.0
libtpu: 0.0.40
codegen_flags: <defaults>
</compile_context>

<pallas_src>
import jax
import jax.numpy as jnp
from jax.experimental import pallas as pl
from jax.experimental.pallas import tpu as pltpu


# ----------------------------------------------------------------------------
# Tiling helpers
# ----------------------------------------------------------------------------
def _round_up(x: int, m: int) -> int:
    return ((x + m - 1) // m) * m


def _pick_point_tile(P: int, M: int, H: int, batch: int):
    """Lane-dense point tile (multiple of 128) sized from a VMEM activation budget."""
    P128 = _round_up(max(P, 1), 128)
    budget = 20 * 1024 * 1024                 # live activation slabs of shape (M*TP, H)
    rows = max(128, budget // (16 * H))       # ~3 f32 + 2 bf16 slabs live at once
    tp = (rows // max(M, 1)) // 128 * 128
    tp = max(128, min(1024, tp))
    tp = min(tp, P128)
    # v7x has two TensorCores: keep >= 2 parallel grid steps whenever possible.
    if batch * (-(-P128 // tp)) < 2 and tp > 128:
        tp = max(128, (tp // 2) // 128 * 128)
    P_pad = _round_up(P128, tp)
    return tp, P_pad


def _const_spec(block_shape, index_map):
    """Grid-invariant input: single-buffer it (block index never changes)."""
    if hasattr(pl, "Buffered"):
        try:
            return pl.BlockSpec(block_shape, index_map, pipeline_mode=pl.Buffered(1))
        except Exception:
            pass
    return pl.BlockSpec(block_shape, index_map)


# ----------------------------------------------------------------------------
# Pallas kernel factory: one batch element x one point tile, all M primitives
# ----------------------------------------------------------------------------
def _make_kernel(n_blocks: int, has_cc: bool, bf16_relu: bool, vpu_fc_p: bool,
                 sharpness_inside: float, sharpness_outside: float):
    def kernel(*refs):
        if has_cc:
            (pts_ref, wp_ref, beff_ref, cc_ref,
             w0_ref, b0_ref, w1_ref, b1_ref, wout_ref, bout_ref, occ_ref) = refs
        else:
            (pts_ref, wp_ref, beff_ref,
             w0_ref, b0_ref, w1_ref, b1_ref, wout_ref, bout_ref, occ_ref) = refs
            cc_ref = None

        M, TP = occ_ref.shape[1], occ_ref.shape[2]
        H = wp_ref.shape[1]

        pts = pts_ref[0]                                                  # (TP, 3)

        # fc_p: translation already folded into beff ((x - t)@Wp + bp == x@Wp + beff).
        if vpu_fc_p:
            # v5e: MXU is the binding unit -> do the K=3 contraction on the VPU.
            wp = wp_ref[...]
            net0 = (pts[:, 0:1] * wp[0:1, :]
                    + pts[:, 1:2] * wp[1:2, :]
                    + pts[:, 2:3] * wp[2:3, :])                           # (TP, H)
        else:
            net0 = jnp.dot(pts, wp_ref[...],
                           preferred_element_type=jnp.float32)            # (TP, H)

        # beff already includes block-0's conditioning term.
        net = (net0[None, :, :] + beff_ref[0][:, None, :]).reshape(M * TP, H)

        def relu_bf16(x):
            if bf16_relu:            # v6e/v7x: packed-bf16 VALU max
                return jnp.maximum(x.astype(jnp.bfloat16), 0)
            return jax.nn.relu(x).astype(jnp.bfloat16)    # v5e: no bf16 VALU

        # Conditioned ResnetBlockFC blocks; H x H matmuls in bf16, f32 accumulation.
        for i in range(n_blocks):
            if i > 0:
                cc = cc_ref[0, i - 1]                                     # (M, H)
                net = (net.reshape(M, TP, H) + cc[:, None, :]).reshape(M * TP, H)
            a0 = relu_bf16(net)
            h = jnp.dot(a0, w0_ref[i], preferred_element_type=jnp.float32) + b0_ref[i]
            a1 = relu_bf16(h)
            dx = jnp.dot(a1, w1_ref[i], preferred_element_type=jnp.float32) + b1_ref[i]
            net = net + dx

        # fc_out (H -> 1) as VPU multiply + lane (XLU) reduce; lane-dense (M, TP).
        f = jnp.sum((jax.nn.relu(net) * wout_ref[...]).reshape(M, TP, H), axis=-1)
        f = f + bout_ref[...]                                             # (1,1) broadcast

        # apply_sigmoid_to_inside_outside_function, single sigmoid evaluation.
        sharp = jnp.where(f >= 0.0, sharpness_inside, sharpness_outside)
        occ_ref[0] = jax.nn.sigmoid(sharp * f)

    return kernel


# ----------------------------------------------------------------------------
# Wrapper: MiniOccupancyFunction.forward
# ----------------------------------------------------------------------------
def mini_occupancy_forward(X, pred_dict, params,
                           sharpness_inside=10.0, sharpness_outside=10.0):
    sampled_points = X["ray_points"]                 # (B, N, num_points, 3)
    translations = pred_dict["translations"]         # (B, M, 3)
    features = pred_dict["part_shape_features"]      # (B, M, C)

    B, N, num_points, _ = sampled_points.shape
    M = translations.shape[1]
    P = N * num_points
    H = params["wp"].shape[1]
    nb = params["wc"].shape[0]

    hi = jax.lax.Precision.HIGHEST
    pts = sampled_points.reshape(B, P, 3).astype(jnp.float32)
    trans = translations.astype(jnp.float32)
    feats = features.astype(jnp.float32)
    wp = params["wp"].astype(jnp.float32)

    # Hoisted per-primitive terms (exact f32, tiny):
    #   beff[b, m]  = bp - trans[b, m] @ wp + feats[b, m] @ wc[0] + bc[0]
    #   cc[b, i, m] = feats[b, m] @ wc[i+1] + bc[i+1]    (blocks 1..nb-1 only)
    beff = params["bp"] - jnp.einsum("bmd,dh->bmh", trans, wp, precision=hi)
    cc_all = (jnp.einsum("bmc,ich->bimh", feats, params["wc"], precision=hi)
              + params["bc"][None, :, :, :])                              # (B, nb, M, H)
    beff = beff + cc_all[:, 0]                        # fold block-0 conditioning
    cc_rest = cc_all[:, 1:] if nb > 1 else None       # (B, nb-1, M, H) or None

    # Native MXU dtype for the dominant H x H matmuls (halves weight DMA/VMEM too).
    w0 = params["w0"].astype(jnp.bfloat16)
    w1 = params["w1"].astype(jnp.bfloat16)
    b0 = params["b0"].astype(jnp.float32)
    b1 = params["b1"].astype(jnp.float32)
    wout_row = params["wout"].astype(jnp.float32).T                       # (1, H)
    bout = params["bout"].astype(jnp.float32)                             # (1, 1)

    # Generation-aware knobs (v5e has no bf16 VALU and is MXU-bound).
    try:
        dk = jax.devices()[0].device_kind.lower()
    except Exception:
        dk = ""
    is_v5 = "v5" in dk

    TP, P_pad = _pick_point_tile(P, M, H, B)
    NT = P_pad // TP
    pts_in = jnp.pad(pts, ((0, 0), (0, P_pad - P), (0, 0))) if P_pad > P else pts

    # Explicit scoped-VMEM limit: >= 32 MiB (v5e default is only 16 MiB),
    # <= 48 MiB (v7x has 64 MiB physical per TensorCore).
    act_bytes = M * TP * H * 16                         # live f32/bf16 slabs
    pts_blk = 2 * TP * 128 * 4                          # (TP,3) lane-pads to 128
    occ_blk = 2 * M * TP * 4
    wgt_bytes = nb * (2 * H * H * 2 + 2 * H * 4) + 8 * H * 4 + H * 4 + 512
    cond_bytes = 2 * M * H * 4 + 2 * max(nb - 1, 0) * M * H * 4
    need = int(1.3 * (act_bytes + pts_blk + occ_blk + wgt_bytes + cond_bytes))
    vmem_limit = int(min(max(32 * 1024 * 1024, need), 48 * 1024 * 1024))

    kernel = _make_kernel(
        n_blocks=nb, has_cc=(nb > 1), bf16_relu=(not is_v5), vpu_fc_p=is_v5,
        sharpness_inside=float(sharpness_inside),
        sharpness_outside=float(sharpness_outside),
    )

    const2 = lambda b, t: (0, 0)
    const3 = lambda b, t: (0, 0, 0)

    inputs = [pts_in, wp, beff]
    in_specs = [
        pl.BlockSpec((1, TP, 3), lambda b, t: (b, t, 0)),        # point tile
        _const_spec((3, H), const2),                             # wp
        pl.BlockSpec((1, M, H), lambda b, t: (b, 0, 0)),         # beff (block-0 folded)
    ]
    if nb > 1:
        inputs.append(cc_rest)
        in_specs.append(pl.BlockSpec((1, nb - 1, M, H), lambda b, t: (b, 0, 0, 0)))
    inputs += [w0, b0, w1, b1, wout_row, bout]
    in_specs += [
        _const_spec((nb, H, H), const3),                         # w0 (bf16)
        _const_spec((nb, 1, H), const3),                         # b0
        _const_spec((nb, H, H), const3),                         # w1 (bf16)
        _const_spec((nb, 1, H), const3),                         # b1
        _const_spec((1, H), const2),                             # wout row
        _const_spec((1, 1), const2),                             # bout
    ]

    # Cost hint: two HxH matmuls per block over B*M*P_pad rows dominate.
    flops = (4 * nb * B * M * P_pad * H * H
             + 2 * B * M * P_pad * H           # fc_out multiply-reduce
             + 2 * B * P_pad * 3 * H)          # fc_p
    bytes_accessed = (B * P_pad * 3 * 4 + B * M * H * 4
                      + B * max(nb - 1, 0) * M * H * 4
                      + nb * (2 * H * H * 2 + 2 * H * 4) + 3 * H * 4 + H * 4 + 4
                      + B * M * P_pad * 4)
    cost = pl.CostEstimate(flops=flops, transcendentals=B * M * P_pad,
                           bytes_accessed=bytes_accessed)

    occ = pl.pallas_call(
        kernel,
        out_shape=jax.ShapeDtypeStruct((B, M, P_pad), jnp.float32),
        grid=(B, NT),
        in_specs=in_specs,
        out_specs=pl.BlockSpec((1, M, TP), lambda b, t: (b, 0, t)),
        compiler_params=pltpu.CompilerParams(
            dimension_semantics=("parallel", "parallel"),
            vmem_limit_bytes=vmem_limit,
        ),
        cost_estimate=cost,
    )(*inputs)

    occ = occ[:, :, :P]                                                   # drop pad

    # points_transformed is a trivial mem-bound broadcast subtract -> leave it
    # to XLA at full HBM bandwidth instead of lane-sparse kernel stores.
    ptx = pts[:, :, None, :] - trans[:, None, :, :]                       # (B, P, M, 3)

    out = dict(pred_dict)
    out["implicit_field"] = jnp.transpose(occ, (0, 2, 1)).reshape(B, N, num_points, M)
    out["points_transformed"] = ptx.reshape(B, N, num_points, M * 3)
    return out


# ----------------------------------------------------------------------------
# Pure-JAX reference (mirrors the PyTorch module semantics, f32 HIGHEST)
# ----------------------------------------------------------------------------
def reference_forward(X, pred_dict, params, si=10.0, so=10.0):
    hi = jax.lax.Precision.HIGHEST
    pts = X["ray_points"]
    B, N, num_points, _ = pts.shape
    P = N * num_points
    pts2 = pts.reshape(B, P, 3)
    trans = pred_dict["translations"]
    feats = pred_dict["part_shape_features"]
    M = trans.shape[1]
    nb = params["wc"].shape[0]

    F_list, ptx_list = [], []
    for m in range(M):
        x = pts2 - trans[:, m][:, None, :]                       # (B, P, 3)
        c = feats[:, m]                                          # (B, C)
        net = jnp.einsum("bpd,dh->bph", x, params["wp"], precision=hi) + params["bp"]
        for i in range(nb):
            cc = jnp.einsum("bc,ch->bh", c, params["wc"][i], precision=hi) + params["bc"][i]
            net = net + cc[:, None, :]
            h = jnp.einsum("bph,hk->bpk", jax.nn.relu(net), params["w0"][i],
                           precision=hi) + params["b0"][i]
            dx = jnp.einsum("bpk,kh->bph", jax.nn.relu(h), params["w1"][i],
                            precision=hi) + params["b1"][i]
            net = net + dx
        out = jnp.einsum("bph,ho->bpo", jax.nn.relu(net), params["wout"],
                         precision=hi) + params["bout"]
        F_list.append(out[..., 0])
        ptx_list.append(x)

    F = jnp.stack(F_list, axis=-1)                               # (B, P, M)
    impl = jnp.where(F >= 0.0, jax.nn.sigmoid(si * F), jax.nn.sigmoid(so * F))
    ptx = jnp.stack(ptx_list, axis=2)                            # (B, P, M, 3)
    return impl.reshape(B, N, num_points, M), ptx.reshape(B, N, num_points, -1)


# ----------------------------------------------------------------------------
# Deterministic parameter init + demo
# ----------------------------------------------------------------------------
def init_params(key, in_dim=3, c_dim=64, hidden=256, out_dim=1, n_blocks=1):
    ks = jax.random.split(key, 12)
    r = lambda k, shape, fan: (jax.random.normal(k, shape, jnp.float32)
                               / jnp.sqrt(jnp.float32(fan)))
    return {
        "wp": r(ks[0], (in_dim, hidden), in_dim),
        "bp": r(ks[1], (1, hidden), 1.0) * 0.01,
        "wc": r(ks[2], (n_blocks, c_dim, hidden), c_dim),
        "bc": r(ks[3], (n_blocks, 1, hidden), 1.0) * 0.01,
        "w0": r(ks[4], (n_blocks, hidden, hidden), hidden),
        "b0": r(ks[5], (n_blocks, 1, hidden), 1.0) * 0.01,
        "w1": r(ks[6], (n_blocks, hidden, hidden), hidden),
        "b1": r(ks[7], (n_blocks, 1, hidden), 1.0) * 0.01,
        "wout": r(ks[8], (hidden, out_dim), hidden) * 0.5,
        "bout": r(ks[9], (1, out_dim), 1.0) * 0.01,
    }


def _run_case(key, B, N, num_points, M, C, n_blocks):
    k_pts, k_trans, k_feat, k_par = jax.random.split(key, 4)
    X = {"ray_points": jax.random.normal(k_pts, (B, N, num_points, 3), jnp.float32)}
    pred_dict = {
        "translations": 0.5 * jax.random.normal(k_trans, (B, M, 3), jnp.float32),
        "part_shape_features": jax.random.normal(k_feat, (B, M, C), jnp.float32),
    }
    params = init_params(k_par, in_dim=3, c_dim=C, hidden=256, out_dim=1,
                         n_blocks=n_blocks)

    out = mini_occupancy_forward(X, pred_dict, params)
    jax.block_until_ready(out["implicit_field"])
    jax.block_until_ready(out["points_transformed"])

    ref_impl, ref_ptx = reference_forward(X, pred_dict, params)
    err_impl = jnp.abs(out["implicit_field"] - ref_impl)
    err_ptx = float(jnp.max(jnp.abs(out["points_transformed"] - ref_ptx)))
    assert out["implicit_field"].shape == (B, N, num_points, M)
    assert out["points_transformed"].shape == (B, N, num_points, M * 3)
    # bf16 HxH matmuls (f32 accumulation) + sharpness-10 sigmoid vs. an f32
    # HIGHEST reference -> relaxed tolerance near the 0-level set; the
    # transformed points are exact f32.
    assert float(jnp.max(err_impl)) < 1e-1, f"implicit max err: {float(jnp.max(err_impl))}"
    assert float(jnp.mean(err_impl)) < 1.5e-2, f"implicit mean err: {float(jnp.mean(err_impl))}"
    assert err_ptx < 1e-5, f"transformed points mismatch: {err_ptx}"


if __name__ == "__main__":
    key = jax.random.PRNGKey(0)
    k1, k2 = jax.random.split(key)

    # n_blocks=1 (module default; block-0 conditioning fully folded into bias)
    _run_case(k1, B=2, N=4, num_points=8, M=4, C=64, n_blocks=1)
    # n_blocks=2 (exercises the in-kernel conditioning path for blocks >= 1)
    _run_case(k2, B=2, N=4, num_points=8, M=4, C=64, n_blocks=2)

    print("KERNEL_OK")
</pallas_src>

<mosaic_0001>
module attributes {stable_mosaic.version = 11 : i64} {
  func.func @kernel(%arg0: i32, %arg1: i32, %arg2: memref<1x128x3xf32, #tpu.memory_space<vmem>>, %arg3: memref<3x256xf32, #tpu.memory_space<vmem>>, %arg4: memref<1x4x256xf32, #tpu.memory_space<vmem>>, %arg5: memref<1x256x256xbf16, #tpu.memory_space<vmem>>, %arg6: memref<1x1x256xf32, #tpu.memory_space<vmem>>, %arg7: memref<1x256x256xbf16, #tpu.memory_space<vmem>>, %arg8: memref<1x1x256xf32, #tpu.memory_space<vmem>>, %arg9: memref<1x256xf32, #tpu.memory_space<vmem>>, %arg10: memref<1x1xf32, #tpu.memory_space<vmem>>, %arg11: memref<1x4x128xf32, #tpu.memory_space<vmem>>) attributes {dimension_semantics = [#tpu.dimension_semantics<parallel>, #tpu.dimension_semantics<parallel>], iteration_bounds = array<i64: 2, 1>, scalar_prefetch = 0 : i64, scratch_operands = 0 : i64, tpu.core_type = #tpu.core_type<tc>, window_params = [{transform_indices = @transform_0, window_bounds = array<i64: 1, 128, 3>}, {pipeline_mode = #tpu.pipeline_mode<synchronous>, transform_indices = @transform_1, window_bounds = array<i64: 3, 256>}, {transform_indices = @transform_2, window_bounds = array<i64: 1, 4, 256>}, {pipeline_mode = #tpu.pipeline_mode<synchronous>, transform_indices = @transform_3, window_bounds = array<i64: 1, 256, 256>}, {pipeline_mode = #tpu.pipeline_mode<synchronous>, transform_indices = @transform_4, window_bounds = array<i64: 1, 1, 256>}, {pipeline_mode = #tpu.pipeline_mode<synchronous>, transform_indices = @transform_5, window_bounds = array<i64: 1, 256, 256>}, {pipeline_mode = #tpu.pipeline_mode<synchronous>, transform_indices = @transform_6, window_bounds = array<i64: 1, 1, 256>}, {pipeline_mode = #tpu.pipeline_mode<synchronous>, transform_indices = @transform_7, window_bounds = array<i64: 1, 256>}, {pipeline_mode = #tpu.pipeline_mode<synchronous>, transform_indices = @transform_8, window_bounds = array<i64: 1, 1>}, {transform_indices = @transform_9, window_bounds = array<i64: 1, 4, 128>}]} {
    %c0 = arith.constant 0 : index
    %c0_0 = arith.constant 0 : index
    %c0_1 = arith.constant 0 : index
    %0 = vector.load %arg2[%c0, %c0_0, %c0_1] : memref<1x128x3xf32, #tpu.memory_space<vmem>>, vector<1x128x3xf32>
    %1 = vector.shape_cast %0 : vector<1x128x3xf32> to vector<128x3xf32>
    %c0_2 = arith.constant 0 : index
    %c0_3 = arith.constant 0 : index
    %2 = vector.load %arg3[%c0_2, %c0_3] : memref<3x256xf32, #tpu.memory_space<vmem>>, vector<3x256xf32>
    %cst = arith.constant dense<0.000000e+00> : vector<128x256xf32>
    %3 = tpu.matmul %1, %2, %cst {dimension_numbers = #tpu.dot_dimension_numbers<[1], [0], [0], [1], [0, 0, 1, 1], [], []>} : vector<128x3xf32>, vector<3x256xf32>, vector<128x256xf32> -> vector<128x256xf32>
    %4 = vector.shape_cast %3 : vector<128x256xf32> to vector<1x128x256xf32>
    %c0_4 = arith.constant 0 : index
    %c0_5 = arith.constant 0 : index
    %c0_6 = arith.constant 0 : index
    %5 = vector.load %arg4[%c0_4, %c0_5, %c0_6] : memref<1x4x256xf32, #tpu.memory_space<vmem>>, vector<1x4x256xf32>
    %6 = vector.shape_cast %5 : vector<1x4x256xf32> to vector<4x256xf32>
    %7 = vector.shape_cast %6 : vector<4x256xf32> to vector<4x1x256xf32>
    %8 = vector.broadcast %4 : vector<1x128x256xf32> to vector<4x128x256xf32>
    %9 = vector.broadcast %7 : vector<4x1x256xf32> to vector<4x128x256xf32>
    %10 = arith.addf %8, %9 : vector<4x128x256xf32>
    %11 = vector.shape_cast %10 : vector<4x128x256xf32> to vector<512x256xf32>
    %12 = arith.truncf %11 : vector<512x256xf32> to vector<512x256xbf16>
    %cst_7 = arith.constant 0.000000e+00 : bf16
    %13 = vector.broadcast %cst_7 : bf16 to vector<512x256xbf16>
    %14 = arith.maximumf %12, %13 : vector<512x256xbf16>
    %c0_8 = arith.constant 0 : index
    %c0_9 = arith.constant 0 : index
    %c0_10 = arith.constant 0 : index
    %15 = vector.load %arg5[%c0_8, %c0_9, %c0_10] : memref<1x256x256xbf16, #tpu.memory_space<vmem>>, vector<1x256x256xbf16>
    %16 = vector.shape_cast %15 : vector<1x256x256xbf16> to vector<256x256xbf16>
    %cst_11 = arith.constant dense<0.000000e+00> : vector<512x256xf32>
    %17 = tpu.matmul %14, %16, %cst_11 {dimension_numbers = #tpu.dot_dimension_numbers<[1], [0], [0], [1], [0, 0, 1, 1], [], []>} : vector<512x256xbf16>, vector<256x256xbf16>, vector<512x256xf32> -> vector<512x256xf32>
    %c0_12 = arith.constant 0 : index
    %c0_13 = arith.constant 0 : index
    %c0_14 = arith.constant 0 : index
    %18 = vector.load %arg6[%c0_12, %c0_13, %c0_14] : memref<1x1x256xf32, #tpu.memory_space<vmem>>, vector<1x1x256xf32>
    %19 = vector.shape_cast %18 : vector<1x1x256xf32> to vector<1x256xf32>
    %20 = vector.broadcast %19 : vector<1x256xf32> to vector<512x256xf32>
    %21 = arith.addf %17, %20 : vector<512x256xf32>
    %22 = arith.truncf %21 : vector<512x256xf32> to vector<512x256xbf16>
    %cst_15 = arith.constant 0.000000e+00 : bf16
    %23 = vector.broadcast %cst_15 : bf16 to vector<512x256xbf16>
    %24 = arith.maximumf %22, %23 : vector<512x256xbf16>
    %c0_16 = arith.constant 0 : index
    %c0_17 = arith.constant 0 : index
    %c0_18 = arith.constant 0 : index
    %25 = vector.load %arg7[%c0_16, %c0_17, %c0_18] : memref<1x256x256xbf16, #tpu.memory_space<vmem>>, vector<1x256x256xbf16>
    %26 = vector.shape_cast %25 : vector<1x256x256xbf16> to vector<256x256xbf16>
    %cst_19 = arith.constant dense<0.000000e+00> : vector<512x256xf32>
    %27 = tpu.matmul %24, %26, %cst_19 {dimension_numbers = #tpu.dot_dimension_numbers<[1], [0], [0], [1], [0, 0, 1, 1], [], []>} : vector<512x256xbf16>, vector<256x256xbf16>, vector<512x256xf32> -> vector<512x256xf32>
    %c0_20 = arith.constant 0 : index
    %c0_21 = arith.constant 0 : index
    %c0_22 = arith.constant 0 : index
    %28 = vector.load %arg8[%c0_20, %c0_21, %c0_22] : memref<1x1x256xf32, #tpu.memory_space<vmem>>, vector<1x1x256xf32>
    %29 = vector.shape_cast %28 : vector<1x1x256xf32> to vector<1x256xf32>
    %30 = vector.broadcast %29 : vector<1x256xf32> to vector<512x256xf32>
    %31 = arith.addf %27, %30 : vector<512x256xf32>
    %32 = arith.addf %11, %31 : vector<512x256xf32>
    %cst_23 = arith.constant 0.000000e+00 : f32
    %33 = vector.broadcast %cst_23 : f32 to vector<512x256xf32>
    %34 = arith.maximumf %32, %33 : vector<512x256xf32>
    %c0_24 = arith.constant 0 : index
    %c0_25 = arith.constant 0 : index
    %35 = vector.load %arg9[%c0_24, %c0_25] : memref<1x256xf32, #tpu.memory_space<vmem>>, vector<1x256xf32>
    %36 = vector.broadcast %35 : vector<1x256xf32> to vector<512x256xf32>
    %37 = arith.mulf %34, %36 : vector<512x256xf32>
    %38 = vector.shape_cast %37 : vector<512x256xf32> to vector<4x128x256xf32>
    %cst_26 = arith.constant dense<0.000000e+00> : vector<4x128xf32>
    %39 = vector.multi_reduction <add>, %38, %cst_26 [2] : vector<4x128x256xf32> to vector<4x128xf32>
    %c0_27 = arith.constant 0 : index
    %c0_28 = arith.constant 0 : index
    %40 = vector.load %arg10[%c0_27, %c0_28] : memref<1x1xf32, #tpu.memory_space<vmem>>, vector<1x1xf32>
    %41 = vector.broadcast %40 : vector<1x1xf32> to vector<4x128xf32>
    %42 = arith.addf %39, %41 : vector<4x128xf32>
    %cst_29 = arith.constant 0.000000e+00 : f32
    %43 = vector.broadcast %cst_29 : f32 to vector<4x128xf32>
    %44 = arith.cmpf oge, %42, %43 : vector<4x128xf32>
    %cst_30 = arith.constant 1.000000e+01 : f32
    %cst_31 = arith.constant 1.000000e+01 : f32
    %45 = vector.broadcast %cst_30 : f32 to vector<4x128xf32>
    %46 = vector.broadcast %cst_31 : f32 to vector<4x128xf32>
    %47 = arith.select %44, %45, %46 : vector<4x128xi1>, vector<4x128xf32>
    %48 = arith.mulf %47, %42 : vector<4x128xf32>
    %49 = arith.negf %48 : vector<4x128xf32>
    %50 = math.exp %49 : vector<4x128xf32>
    %cst_32 = arith.constant 1.000000e+00 : f32
    %51 = vector.broadcast %cst_32 : f32 to vector<4x128xf32>
    %52 = arith.addf %51, %50 : vector<4x128xf32>
    %53 = arith.divf %51, %52 : vector<4x128xf32>
    %c0_33 = arith.constant 0 : index
    %c0_34 = arith.constant 0 : index
    %c0_35 = arith.constant 0 : index
    %54 = vector.load %arg11[%c0_33, %c0_34, %c0_35] : memref<1x4x128xf32, #tpu.memory_space<vmem>>, vector<1x4x128xf32>
    %55 = vector.shape_cast %54 : vector<1x4x128xf32> to vector<4x128xf32>
    %56 = vector.shape_cast %53 : vector<4x128xf32> to vector<1x4x128xf32>
    tpu.vector_store %arg11[%c0_33, %c0_34, %c0_35], %56 {strides = array<i32>} : memref<1x4x128xf32, #tpu.memory_space<vmem>>, vector<1x4x128xf32>,
    return
  }
  func.func @transform_0(%arg0: i32, %arg1: i32) -> (i32, i32, i32) {
    %c0_i32 = arith.constant 0 : i32
    %c0_i32_0 = arith.constant 0 : i32
    return %arg0, %arg1, %c0_i32 : i32, i32, i32
  }
  func.func @transform_1(%arg0: i32, %arg1: i32) -> (i32, i32) {
    %c0_i32 = arith.constant 0 : i32
    %c0_i32_0 = arith.constant 0 : i32
    %c0_i32_1 = arith.constant 0 : i32
    return %c0_i32, %c0_i32_0 : i32, i32
  }
  func.func @transform_2(%arg0: i32, %arg1: i32) -> (i32, i32, i32) {
    %c0_i32 = arith.constant 0 : i32
    %c0_i32_0 = arith.constant 0 : i32
    %c0_i32_1 = arith.constant 0 : i32
    return %arg0, %c0_i32, %c0_i32_0 : i32, i32, i32
  }
  func.func @transform_3(%arg0: i32, %arg1: i32) -> (i32, i32, i32) {
    %c0_i32 = arith.constant 0 : i32
    %c0_i32_0 = arith.constant 0 : i32
    %c0_i32_1 = arith.constant 0 : i32
    %c0_i32_2 = arith.constant 0 : i32
    return %c0_i32, %c0_i32_0, %c0_i32_1 : i32, i32, i32
  }
  func.func @transform_4(%arg0: i32, %arg1: i32) -> (i32, i32, i32) {
    %c0_i32 = arith.constant 0 : i32
    %c0_i32_0 = arith.constant 0 : i32
    %c0_i32_1 = arith.constant 0 : i32
    %c0_i32_2 = arith.constant 0 : i32
    return %c0_i32, %c0_i32_0, %c0_i32_1 : i32, i32, i32
  }
  func.func @transform_5(%arg0: i32, %arg1: i32) -> (i32, i32, i32) {
    %c0_i32 = arith.constant 0 : i32
    %c0_i32_0 = arith.constant 0 : i32
    %c0_i32_1 = arith.constant 0 : i32
    %c0_i32_2 = arith.constant 0 : i32
    return %c0_i32, %c0_i32_0, %c0_i32_1 : i32, i32, i32
  }
  func.func @transform_6(%arg0: i32, %arg1: i32) -> (i32, i32, i32) {
    %c0_i32 = arith.constant 0 : i32
    %c0_i32_0 = arith.constant 0 : i32
    %c0_i32_1 = arith.constant 0 : i32
    %c0_i32_2 = arith.constant 0 : i32
    return %c0_i32, %c0_i32_0, %c0_i32_1 : i32, i32, i32
  }
  func.func @transform_7(%arg0: i32, %arg1: i32) -> (i32, i32) {
    %c0_i32 = arith.constant 0 : i32
    %c0_i32_0 = arith.constant 0 : i32
    %c0_i32_1 = arith.constant 0 : i32
    return %c0_i32, %c0_i32_0 : i32, i32
  }
  func.func @transform_8(%arg0: i32, %arg1: i32) -> (i32, i32) {
    %c0_i32 = arith.constant 0 : i32
    %c0_i32_0 = arith.constant 0 : i32
    %c0_i32_1 = arith.constant 0 : i32
    return %c0_i32, %c0_i32_0 : i32, i32
  }
  func.func @transform_9(%arg0: i32, %arg1: i32) -> (i32, i32, i32) {
    %c0_i32 = arith.constant 0 : i32
    %c0_i32_0 = arith.constant 0 : i32
    return %arg0, %c0_i32, %arg1 : i32, i32, i32
  }
}

</mosaic_0001>

<llo_original>
// kernel: tpu_custom_call.1
$region0: #{tpu_custom_call.1}
  #allocation0 [shape = 'u32[]', space=smem, size = 0x4, offset = 0x4, fixed_abs, tag = 'smem constant byte address 0x4 - core index']
  #allocation1 [shape = 'u32[144,128]{1,0:T(1,128)}', space=vmem, size = 0x12000, scoped, tag = 'internal scratch']
  #allocation2 [shape = 'f32[1,1]{1,0:T(1,128)S(1)}', space=vmem, size = 0x200, scoped, tag = 'scoped memory for tpu_custom_call.1']
  %s0 = inlined_call_operand.vmem [shape: f32[2,128,3], index: 0, kind: input, shape index: {}]
  %s1 = inlined_call_operand.hbm [shape: f32[3,256], index: 1, kind: input, shape index: {}]
  %s2 = inlined_call_operand.vmem [shape: f32[2,4,256], index: 2, kind: input, shape index: {}]
  %s3 = inlined_call_operand.vmem [shape: bf16[1,256,256], index: 3, kind: input, shape index: {}]
  %s4 = inlined_call_operand.vmem [shape: f32[1,1,256], index: 4, kind: input, shape index: {}]
  %s5 = inlined_call_operand.hbm [shape: bf16[1,256,256], index: 5, kind: input, shape index: {}]
  %s6 = inlined_call_operand.vmem [shape: f32[1,1,256], index: 6, kind: input, shape index: {}]
  %s7 = inlined_call_operand.vmem [shape: f32[1,256], index: 7, kind: input, shape index: {}]
  %s8 = inlined_call_operand.<no memory space> [shape: f32[1,1], index: 8, kind: input, shape index: {}]
  %s9 = inlined_call_operand.hbm [shape: f32[2,4,128], index: 9, kind: output, shape index: {}]
  %s10 = sld [smem:[#allocation0]]
  $region77: #{tpu_custom_call.1} parent=0
    _
  %s12 = ssub.s32 1, %s10
  %s13 = scalar_select 0, %s12, %s10
  %v14 = vstv %s8
  %15 = vst [vmem:[#allocation2] sm:$0x1] %v14
  $region1: #{tpu_custom_call.1} parent=0
    #allocation3 [shape = 'u8[4096]{0}', space=vmem, size = 0x1000, scoped, tag = 'input window, operand 1, single buffered']
    #allocation4 [shape = 's32[2]{0}', space=sflag, size = 0x8, scoped, tag = 'scoped memory for tpu_custom_call.1']
    #allocation5 [shape = 's32[2]{0}', space=sflag, size = 0x8, scoped, tag = 'scoped memory for tpu_custom_call.1']
    #allocation6 [shape = 'u8[131072]{0}', space=vmem, size = 0x20000, scoped, tag = 'input window, operand 5, single buffered']
    #allocation7 [shape = 's32[1]{0}', space=sflag, size = 0x4, scoped, tag = 'scoped memory for tpu_custom_call.1']
    #allocation8 [shape = 'u8[4096]{0}', space=vmem, size = 0x1000, scoped, tag = 'output window, operand 0']
    %16 = vsyncpa [#allocation4], 0
    %17 = vsyncpa [#allocation7], 0
    %18 = vsyncpa [#allocation5], 0
    %s19 = scalar_lea.sflag [#allocation5], 1
    %20 = vsyncpa %s19, 0
    loop: start=0, step=1, limit=4
    $region2: #{tpu_custom_call.1} parent=1 // loop_pre_header
      _
    $region3: #{tpu_custom_call.1} parent=1 // loop_header
      %s22 = sphi 0, %s26
      %p23 = scmp.ge.s32.totalorder %s22, 4
      %s29 = sphi 0, %s41
      %s30 = sphi 0, %s37
      %s31 = sphi 0, %s29
      %s32 = sphi 0, %s30
      %s33 = sphi 0, %s31
      %s34 = sphi 0, %s32
      %s46 = sphi 0, %s48
      %s49 = sphi 0, %s46
      %s50 = sphi 0, %s49
      %s66 = sphi 0, %s50
      %s70 = sphi 0, %s70
      %s72 = sphi 0, %s70
      %s73 = sphi 0, %s72
      %s87 = sphi 0, %s73
      %s93 = sphi 0, %s95
      %s96 = sphi 0, %s93
      %s97 = sphi 0, %s96
      %s113 = sphi 0, %s97
      %s117 = sphi 0, %s117
      %s119 = sphi 0, %s117
      %s120 = sphi 0, %s119
      %s134 = sphi 0, %s120
      %s138 = sphi 0, %s138
      %s140 = sphi 0, %s138
      %s141 = sphi 0, %s140
      %s155 = sphi 0, %s141
      %s159 = sphi 0, %s159
      %s161 = sphi 0, %s159
      %s162 = sphi 0, %s161
      %s176 = sphi 0, %s162
      %s180 = sphi 0, %s180
      %s182 = sphi 0, %s180
      %s183 = sphi 0, %s182
      %s197 = sphi 0, %s183
      %s201 = sphi 0, %s201
      %s203 = sphi 0, %s201
      %s204 = sphi 0, %s203
      %s218 = sphi 0, %s204
      %s222 = sphi 0, %s222
      %s224 = sphi 0, %s222
      %s225 = sphi 0, %s224
      %s239 = sphi 0, %s225
      %s247 = sphi 0, %s249
      %s250 = sphi 0, %s247
      %s251 = sphi 0, %s250
      %s267 = sphi 0, %s251
    $region4: #{tpu_custom_call.1} parent=1 // loop_header_branch
      %25 = sbr.rel (%p23) target = $region8
    $region5: #{tpu_custom_call.1} parent=1 // loop_body
      %s27 = ssub.s32 %s22, 1
      %s28 = ssub.s32 %s22, 2
      %s35 = sadd.s32 1, %s30
      %p36 = scmp.ge.s32.totalorder %s35, 1
      %s37 = scalar_select %p36, 0, %s35
      %s38 = sadd.s32 1, %s29
      %s39 = scalar_select %p36, %s38, %s29
      %p40 = scmp.ge.s32.totalorder %s39, 2
      %s41 = scalar_select %p40, 0, %s39
      %s42 = ssub.s32 %s29, %s41
      %s43 = ssub.s32 %s30, %s37
      %s44 = sor.u32 %s42, %s43
      %p45 = scmp.eq.s32.totalorder %s44, 0
      %s47 = sadd.s32 %s46, 1
      %s48 = scalar_select %p45, %s46, %s47
      %p51 = pneg %p45
      %p52 = scmp.eq.s32.totalorder %s22, 1
      %p53 = por %p51, %p52
      %p54 = scmp.ne.s32.totalorder %s46, %s49
      %p55 = scmp.eq.s32.totalorder %s22, 0
      %p56 = por %p54, %p55
      %p57 = scmp.ne.s32.totalorder %s46, %s49
      %p58 = scmp.eq.s32.totalorder %s27, 1
      %p59 = por %p57, %p58
      %p60 = scmp.ne.s32.totalorder %s49, %s50
      %p61 = scmp.eq.s32.totalorder %s27, 0
      %p62 = por %p60, %p61
      %p63 = scmp.ne.s32.totalorder %s49, %s50
      %p64 = scmp.eq.s32.totalorder %s28, 1
      %p65 = por %p63, %p64
      %p67 = scmp.ne.s32.totalorder %s50, %s66
      %p68 = scmp.eq.s32.totalorder %s28, 0
      %p69 = por %p67, %p68
      %s71 = sadd.s32 %s70, 1
      %p74 = scmp.eq.s32.totalorder %s22, 1
      %p75 = scmp.ne.s32.totalorder %s70, %s72
      %p76 = scmp.eq.s32.totalorder %s22, 0
      %p77 = por %p75, %p76
      %p78 = scmp.ne.s32.totalorder %s70, %s72
      %p79 = scmp.eq.s32.totalorder %s27, 1
      %p80 = por %p78, %p79
      %p81 = scmp.ne.s32.totalorder %s72, %s73
      %p82 = scmp.eq.s32.totalorder %s27, 0
      %p83 = por %p81, %p82
      %p84 = scmp.ne.s32.totalorder %s72, %s73
      %p85 = scmp.eq.s32.totalorder %s28, 1
      %p86 = por %p84, %p85
      %p88 = scmp.ne.s32.totalorder %s73, %s87
      %p89 = scmp.eq.s32.totalorder %s28, 0
      %p90 = por %p88, %p89
      %s91 = ssub.s32 %s29, %s41
      %p92 = scmp.eq.s32.totalorder %s91, 0
      %s94 = sadd.s32 %s93, 1
      %s95 = scalar_select %p92, %s93, %s94
      %p98 = pneg %p92
      %p99 = scmp.eq.s32.totalorder %s22, 1
      %p100 = por %p98, %p99
      %p101 = scmp.ne.s32.totalorder %s93, %s96
      %p102 = scmp.eq.s32.totalorder %s22, 0
      %p103 = por %p101, %p102
      %p104 = scmp.ne.s32.totalorder %s93, %s96
      %p105 = scmp.eq.s32.totalorder %s27, 1
      %p106 = por %p104, %p105
      %p107 = scmp.ne.s32.totalorder %s96, %s97
      %p108 = scmp.eq.s32.totalorder %s27, 0
      %p109 = por %p107, %p108
      %p110 = scmp.ne.s32.totalorder %s96, %s97
      %p111 = scmp.eq.s32.totalorder %s28, 1
      %p112 = por %p110, %p111
      %p114 = scmp.ne.s32.totalorder %s97, %s113
      %p115 = scmp.eq.s32.totalorder %s28, 0
      %p116 = por %p114, %p115
      %s118 = sadd.s32 %s117, 1
      %p121 = scmp.eq.s32.totalorder %s22, 1
      %p122 = scmp.ne.s32.totalorder %s117, %s119
      %p123 = scmp.eq.s32.totalorder %s22, 0
      %p124 = por %p122, %p123
      %p125 = scmp.ne.s32.totalorder %s117, %s119
      %p126 = scmp.eq.s32.totalorder %s27, 1
      %p127 = por %p125, %p126
      %p128 = scmp.ne.s32.totalorder %s119, %s120
      %p129 = scmp.eq.s32.totalorder %s27, 0
      %p130 = por %p128, %p129
      %p131 = scmp.ne.s32.totalorder %s119, %s120
      %p132 = scmp.eq.s32.totalorder %s28, 1
      %p133 = por %p131, %p132
      %p135 = scmp.ne.s32.totalorder %s120, %s134
      %p136 = scmp.eq.s32.totalorder %s28, 0
      %p137 = por %p135, %p136
      %s139 = sadd.s32 %s138, 1
      %p142 = scmp.eq.s32.totalorder %s22, 1
      %p143 = scmp.ne.s32.totalorder %s138, %s140
      %p144 = scmp.eq.s32.totalorder %s22, 0
      %p145 = por %p143, %p144
      %p146 = scmp.ne.s32.totalorder %s138, %s140
      %p147 = scmp.eq.s32.totalorder %s27, 1
      %p148 = por %p146, %p147
      %p149 = scmp.ne.s32.totalorder %s140, %s141
      %p150 = scmp.eq.s32.totalorder %s27, 0
      %p151 = por %p149, %p150
      %p152 = scmp.ne.s32.totalorder %s140, %s141
      %p153 = scmp.eq.s32.totalorder %s28, 1
      %p154 = por %p152, %p153
      %p156 = scmp.ne.s32.totalorder %s141, %s155
      %p157 = scmp.eq.s32.totalorder %s28, 0
      %p158 = por %p156, %p157
      %s160 = sadd.s32 %s159, 1
      %p163 = scmp.eq.s32.totalorder %s22, 1
      %p164 = scmp.ne.s32.totalorder %s159, %s161
      %p165 = scmp.eq.s32.totalorder %s22, 0
      %p166 = por %p164, %p165
      %p167 = scmp.ne.s32.totalorder %s159, %s161
      %p168 = scmp.eq.s32.totalorder %s27, 1
      %p169 = por %p167, %p168
      %p170 = scmp.ne.s32.totalorder %s161, %s162
      %p171 = scmp.eq.s32.totalorder %s27, 0
      %p172 = por %p170, %p171
      %p173 = scmp.ne.s32.totalorder %s161, %s162
      %p174 = scmp.eq.s32.totalorder %s28, 1
      %p175 = por %p173, %p174
      %p177 = scmp.ne.s32.totalorder %s162, %s176
      %p178 = scmp.eq.s32.totalorder %s28, 0
      %p179 = por %p177, %p178
      %s181 = sadd.s32 %s180, 1
      %p184 = scmp.eq.s32.totalorder %s22, 1
      %p185 = scmp.ne.s32.totalorder %s180, %s182
      %p186 = scmp.eq.s32.totalorder %s22, 0
      %p187 = por %p185, %p186
      %p188 = scmp.ne.s32.totalorder %s180, %s182
      %p189 = scmp.eq.s32.totalorder %s27, 1
      %p190 = por %p188, %p189
      %p191 = scmp.ne.s32.totalorder %s182, %s183
      %p192 = scmp.eq.s32.totalorder %s27, 0
      %p193 = por %p191, %p192
      %p194 = scmp.ne.s32.totalorder %s182, %s183
      %p195 = scmp.eq.s32.totalorder %s28, 1
      %p196 = por %p194, %p195
      %p198 = scmp.ne.s32.totalorder %s183, %s197
      %p199 = scmp.eq.s32.totalorder %s28, 0
      %p200 = por %p198, %p199
      %s202 = sadd.s32 %s201, 1
      %p205 = scmp.eq.s32.totalorder %s22, 1
      %p206 = scmp.ne.s32.totalorder %s201, %s203
      %p207 = scmp.eq.s32.totalorder %s22, 0
      %p208 = por %p206, %p207
      %p209 = scmp.ne.s32.totalorder %s201, %s203
      %p210 = scmp.eq.s32.totalorder %s27, 1
      %p211 = por %p209, %p210
      %p212 = scmp.ne.s32.totalorder %s203, %s204
      %p213 = scmp.eq.s32.totalorder %s27, 0
      %p214 = por %p212, %p213
      %p215 = scmp.ne.s32.totalorder %s203, %s204
      %p216 = scmp.eq.s32.totalorder %s28, 1
      %p217 = por %p215, %p216
      %p219 = scmp.ne.s32.totalorder %s204, %s218
      %p220 = scmp.eq.s32.totalorder %s28, 0
      %p221 = por %p219, %p220
      %s223 = sadd.s32 %s222, 1
      %p226 = scmp.eq.s32.totalorder %s22, 1
      %p227 = scmp.ne.s32.totalorder %s222, %s224
      %p228 = scmp.eq.s32.totalorder %s22, 0
      %p229 = por %p227, %p228
      %p230 = scmp.ne.s32.totalorder %s222, %s224
      %p231 = scmp.eq.s32.totalorder %s27, 1
      %p232 = por %p230, %p231
      %p233 = scmp.ne.s32.totalorder %s224, %s225
      %p234 = scmp.eq.s32.totalorder %s27, 0
      %p235 = por %p233, %p234
      %p236 = scmp.ne.s32.totalorder %s224, %s225
      %p237 = scmp.eq.s32.totalorder %s28, 1
      %p238 = por %p236, %p237
      %p240 = scmp.ne.s32.totalorder %s225, %s239
      %p241 = scmp.eq.s32.totalorder %s28, 0
      %p242 = por %p240, %p241
      %s243 = ssub.s32 %s29, %s41
      %s244 = ssub.s32 %s30, %s37
      %s245 = sor.u32 %s243, %s244
      %p246 = scmp.eq.s32.totalorder %s245, 0
      %s248 = sadd.s32 %s247, 1
      %s249 = scalar_select %p246, %s247, %s248
      %p252 = pneg %p246
      %p253 = scmp.eq.s32.totalorder %s22, 1
      %p254 = por %p252, %p253
      %p255 = scmp.ne.s32.totalorder %s247, %s250
      %p256 = scmp.eq.s32.totalorder %s22, 0
      %p257 = por %p255, %p256
      %p258 = scmp.ne.s32.totalorder %s247, %s250
      %p259 = scmp.eq.s32.totalorder %s27, 1
      %p260 = por %p258, %p259
      %p261 = scmp.ne.s32.totalorder %s250, %s251
      %p262 = scmp.eq.s32.totalorder %s27, 0
      %p263 = por %p261, %p262
      %p264 = scmp.ne.s32.totalorder %s250, %s251
      %p265 = scmp.eq.s32.totalorder %s28, 1
      %p266 = por %p264, %p265
      %p268 = scmp.ne.s32.totalorder %s251, %s267
      %p269 = scmp.eq.s32.totalorder %s28, 0
      %p270 = por %p268, %p269
      %p271 = scmp.le.s32.totalorder 1, %s22
      %p272 = scmp.lt.s32.totalorder %s22, 3
      %p273 = pnand %p271, %p272
      %p274 = pneg %p273
      // Predicated region
      $region9: #{tpu_custom_call.1} parent=5 // pred_check
        _
      $region10: #{tpu_custom_call.1} parent=5 // pred_check_branch
        %276 = sbr.rel (%p273) target = $region12
      $region11: #{tpu_custom_call.1} parent=5 // pred_region
        %s277 = ssub.s32 %s22, 1
        // Predicated region
        $region13: #{tpu_custom_call.1} parent=11 // pred_check
          %p278 = pneg %p83
        $region14: #{tpu_custom_call.1} parent=11 // pred_check_branch
          %280 = sbr.rel (%p278) target = $region16
        $region15: #{tpu_custom_call.1} parent=11 // pred_region
          %s282 = ssub.s32 128, 128
          %283 = vsyncadd [#allocation4], %s282
          %s285 = sshll.u32 [#allocation3], 4
          %s286 = int_to_ptr.vmem [resolvable:$true] %s285
          %288 = dma.hbm_to_vmem [thread:$0]  %s1, 128, %s286, [#allocation4]
        $region16: #{tpu_custom_call.1} parent=11 // pred_fallthru
          _
        // Predicated region
        $region17: #{tpu_custom_call.1} parent=11 // pred_check
          %p289 = pneg %p130
        $region18: #{tpu_custom_call.1} parent=11 // pred_check_branch
          %291 = sbr.rel (%p289) target = $region20
        $region19: #{tpu_custom_call.1} parent=11 // pred_region
          _
        $region20: #{tpu_custom_call.1} parent=11 // pred_fallthru
          _
        // Predicated region
        $region21: #{tpu_custom_call.1} parent=11 // pred_check
          %p292 = pneg %p151
        $region22: #{tpu_custom_call.1} parent=11 // pred_check_branch
          %294 = sbr.rel (%p292) target = $region24
        $region23: #{tpu_custom_call.1} parent=11 // pred_region
          _
        $region24: #{tpu_custom_call.1} parent=11 // pred_fallthru
          _
        // Predicated region
        $region25: #{tpu_custom_call.1} parent=11 // pred_check
          %p295 = pneg %p172
        $region26: #{tpu_custom_call.1} parent=11 // pred_check_branch
          %297 = sbr.rel (%p295) target = $region28
        $region27: #{tpu_custom_call.1} parent=11 // pred_region
          %s299 = ssub.s32 4096, 4096
          %300 = vsyncadd [#allocation7], %s299
          %s301 = sshll.u32 [#allocation6], 4
          %s302 = int_to_ptr.vmem [resolvable:$true] %s301
          %307 = dma.hbm_to_vmem [thread:$0]  %s5, 4096, %s302, [#allocation7], 128, 128, 8
        $region28: #{tpu_custom_call.1} parent=11 // pred_fallthru
          _
        // Predicated region
        $region29: #{tpu_custom_call.1} parent=11 // pred_check
          %p308 = pneg %p193
        $region30: #{tpu_custom_call.1} parent=11 // pred_check_branch
          %310 = sbr.rel (%p308) target = $region32
        $region31: #{tpu_custom_call.1} parent=11 // pred_region
          _
        $region32: #{tpu_custom_call.1} parent=11 // pred_fallthru
          _
        // Predicated region
        $region33: #{tpu_custom_call.1} parent=11 // pred_check
          %p311 = pneg %p214
        $region34: #{tpu_custom_call.1} parent=11 // pred_check_branch
          %313 = sbr.rel (%p311) target = $region36
        $region35: #{tpu_custom_call.1} parent=11 // pred_region
          _
        $region36: #{tpu_custom_call.1} parent=11 // pred_fallthru
          _
        // Predicated region
        $region37: #{tpu_custom_call.1} parent=11 // pred_check
          %p314 = pneg %p235
        $region38: #{tpu_custom_call.1} parent=11 // pred_check_branch
          %316 = sbr.rel (%p314) target = $region40
        $region39: #{tpu_custom_call.1} parent=11 // pred_region
          _
        $region40: #{tpu_custom_call.1} parent=11 // pred_fallthru
          _
      $region12: #{tpu_custom_call.1} parent=5 // pred_fallthru
        _
      %p317 = scmp.lt.s32.totalorder %s22, 2
      // Predicated region
      $region41: #{tpu_custom_call.1} parent=5 // pred_check
        %p318 = pneg %p317
      $region42: #{tpu_custom_call.1} parent=5 // pred_check_branch
        %320 = sbr.rel (%p318) target = $region44
      $region43: #{tpu_custom_call.1} parent=5 // pred_region
        // Predicated region
        $region45: #{tpu_custom_call.1} parent=43 // pred_check
          %p321 = pneg %p56
        $region46: #{tpu_custom_call.1} parent=43 // pred_check_branch
          %323 = sbr.rel (%p321) target = $region48
        $region47: #{tpu_custom_call.1} parent=43 // pred_region
          %s324 = smul.u32 16, %s30
          %p325 = scmp.lt.s32.totalorder %s29, 1
          %s326 = scalar_select %p325, %s29, 1
          %p327 = scmp.lt.s32.totalorder %s324, 15
          %s328 = scalar_select %p327, %s324, 15
          %s329 = smul.addr %s326, 16
          %s330 = sadd.s32 %s328, %s329
          %s331 = smul.addr %s330, 8
          %s332 = scalar_lea.vmem %s0, %s331
          %s333 = smul.u32 16, %s30
        $region48: #{tpu_custom_call.1} parent=43 // pred_fallthru
          _
        // Predicated region
        $region49: #{tpu_custom_call.1} parent=43 // pred_check
          %p334 = pneg %p103
        $region50: #{tpu_custom_call.1} parent=43 // pred_check_branch
          %336 = sbr.rel (%p334) target = $region52
        $region51: #{tpu_custom_call.1} parent=43 // pred_region
          %p337 = scmp.lt.s32.totalorder %s29, 1
          %s338 = scalar_select %p337, %s29, 1
          %s339 = smul.addr %s338, 2
          %s340 = smul.addr %s339, 4
          %s341 = scalar_lea.vmem %s2, %s340
        $region52: #{tpu_custom_call.1} parent=43 // pred_fallthru
          _
      $region44: #{tpu_custom_call.1} parent=5 // pred_fallthru
        _
      %p342 = scmp.le.s32.totalorder 1, %s22
      %p343 = scmp.lt.s32.totalorder %s22, 3
      %p344 = pnand %p342, %p343
      %p345 = pneg %p344
      // Predicated region
      $region53: #{tpu_custom_call.1} parent=5 // pred_check
        _
      $region54: #{tpu_custom_call.1} parent=5 // pred_check_branch
        %347 = sbr.rel (%p344) target = $region56
      $region55: #{tpu_custom_call.1} parent=5 // pred_region
        %s348 = ssub.s32 %s22, 1
        // Predicated region
        $region57: #{tpu_custom_call.1} parent=55 // pred_check
          %p349 = pneg %p83
        $region58: #{tpu_custom_call.1} parent=55 // pred_check_branch
          %351 = sbr.rel (%p349) target = $region60
        $region59: #{tpu_custom_call.1} parent=55 // pred_region
          %352 = dma.done [#allocation4], 128
        $region60: #{tpu_custom_call.1} parent=55 // pred_fallthru
          _
        // Predicated region
        $region61: #{tpu_custom_call.1} parent=55 // pred_check
          %p353 = pneg %p172
        $region62: #{tpu_custom_call.1} parent=55 // pred_check_branch
          %355 = sbr.rel (%p353) target = $region64
        $region63: #{tpu_custom_call.1} parent=55 // pred_region
          %356 = dma.done [#allocation7], 4096
        $region64: #{tpu_custom_call.1} parent=55 // pred_fallthru
          _
        %s357 = smul.u32 16, %s32
        %p358 = scmp.lt.s32.totalorder %s31, 1
        %s359 = scalar_select %p358, %s31, 1
        %p360 = scmp.lt.s32.totalorder %s357, 15
        %s361 = scalar_select %p360, %s357, 15
        %s362 = smul.addr %s359, 16
        %s363 = sadd.s32 %s361, %s362
        %s364 = smul.addr %s363, 8
        %s365 = scalar_lea.vmem %s0, %s364
        %p366 = pneg %p62
        %p367 = pneg %p59
        %p368 = pneg %p83
        %p369 = pneg %p80
        %p370 = scmp.lt.s32.totalorder %s31, 1
        %s371 = scalar_select %p370, %s31, 1
        %s372 = smul.addr %s371, 2
        %s373 = smul.addr %s372, 4
        %s374 = scalar_lea.vmem %s2, %s373
        %p375 = pneg %p109
        %p376 = pneg %p106
        %p377 = pneg %p130
        %p378 = pneg %p127
        %p379 = pneg %p151
        %p380 = pneg %p148
        %p381 = pneg %p172
        %p382 = pneg %p169
        %p383 = pneg %p193
        %p384 = pneg %p190
        %p385 = pneg %p214
        %p386 = pneg %p211
        %p387 = pneg %p235
        %p388 = pneg %p232
        %p389 = pneg %p263
        %p390 = pneg %p260
        %s391 = sand.u32 %s250, 1
        %s392 = scalar_lea.sflag [#allocation5], %s391
        %s393 = sand.u32 %s250, 1
        %s394 = smul.addr %s393, 4
        %s395 = scalar_lea.vmem [#allocation8], %s394
        %s396 = smul.u32 16, %s32
        %p397 = scmp.lt.s32.totalorder %s31, 1
        %s398 = scalar_select %p397, %s31, 1
        %p399 = scmp.lt.s32.totalorder %s396, 15
        %s400 = scalar_select %p399, %s396, 15
        %s401 = smul.addr %s398, 16
        %s402 = sadd.s32 %s400, %s401
        %s403 = smul.addr %s402, 8
        %s404 = scalar_lea.vmem %s0, %s403
        %s405 = smul.u32 16, %s32
        %p406 = scmp.lt.s32.totalorder %s31, 1
        %s407 = scalar_select %p406, %s31, 1
        %s408 = smul.addr %s407, 2
        %s409 = smul.addr %s408, 4
        %s410 = scalar_lea.vmem %s2, %s409
        %v412 = vld [vmem:[%s404] sm:$0xff]
        %v413 = vld [vmem:[%s404 + $0x8] sm:$0xff]
        %v414 = vld [vmem:[%s404 + $0x10] sm:$0xff]
        %v415 = vld [vmem:[%s404 + $0x18] sm:$0xff]
        %v416 = vld [vmem:[%s404 + $0x20] sm:$0xff]
        %v417 = vld [vmem:[%s404 + $0x28] sm:$0xff]
        %v418 = vld [vmem:[%s404 + $0x30] sm:$0xff]
        %v419 = vld [vmem:[%s404 + $0x38] sm:$0xff]
        %v420 = vld [vmem:[%s404 + $0x40] sm:$0xff]
        %v421 = vld [vmem:[%s404 + $0x48] sm:$0xff]
        %v422 = vld [vmem:[%s404 + $0x50] sm:$0xff]
        %v423 = vld [vmem:[%s404 + $0x58] sm:$0xff]
        %v424 = vld [vmem:[%s404 + $0x60] sm:$0xff]
        %v425 = vld [vmem:[%s404 + $0x68] sm:$0xff]
        %v426 = vld [vmem:[%s404 + $0x70] sm:$0xff]
        %v427 = vld [vmem:[%s404 + $0x78] sm:$0xff]
        %v428 = vld [vmem:[#allocation3] sm:$0x77]
        %v430 = vcombine.high %v428, %v428
        %vm431 = vcmask 23552
        %v433 = vsel %vm431, %v412, 0
        %v436 = vsel %vm431, %v413, 0
        %v439 = vsel %vm431, %v414, 0
        %v442 = vsel %vm431, %v415, 0
        %v445 = vsel %vm431, %v416, 0
        %v448 = vsel %vm431, %v417, 0
        %v451 = vsel %vm431, %v418, 0
        %v454 = vsel %vm431, %v419, 0
        %v457 = vsel %vm431, %v420, 0
        %v460 = vsel %vm431, %v421, 0
        %v463 = vsel %vm431, %v422, 0
        %v466 = vsel %vm431, %v423, 0
        %v469 = vsel %vm431, %v424, 0
        %v472 = vsel %vm431, %v425, 0
        %v475 = vsel %vm431, %v426, 0
        %v478 = vsel %vm431, %v427, 0
        %vm480 = vcmask 1042432
        %v481 = vsel %vm480, %v428, 0
        %v483 = vsel %vm480, %v430, 0
        %485 = vmatprep.subr.mxu0 %v483
        %486 = vmatpush1.msra.mxu0 %v481
        %487 = vmatprep.subr.mxu0 0.0
        %488 = vmatpush1.msra.mxu0 0.0
        %489 = vmatprep.subr.mxu0 0.0
        %490 = vmatpush1.msra.mxu0 0.0
        %491 = vmatprep.subr.mxu0 0.0
        %492 = vmatpush1.msra.mxu0 0.0
        %493 = vmatprep.subr.mxu0 0.0
        %494 = vmatpush1.msra.mxu0 0.0
        %495 = vmatprep.subr.mxu0 0.0
        %496 = vmatpush1.msra.mxu0 0.0
        %497 = vmatprep.subr.mxu0 0.0
        %498 = vmatpush1.msra.mxu0 0.0
        %499 = vmatprep.subr.mxu0 0.0
        %500 = vmatpush1.msra.mxu0 0.0
        %501 = vmatprep.subr.mxu0 0.0
        %502 = vmatpush1.msra.mxu0 0.0
        %503 = vmatprep.subr.mxu0 0.0
        %504 = vmatpush1.msra.mxu0 0.0
        %505 = vmatprep.subr.mxu0 0.0
        %506 = vmatpush1.msra.mxu0 0.0
        %507 = vmatprep.subr.mxu0 0.0
        %508 = vmatpush1.msra.mxu0 0.0
        %509 = vmatprep.subr.mxu0 0.0
        %510 = vmatpush1.msra.mxu0 0.0
        %511 = vmatprep.subr.mxu0 0.0
        %512 = vmatpush1.msra.mxu0 0.0
        %513 = vmatprep.subr.mxu0 0.0
        %514 = vmatpush1.msra.mxu0 0.0
        %515 = vmatprep.subr.mxu0 0.0
        %516 = vmatpush1.msra.mxu0 0.0
        %517 = vmatprep.subr.mxu0 0.0
        %518 = vmatpush1.msra.mxu0 0.0
        %519 = vmatprep.subr.mxu0 0.0
        %520 = vmatpush1.msra.mxu0 0.0
        %521 = vmatprep.subr.mxu0 0.0
        %522 = vmatpush1.msra.mxu0 0.0
        %523 = vmatprep.subr.mxu0 0.0
        %524 = vmatpush1.msra.mxu0 0.0
        %525 = vmatprep.subr.mxu0 0.0
        %526 = vmatpush1.msra.mxu0 0.0
        %527 = vmatprep.subr.mxu0 0.0
        %528 = vmatpush1.msra.mxu0 0.0
        %529 = vmatprep.subr.mxu0 0.0
        %530 = vmatpush1.msra.mxu0 0.0
        %531 = vmatprep.subr.mxu0 0.0
        %532 = vmatpush1.msra.mxu0 0.0
        %533 = vmatprep.subr.mxu0 0.0
        %534 = vmatpush1.msra.mxu0 0.0
        %535 = vmatprep.subr.mxu0 0.0
        %536 = vmatpush1.msra.mxu0 0.0
        %537 = vmatprep.subr.mxu0 0.0
        %538 = vmatpush1.msra.mxu0 0.0
        %539 = vmatprep.subr.mxu0 0.0
        %540 = vmatpush1.msra.mxu0 0.0
        %541 = vmatprep.subr.mxu0 0.0
        %542 = vmatpush1.msra.mxu0 0.0
        %543 = vmatprep.subr.mxu0 0.0
        %544 = vmatpush1.msra.mxu0 0.0
        %545 = vmatprep.subr.mxu0 0.0
        %546 = vmatpush1.msra.mxu0 0.0
        %547 = vmatprep.subr.mxu0 0.0
        %548 = vmatpush1.msra.mxu0 0.0
        %549 = vmatprep.mubr.f32.mxu0 0.0
        %550 = vmatmul.mubr.f32.gmra.mrb[0].mxu0 %v433
        %v551 = vpop.f32.mrb[0].mxu0
        %v552 = vadd.f32 0.0, %v551
        %v553 = vpop.f32.mrb[0].mxu0
        %v554 = vadd.f32 0.0, %v553
        %555 = vmatprep.mubr.f32.mxu0 0.0
        %556 = vmatmul.mubr.f32.gmra.mrb[0].mxu0 %v436
        %v557 = vpop.f32.mrb[0].mxu0
        %v558 = vadd.f32 0.0, %v557
        %v559 = vpop.f32.mrb[0].mxu0
        %v560 = vadd.f32 0.0, %v559
        %561 = vmatprep.mubr.f32.mxu0 0.0
        %562 = vmatmul.mubr.f32.gmra.mrb[0].mxu0 %v439
        %v563 = vpop.f32.mrb[0].mxu0
        %v564 = vadd.f32 0.0, %v563
        %v565 = vpop.f32.mrb[0].mxu0
        %v566 = vadd.f32 0.0, %v565
        %567 = vmatprep.mubr.f32.mxu0 0.0
        %568 = vmatmul.mubr.f32.gmra.mrb[0].mxu0 %v442
        %v569 = vpop.f32.mrb[0].mxu0
        %v570 = vadd.f32 0.0, %v569
        %v571 = vpop.f32.mrb[0].mxu0
        %v572 = vadd.f32 0.0, %v571
        %573 = vmatprep.mubr.f32.mxu0 0.0
        %574 = vmatmul.mubr.f32.gmra.mrb[0].mxu0 %v445
        %v575 = vpop.f32.mrb[0].mxu0
        %v576 = vadd.f32 0.0, %v575
        %v577 = vpop.f32.mrb[0].mxu0
        %v578 = vadd.f32 0.0, %v577
        %579 = vmatprep.mubr.f32.mxu0 0.0
        %580 = vmatmul.mubr.f32.gmra.mrb[0].mxu0 %v448
        %v581 = vpop.f32.mrb[0].mxu0
        %v582 = vadd.f32 0.0, %v581
        %v583 = vpop.f32.mrb[0].mxu0
        %v584 = vadd.f32 0.0, %v583
        %585 = vmatprep.mubr.f32.mxu0 0.0
        %586 = vmatmul.mubr.f32.gmra.mrb[0].mxu0 %v451
        %v587 = vpop.f32.mrb[0].mxu0
        %v588 = vadd.f32 0.0, %v587
        %v589 = vpop.f32.mrb[0].mxu0
        %v590 = vadd.f32 0.0, %v589
        %591 = vmatprep.mubr.f32.mxu0 0.0
        %592 = vmatmul.mubr.f32.gmra.mrb[0].mxu0 %v454
        %v593 = vpop.f32.mrb[0].mxu0
        %v594 = vadd.f32 0.0, %v593
        %v595 = vpop.f32.mrb[0].mxu0
        %v596 = vadd.f32 0.0, %v595
        %597 = vmatprep.mubr.f32.mxu0 0.0
        %598 = vmatmul.mubr.f32.gmra.mrb[0].mxu0 %v457
        %v599 = vpop.f32.mrb[0].mxu0
        %v600 = vadd.f32 0.0, %v599
        %v601 = vpop.f32.mrb[0].mxu0
        %v602 = vadd.f32 0.0, %v601
        %603 = vmatprep.mubr.f32.mxu0 0.0
        %604 = vmatmul.mubr.f32.gmra.mrb[0].mxu0 %v460
        %v605 = vpop.f32.mrb[0].mxu0
        %v606 = vadd.f32 0.0, %v605
        %v607 = vpop.f32.mrb[0].mxu0
        %v608 = vadd.f32 0.0, %v607
        %609 = vmatprep.mubr.f32.mxu0 0.0
        %610 = vmatmul.mubr.f32.gmra.mrb[0].mxu0 %v463
        %v611 = vpop.f32.mrb[0].mxu0
        %v612 = vadd.f32 0.0, %v611
        %v613 = vpop.f32.mrb[0].mxu0
        %v614 = vadd.f32 0.0, %v613
        %615 = vmatprep.mubr.f32.mxu0 0.0
        %616 = vmatmul.mubr.f32.gmra.mrb[0].mxu0 %v466
        %v617 = vpop.f32.mrb[0].mxu0
        %v618 = vadd.f32 0.0, %v617
        %v619 = vpop.f32.mrb[0].mxu0
        %v620 = vadd.f32 0.0, %v619
        %621 = vmatprep.mubr.f32.mxu0 0.0
        %622 = vmatmul.mubr.f32.gmra.mrb[0].mxu0 %v469
        %v623 = vpop.f32.mrb[0].mxu0
        %v624 = vadd.f32 0.0, %v623
        %v625 = vpop.f32.mrb[0].mxu0
        %v626 = vadd.f32 0.0, %v625
        %627 = vmatprep.mubr.f32.mxu0 0.0
        %628 = vmatmul.mubr.f32.gmra.mrb[0].mxu0 %v472
        %v629 = vpop.f32.mrb[0].mxu0
        %v630 = vadd.f32 0.0, %v629
        %v631 = vpop.f32.mrb[0].mxu0
        %v632 = vadd.f32 0.0, %v631
        %633 = vmatprep.mubr.f32.mxu0 0.0
        %634 = vmatmul.mubr.f32.gmra.mrb[0].mxu0 %v475
        %v635 = vpop.f32.mrb[0].mxu0
        %v636 = vadd.f32 0.0, %v635
        %v637 = vpop.f32.mrb[0].mxu0
        %v638 = vadd.f32 0.0, %v637
        %639 = vmatprep.mubr.f32.mxu0 0.0
        %640 = vmatmul.mubr.f32.gmra.mrb[0].mxu0 %v478
        %v641 = vpop.f32.mrb[0].mxu0
        %v642 = vadd.f32 0.0, %v641
        %v643 = vpop.f32.mrb[0].mxu0
        %v644 = vadd.f32 0.0, %v643
        %645 = vdwg.mxu0
        %v646 = vld [vmem:[%s410] sm:$0xff]
        %v649 = vunpack.c.l.s4 1966171168
        %v650 = vunpack.c.0.s8 %v649
        %v651 = vlaneseq
        %v652 = vshrl.u32 %v651, 7
        %v653 = vsub.s32 %v650, %v652
        %v654 = vrot.slane %v646, %v653
        %v655 = vcombine.high %v654, %v654
        %v657 = vunpack.c.l.s4 1966171168
        %v658 = vunpack.c.0.s8 %v657
        %v659 = vlaneseq
        %v660 = vshrl.u32 %v659, 7
        %v661 = vsub.s32 %v658, %v660
        %v662 = vrot.slane %v654, %v661
        %v664 = vunpack.c.l.s4 1966171168
        %v665 = vunpack.c.0.s8 %v664
        %v666 = vlaneseq
        %v667 = vshrl.u32 %v666, 7
        %v668 = vsub.s32 %v665, %v667
        %v669 = vrot.slane %v655, %v668
        %v670 = vcombine.high %v662, %v662
        %v671 = vcombine.high %v669, %v669
        %v672 = vlaneseq
        %v673 = vshrl.u32 %v672, 7
        %v674 = vsub.s32 0, %v673
        %v675 = vrot.slane %v662, %v674
        %v676 = vlaneseq
        %v677 = vshrl.u32 %v676, 7
        %v678 = vsub.s32 1, %v677
        %v679 = vrot.slane %v662, %v678
        %v680 = vlaneseq
        %v681 = vshrl.u32 %v680, 7
        %v682 = vsub.s32 0, %v681
        %v683 = vrot.slane %v669, %v682
        %v684 = vlaneseq
        %v685 = vshrl.u32 %v684, 7
        %v686 = vsub.s32 1, %v685
        %v687 = vrot.slane %v669, %v686
        %v688 = vlaneseq
        %v689 = vshrl.u32 %v688, 7
        %v690 = vsub.s32 0, %v689
        %v691 = vrot.slane %v670, %v690
        %v692 = vlaneseq
        %v693 = vshrl.u32 %v692, 7
        %v694 = vsub.s32 1, %v693
        %v695 = vrot.slane %v670, %v694
        %v696 = vlaneseq
        %v697 = vshrl.u32 %v696, 7
        %v698 = vsub.s32 0, %v697
        %v699 = vrot.slane %v671, %v698
        %v700 = vlaneseq
        %v701 = vshrl.u32 %v700, 7
        %v702 = vsub.s32 1, %v701
        %v703 = vrot.slane %v671, %v702
        %v712 = vadd.f32 %v552, %v675
        %v713 = vadd.f32 %v554, %v679
        %v714 = vadd.f32 %v558, %v675
        %v715 = vadd.f32 %v560, %v679
        %v716 = vadd.f32 %v564, %v675
        %v717 = vadd.f32 %v566, %v679
        %v718 = vadd.f32 %v570, %v675
        %v719 = vadd.f32 %v572, %v679
        %v720 = vadd.f32 %v576, %v675
        %v721 = vadd.f32 %v578, %v679
        %v722 = vadd.f32 %v582, %v675
        %v723 = vadd.f32 %v584, %v679
        %v724 = vadd.f32 %v588, %v675
        %v725 = vadd.f32 %v590, %v679
        %v726 = vadd.f32 %v594, %v675
        %v727 = vadd.f32 %v596, %v679
        %v728 = vadd.f32 %v600, %v675
        %v729 = vadd.f32 %v602, %v679
        %v730 = vadd.f32 %v606, %v675
        %v731 = vadd.f32 %v608, %v679
        %v732 = vadd.f32 %v612, %v675
        %v733 = vadd.f32 %v614, %v679
        %v734 = vadd.f32 %v618, %v675
        %v735 = vadd.f32 %v620, %v679
        %v736 = vadd.f32 %v624, %v675
        %v737 = vadd.f32 %v626, %v679
        %v738 = vadd.f32 %v630, %v675
        %v739 = vadd.f32 %v632, %v679
        %v740 = vadd.f32 %v636, %v675
        %v741 = vadd.f32 %v638, %v679
        %v742 = vadd.f32 %v642, %v675
        %v743 = vadd.f32 %v644, %v679
        %v744 = vadd.f32 %v552, %v683
        %v745 = vadd.f32 %v554, %v687
        %v746 = vadd.f32 %v558, %v683
        %v747 = vadd.f32 %v560, %v687
        %v748 = vadd.f32 %v564, %v683
        %v749 = vadd.f32 %v566, %v687
        %v750 = vadd.f32 %v570, %v683
        %v751 = vadd.f32 %v572, %v687
        %v752 = vadd.f32 %v576, %v683
        %v753 = vadd.f32 %v578, %v687
        %v754 = vadd.f32 %v582, %v683
        %v755 = vadd.f32 %v584, %v687
        %v756 = vadd.f32 %v588, %v683
        %v757 = vadd.f32 %v590, %v687
        %v758 = vadd.f32 %v594, %v683
        %v759 = vadd.f32 %v596, %v687
        %v760 = vadd.f32 %v600, %v683
        %v761 = vadd.f32 %v602, %v687
        %v762 = vadd.f32 %v606, %v683
        %v763 = vadd.f32 %v608, %v687
        %v764 = vadd.f32 %v612, %v683
        %v765 = vadd.f32 %v614, %v687
        %v766 = vadd.f32 %v618, %v683
        %v767 = vadd.f32 %v620, %v687
        %v768 = vadd.f32 %v624, %v683
        %v769 = vadd.f32 %v626, %v687
        %v770 = vadd.f32 %v630, %v683
        %v771 = vadd.f32 %v632, %v687
        %v772 = vadd.f32 %v636, %v683
        %v773 = vadd.f32 %v638, %v687
        %v774 = vadd.f32 %v642, %v683
        %v775 = vadd.f32 %v644, %v687
        %v776 = vadd.f32 %v552, %v691
        %v777 = vadd.f32 %v554, %v695
        %v778 = vadd.f32 %v558, %v691
        %v779 = vadd.f32 %v560, %v695
        %v780 = vadd.f32 %v564, %v691
        %v781 = vadd.f32 %v566, %v695
        %v782 = vadd.f32 %v570, %v691
        %v783 = vadd.f32 %v572, %v695
        %v784 = vadd.f32 %v576, %v691
        %v785 = vadd.f32 %v578, %v695
        %v786 = vadd.f32 %v582, %v691
        %v787 = vadd.f32 %v584, %v695
        %v788 = vadd.f32 %v588, %v691
        %v789 = vadd.f32 %v590, %v695
        %v790 = vadd.f32 %v594, %v691
        %v791 = vadd.f32 %v596, %v695
        %v792 = vadd.f32 %v600, %v691
        %v793 = vadd.f32 %v602, %v695
        %v794 = vadd.f32 %v606, %v691
        %v795 = vadd.f32 %v608, %v695
        %v796 = vadd.f32 %v612, %v691
        %v797 = vadd.f32 %v614, %v695
        %v798 = vadd.f32 %v618, %v691
        %v799 = vadd.f32 %v620, %v695
        %v800 = vadd.f32 %v624, %v691
        %v801 = vadd.f32 %v626, %v695
        %v802 = vadd.f32 %v630, %v691
        %v803 = vadd.f32 %v632, %v695
        %v804 = vadd.f32 %v636, %v691
        %v805 = vadd.f32 %v638, %v695
        %v806 = vadd.f32 %v642, %v691
        %v807 = vadd.f32 %v644, %v695
        %v808 = vadd.f32 %v552, %v699
        %v809 = vadd.f32 %v554, %v703
        %v810 = vadd.f32 %v558, %v699
        %v811 = vadd.f32 %v560, %v703
        %v812 = vadd.f32 %v564, %v699
        %v813 = vadd.f32 %v566, %v703
        %v814 = vadd.f32 %v570, %v699
        %v815 = vadd.f32 %v572, %v703
        %v816 = vadd.f32 %v576, %v699
        %v817 = vadd.f32 %v578, %v703
        %v818 = vadd.f32 %v582, %v699
        %v819 = vadd.f32 %v584, %v703
        %v820 = vadd.f32 %v588, %v699
        %v821 = vadd.f32 %v590, %v703
        %v822 = vadd.f32 %v594, %v699
        %v823 = vadd.f32 %v596, %v703
        %v824 = vadd.f32 %v600, %v699
        %v825 = vadd.f32 %v602, %v703
        %v826 = vadd.f32 %v606, %v699
        %v827 = vadd.f32 %v608, %v703
        %v828 = vadd.f32 %v612, %v699
        %v829 = vadd.f32 %v614, %v703
        %v830 = vadd.f32 %v618, %v699
        %v831 = vadd.f32 %v620, %v703
        %v832 = vadd.f32 %v624, %v699
        %v833 = vadd.f32 %v626, %v703
        %v834 = vadd.f32 %v630, %v699
        %v835 = vadd.f32 %v632, %v703
        %v836 = vadd.f32 %v636, %v699
        %v837 = vadd.f32 %v638, %v703
        %v838 = vadd.f32 %v642, %v699
        %v839 = vadd.f32 %v644, %v703
        %v840 = vpack.c.bf16 %v714, %v712
        %v841 = vpack.c.bf16 %v715, %v713
        %v842 = vpack.c.bf16 %v718, %v716
        %v843 = vpack.c.bf16 %v719, %v717
        %v844 = vpack.c.bf16 %v722, %v720
        %v845 = vpack.c.bf16 %v723, %v721
        %v846 = vpack.c.bf16 %v726, %v724
        %v847 = vpack.c.bf16 %v727, %v725
        %v848 = vpack.c.bf16 %v730, %v728
        %v849 = vpack.c.bf16 %v731, %v729
        %v850 = vpack.c.bf16 %v734, %v732
        %v851 = vpack.c.bf16 %v735, %v733
        %v852 = vpack.c.bf16 %v738, %v736
        %v853 = vpack.c.bf16 %v739, %v737
        %v854 = vpack.c.bf16 %v742, %v740
        %v855 = vpack.c.bf16 %v743, %v741
        %v856 = vpack.c.bf16 %v746, %v744
        %v857 = vpack.c.bf16 %v747, %v745
        %v858 = vpack.c.bf16 %v750, %v748
        %v859 = vpack.c.bf16 %v751, %v749
        %v860 = vpack.c.bf16 %v754, %v752
        %v861 = vpack.c.bf16 %v755, %v753
        %v862 = vpack.c.bf16 %v758, %v756
        %v863 = vpack.c.bf16 %v759, %v757
        %v864 = vpack.c.bf16 %v762, %v760
        %v865 = vpack.c.bf16 %v763, %v761
        %v866 = vpack.c.bf16 %v766, %v764
        %v867 = vpack.c.bf16 %v767, %v765
        %v868 = vpack.c.bf16 %v770, %v768
        %v869 = vpack.c.bf16 %v771, %v769
        %v870 = vpack.c.bf16 %v774, %v772
        %v871 = vpack.c.bf16 %v775, %v773
        %v872 = vpack.c.bf16 %v778, %v776
        %v873 = vpack.c.bf16 %v779, %v777
        %v874 = vpack.c.bf16 %v782, %v780
        %v875 = vpack.c.bf16 %v783, %v781
        %v876 = vpack.c.bf16 %v786, %v784
        %v877 = vpack.c.bf16 %v787, %v785
        %v878 = vpack.c.bf16 %v790, %v788
        %v879 = vpack.c.bf16 %v791, %v789
        %v880 = vpack.c.bf16 %v794, %v792
        %v881 = vpack.c.bf16 %v795, %v793
        %v882 = vpack.c.bf16 %v798, %v796
        %v883 = vpack.c.bf16 %v799, %v797
        %v884 = vpack.c.bf16 %v802, %v800
        %v885 = vpack.c.bf16 %v803, %v801
        %v886 = vpack.c.bf16 %v806, %v804
        %v887 = vpack.c.bf16 %v807, %v805
        %v888 = vpack.c.bf16 %v810, %v808
        %v889 = vpack.c.bf16 %v811, %v809
        %v890 = vpack.c.bf16 %v814, %v812
        %v891 = vpack.c.bf16 %v815, %v813
        %v892 = vpack.c.bf16 %v818, %v816
        %v893 = vpack.c.bf16 %v819, %v817
        %v894 = vpack.c.bf16 %v822, %v820
        %v895 = vpack.c.bf16 %v823, %v821
        %v896 = vpack.c.bf16 %v826, %v824
        %v897 = vpack.c.bf16 %v827, %v825
        %v898 = vpack.c.bf16 %v830, %v828
        %v899 = vpack.c.bf16 %v831, %v829
        %v900 = vpack.c.bf16 %v834, %v832
        %v901 = vpack.c.bf16 %v835, %v833
        %v902 = vpack.c.bf16 %v838, %v836
        %v903 = vpack.c.bf16 %v839, %v837
        %v904 = vmax.bf16 %v840, 0
        %v905 = vmax.bf16 %v841, 0
        %v906 = vmax.bf16 %v842, 0
        %v907 = vmax.bf16 %v843, 0
        %v908 = vmax.bf16 %v844, 0
        %v909 = vmax.bf16 %v845, 0
        %v910 = vmax.bf16 %v846, 0
        %v911 = vmax.bf16 %v847, 0
        %v912 = vmax.bf16 %v848, 0
        %v913 = vmax.bf16 %v849, 0
        %v914 = vmax.bf16 %v850, 0
        %v915 = vmax.bf16 %v851, 0
        %v916 = vmax.bf16 %v852, 0
        %v917 = vmax.bf16 %v853, 0
        %v918 = vmax.bf16 %v854, 0
        %v919 = vmax.bf16 %v855, 0
        %v920 = vmax.bf16 %v856, 0
        %v921 = vmax.bf16 %v857, 0
        %v922 = vmax.bf16 %v858, 0
        %v923 = vmax.bf16 %v859, 0
        %v924 = vmax.bf16 %v860, 0
        %v925 = vmax.bf16 %v861, 0
        %v926 = vmax.bf16 %v862, 0
        %v927 = vmax.bf16 %v863, 0
        %v928 = vmax.bf16 %v864, 0
        %v929 = vmax.bf16 %v865, 0
        %v930 = vmax.bf16 %v866, 0
        %v931 = vmax.bf16 %v867, 0
        %v932 = vmax.bf16 %v868, 0
        %v933 = vmax.bf16 %v869, 0
        %v934 = vmax.bf16 %v870, 0
        %v935 = vmax.bf16 %v871, 0
        %v936 = vmax.bf16 %v872, 0
        %v937 = vmax.bf16 %v873, 0
        %v938 = vmax.bf16 %v874, 0
        %v939 = vmax.bf16 %v875, 0
        %v940 = vmax.bf16 %v876, 0
        %v941 = vmax.bf16 %v877, 0
        %v942 = vmax.bf16 %v878, 0
        %v943 = vmax.bf16 %v879, 0
        %v944 = vmax.bf16 %v880, 0
        %v945 = vmax.bf16 %v881, 0
        %v946 = vmax.bf16 %v882, 0
        %v947 = vmax.bf16 %v883, 0
        %v948 = vmax.bf16 %v884, 0
        %v949 = vmax.bf16 %v885, 0
        %v950 = vmax.bf16 %v886, 0
        %v951 = vmax.bf16 %v887, 0
        %v952 = vmax.bf16 %v888, 0
        %v953 = vmax.bf16 %v889, 0
        %v954 = vmax.bf16 %v890, 0
        %v955 = vmax.bf16 %v891, 0
        %v956 = vmax.bf16 %v892, 0
        %v957 = vmax.bf16 %v893, 0
        %v958 = vmax.bf16 %v894, 0
        %v959 = vmax.bf16 %v895, 0
        %v960 = vmax.bf16 %v896, 0
        %v961 = vmax.bf16 %v897, 0
        %v962 = vmax.bf16 %v898, 0
        %v963 = vmax.bf16 %v899, 0
        %v964 = vmax.bf16 %v900, 0
        %v965 = vmax.bf16 %v901, 0
        %v966 = vmax.bf16 %v902, 0
        %v967 = vmax.bf16 %v903, 0
        %v968 = vld [vmem:[%s3] sm:$0xff]
        %v969 = vld [vmem:[%s3 + $0x8] sm:$0xff]
        %v970 = vld [vmem:[%s3 + $0x10] sm:$0xff]
        %v971 = vld [vmem:[%s3 + $0x18] sm:$0xff]
        %v972 = vld [vmem:[%s3 + $0x20] sm:$0xff]
        %v973 = vld [vmem:[%s3 + $0x28] sm:$0xff]
        %v974 = vld [vmem:[%s3 + $0x30] sm:$0xff]
        %v975 = vld [vmem:[%s3 + $0x38] sm:$0xff]
        %v976 = vld [vmem:[%s3 + $0x40] sm:$0xff]
        %v977 = vld [vmem:[%s3 + $0x48] sm:$0xff]
        %v978 = vld [vmem:[%s3 + $0x50] sm:$0xff]
        %v979 = vld [vmem:[%s3 + $0x58] sm:$0xff]
        %v980 = vld [vmem:[%s3 + $0x60] sm:$0xff]
        %v981 = vld [vmem:[%s3 + $0x68] sm:$0xff]
        %v982 = vld [vmem:[%s3 + $0x70] sm:$0xff]
        %v983 = vld [vmem:[%s3 + $0x78] sm:$0xff]
        %v984 = vld [vmem:[%s3 + $0x80] sm:$0xff]
        %v985 = vld [vmem:[%s3 + $0x88] sm:$0xff]
        %v986 = vld [vmem:[%s3 + $0x90] sm:$0xff]
        %v987 = vld [vmem:[%s3 + $0x98] sm:$0xff]
        %v988 = vld [vmem:[%s3 + $0xa0] sm:$0xff]
        %v989 = vld [vmem:[%s3 + $0xa8] sm:$0xff]
        %v990 = vld [vmem:[%s3 + $0xb0] sm:$0xff]
        %v991 = vld [vmem:[%s3 + $0xb8] sm:$0xff]
        %v992 = vld [vmem:[%s3 + $0xc0] sm:$0xff]
        %v993 = vld [vmem:[%s3 + $0xc8] sm:$0xff]
        %v994 = vld [vmem:[%s3 + $0xd0] sm:$0xff]
        %v995 = vld [vmem:[%s3 + $0xd8] sm:$0xff]
        %v996 = vld [vmem:[%s3 + $0xe0] sm:$0xff]
        %v997 = vld [vmem:[%s3 + $0xe8] sm:$0xff]
        %v998 = vld [vmem:[%s3 + $0xf0] sm:$0xff]
        %v999 = vld [vmem:[%s3 + $0xf8] sm:$0xff]
        %v1000 = vld [vmem:[%s4] sm:$0x3]
        %v1002 = vlaneseq
        %v1003 = vshrl.u32 %v1002, 7
        %v1004 = vsub.s32 0, %v1003
        %v1005 = vrot.slane %v1000, %v1004
        %v1006 = vlaneseq
        %v1007 = vshrl.u32 %v1006, 7
        %v1008 = vsub.s32 1, %v1007
        %v1009 = vrot.slane %v1000, %v1008
        %v1044 = vunpack.c.l.b16 %v968
        %v1045 = vunpack.c.h.b16 %v968
        %v1046 = vunpack.c.l.b16 %v969
        %v1047 = vunpack.c.h.b16 %v969
        %v1048 = vunpack.c.l.b16 %v970
        %v1049 = vunpack.c.h.b16 %v970
        %v1050 = vunpack.c.l.b16 %v971
        %v1051 = vunpack.c.h.b16 %v971
        %v1052 = vunpack.c.l.b16 %v972
        %v1053 = vunpack.c.h.b16 %v972
        %v1054 = vunpack.c.l.b16 %v973
        %v1055 = vunpack.c.h.b16 %v973
        %v1056 = vunpack.c.l.b16 %v974
        %v1057 = vunpack.c.h.b16 %v974
        %v1058 = vunpack.c.l.b16 %v975
        %v1059 = vunpack.c.h.b16 %v975
        %v1060 = vunpack.c.l.b16 %v976
        %v1061 = vunpack.c.h.b16 %v976
        %v1062 = vunpack.c.l.b16 %v977
        %v1063 = vunpack.c.h.b16 %v977
        %v1064 = vunpack.c.l.b16 %v978
        %v1065 = vunpack.c.h.b16 %v978
        %v1066 = vunpack.c.l.b16 %v979
        %v1067 = vunpack.c.h.b16 %v979
        %v1068 = vunpack.c.l.b16 %v980
        %v1069 = vunpack.c.h.b16 %v980
        %v1070 = vunpack.c.l.b16 %v981
        %v1071 = vunpack.c.h.b16 %v981
        %v1072 = vunpack.c.l.b16 %v982
        %v1073 = vunpack.c.h.b16 %v982
        %v1074 = vunpack.c.l.b16 %v983
        %v1075 = vunpack.c.h.b16 %v983
        %v1076 = vunpack.c.l.b16 %v984
        %v1077 = vunpack.c.h.b16 %v984
        %v1078 = vunpack.c.l.b16 %v985
        %v1079 = vunpack.c.h.b16 %v985
        %v1080 = vunpack.c.l.b16 %v986
        %v1081 = vunpack.c.h.b16 %v986
        %v1082 = vunpack.c.l.b16 %v987
        %v1083 = vunpack.c.h.b16 %v987
        %v1084 = vunpack.c.l.b16 %v988
        %v1085 = vunpack.c.h.b16 %v988
        %v1086 = vunpack.c.l.b16 %v989
        %v1087 = vunpack.c.h.b16 %v989
        %v1088 = vunpack.c.l.b16 %v990
        %v1089 = vunpack.c.h.b16 %v990
        %v1090 = vunpack.c.l.b16 %v991
        %v1091 = vunpack.c.h.b16 %v991
        %v1092 = vunpack.c.l.b16 %v992
        %v1093 = vunpack.c.h.b16 %v992
        %v1094 = vunpack.c.l.b16 %v993
        %v1095 = vunpack.c.h.b16 %v993
        %v1096 = vunpack.c.l.b16 %v994
        %v1097 = vunpack.c.h.b16 %v994
        %v1098 = vunpack.c.l.b16 %v995
        %v1099 = vunpack.c.h.b16 %v995
        %v1100 = vunpack.c.l.b16 %v996
        %v1101 = vunpack.c.h.b16 %v996
        %v1102 = vunpack.c.l.b16 %v997
        %v1103 = vunpack.c.h.b16 %v997
        %v1104 = vunpack.c.l.b16 %v998
        %v1105 = vunpack.c.h.b16 %v998
        %v1106 = vunpack.c.l.b16 %v999
        %v1107 = vunpack.c.h.b16 %v999
        %v1108 = vpack.c.b16 %v1046, %v1044
        %v1109 = vpack.c.b16 %v1047, %v1045
        %v1110 = vpack.c.b16 %v1050, %v1048
        %v1111 = vpack.c.b16 %v1051, %v1049
        %v1112 = vpack.c.b16 %v1054, %v1052
        %v1113 = vpack.c.b16 %v1055, %v1053
        %v1114 = vpack.c.b16 %v1058, %v1056
        %v1115 = vpack.c.b16 %v1059, %v1057
        %v1116 = vpack.c.b16 %v1062, %v1060
        %v1117 = vpack.c.b16 %v1063, %v1061
        %v1118 = vpack.c.b16 %v1066, %v1064
        %v1119 = vpack.c.b16 %v1067, %v1065
        %v1120 = vpack.c.b16 %v1070, %v1068
        %v1121 = vpack.c.b16 %v1071, %v1069
        %v1122 = vpack.c.b16 %v1074, %v1072
        %v1123 = vpack.c.b16 %v1075, %v1073
        %v1124 = vpack.c.b16 %v1078, %v1076
        %v1125 = vpack.c.b16 %v1079, %v1077
        %v1126 = vpack.c.b16 %v1082, %v1080
        %v1127 = vpack.c.b16 %v1083, %v1081
        %v1128 = vpack.c.b16 %v1086, %v1084
        %v1129 = vpack.c.b16 %v1087, %v1085
        %v1130 = vpack.c.b16 %v1090, %v1088
        %v1131 = vpack.c.b16 %v1091, %v1089
        %v1132 = vpack.c.b16 %v1094, %v1092
        %v1133 = vpack.c.b16 %v1095, %v1093
        %v1134 = vpack.c.b16 %v1098, %v1096
        %v1135 = vpack.c.b16 %v1099, %v1097
        %v1136 = vpack.c.b16 %v1102, %v1100
        %v1137 = vpack.c.b16 %v1103, %v1101
        %v1138 = vpack.c.b16 %v1106, %v1104
        %v1139 = vpack.c.b16 %v1107, %v1105
        %1172 = vmatprep.subr.bf16.mxu0 %v1109
        %1173 = vmatpush1.bf16.msra.mxu0 %v1108
        %1174 = vmatprep.subr.bf16.mxu0 %v1111
        %1175 = vmatpush1.bf16.msra.mxu0 %v1110
        %1176 = vmatprep.subr.bf16.mxu0 %v1113
        %1177 = vmatpush1.bf16.msra.mxu0 %v1112
        %1178 = vmatprep.subr.bf16.mxu0 %v1115
        %1179 = vmatpush1.bf16.msra.mxu0 %v1114
        %1180 = vmatprep.subr.bf16.mxu0 %v1117
        %1181 = vmatpush1.bf16.msra.mxu0 %v1116
        %1182 = vmatprep.subr.bf16.mxu0 %v1119
        %1183 = vmatpush1.bf16.msra.mxu0 %v1118
        %1184 = vmatprep.subr.bf16.mxu0 %v1121
        %1185 = vmatpush1.bf16.msra.mxu0 %v1120
        %1186 = vmatprep.subr.bf16.mxu0 %v1123
        %1187 = vmatpush1.bf16.msra.mxu0 %v1122
        %1188 = vmatprep.subr.bf16.mxu0 %v1125
        %1189 = vmatpush1.bf16.msra.mxu0 %v1124
        %1190 = vmatprep.subr.bf16.mxu0 %v1127
        %1191 = vmatpush1.bf16.msra.mxu0 %v1126
        %1192 = vmatprep.subr.bf16.mxu0 %v1129
        %1193 = vmatpush1.bf16.msra.mxu0 %v1128
        %1194 = vmatprep.subr.bf16.mxu0 %v1131
        %1195 = vmatpush1.bf16.msra.mxu0 %v1130
        %1196 = vmatprep.subr.bf16.mxu0 %v1133
        %1197 = vmatpush1.bf16.msra.mxu0 %v1132
        %1198 = vmatprep.subr.bf16.mxu0 %v1135
        %1199 = vmatpush1.bf16.msra.mxu0 %v1134
        %1200 = vmatprep.subr.bf16.mxu0 %v1137
        %1201 = vmatpush1.bf16.msra.mxu0 %v1136
        %1202 = vmatprep.subr.bf16.mxu0 %v1139
        %1203 = vmatpush1.bf16.msra.mxu0 %v1138
        %1204 = vmatprep.mubr.bf16.mxu0 %v905
        %1205 = vmatmul.mubr.bf16.gmra.mrb[0].mxu0 %v904
        %v1206 = vpop.f32.mrb[0].mxu0
        %v1207 = vadd.f32 %v1005, %v1206
        %v1208 = vpop.f32.mrb[0].mxu0
        %v1209 = vadd.f32 %v1009, %v1208
        %v1210 = vpop.f32.mrb[0].mxu0
        %v1211 = vadd.f32 %v1005, %v1210
        %v1212 = vpop.f32.mrb[0].mxu0
        %v1213 = vadd.f32 %v1009, %v1212
        %1214 = vmatprep.mubr.bf16.mxu0 %v907
        %1215 = vmatmul.mubr.bf16.gmra.mrb[0].mxu0 %v906
        %v1216 = vpop.f32.mrb[0].mxu0
        %v1217 = vadd.f32 %v1005, %v1216
        %v1218 = vpop.f32.mrb[0].mxu0
        %v1219 = vadd.f32 %v1009, %v1218
        %v1220 = vpop.f32.mrb[0].mxu0
        %v1221 = vadd.f32 %v1005, %v1220
        %v1222 = vpop.f32.mrb[0].mxu0
        %v1223 = vadd.f32 %v1009, %v1222
        %1224 = vmatprep.mubr.bf16.mxu0 %v909
        %1225 = vmatmul.mubr.bf16.gmra.mrb[0].mxu0 %v908
        %v1226 = vpop.f32.mrb[0].mxu0
        %v1227 = vadd.f32 %v1005, %v1226
        %v1228 = vpop.f32.mrb[0].mxu0
        %v1229 = vadd.f32 %v1009, %v1228
        %v1230 = vpop.f32.mrb[0].mxu0
        %v1231 = vadd.f32 %v1005, %v1230
        %v1232 = vpop.f32.mrb[0].mxu0
        %v1233 = vadd.f32 %v1009, %v1232
        %1234 = vmatprep.mubr.bf16.mxu0 %v911
        %1235 = vmatmul.mubr.bf16.gmra.mrb[0].mxu0 %v910
        %v1236 = vpop.f32.mrb[0].mxu0
        %v1237 = vadd.f32 %v1005, %v1236
        %v1238 = vpop.f32.mrb[0].mxu0
        %v1239 = vadd.f32 %v1009, %v1238
        %v1240 = vpop.f32.mrb[0].mxu0
        %v1241 = vadd.f32 %v1005, %v1240
        %v1242 = vpop.f32.mrb[0].mxu0
        %v1243 = vadd.f32 %v1009, %v1242
        %1244 = vmatprep.mubr.bf16.mxu0 %v913
        %1245 = vmatmul.mubr.bf16.gmra.mrb[0].mxu0 %v912
        %v1246 = vpop.f32.mrb[0].mxu0
        %v1247 = vadd.f32 %v1005, %v1246
        %v1248 = vpop.f32.mrb[0].mxu0
        %v1249 = vadd.f32 %v1009, %v1248
        %v1250 = vpop.f32.mrb[0].mxu0
        %v1251 = vadd.f32 %v1005, %v1250
        %v1252 = vpop.f32.mrb[0].mxu0
        %v1253 = vadd.f32 %v1009, %v1252
        %1254 = vmatprep.mubr.bf16.mxu0 %v915
        %1255 = vmatmul.mubr.bf16.gmra.mrb[0].mxu0 %v914
        %v1256 = vpop.f32.mrb[0].mxu0
        %v1257 = vadd.f32 %v1005, %v1256
        %v1258 = vpop.f32.mrb[0].mxu0
        %v1259 = vadd.f32 %v1009, %v1258
        %v1260 = vpop.f32.mrb[0].mxu0
        %v1261 = vadd.f32 %v1005, %v1260
        %v1262 = vpop.f32.mrb[0].mxu0
        %v1263 = vadd.f32 %v1009, %v1262
        %1264 = vmatprep.mubr.bf16.mxu0 %v917
        %1265 = vmatmul.mubr.bf16.gmra.mrb[0].mxu0 %v916
        %v1266 = vpop.f32.mrb[0].mxu0
        %v1267 = vadd.f32 %v1005, %v1266
        %v1268 = vpop.f32.mrb[0].mxu0
        %v1269 = vadd.f32 %v1009, %v1268
        %v1270 = vpop.f32.mrb[0].mxu0
        %v1271 = vadd.f32 %v1005, %v1270
        %v1272 = vpop.f32.mrb[0].mxu0
        %v1273 = vadd.f32 %v1009, %v1272
        %1274 = vmatprep.mubr.bf16.mxu0 %v919
        %1275 = vmatmul.mubr.bf16.gmra.mrb[0].mxu0 %v918
        %v1276 = vpop.f32.mrb[0].mxu0
        %v1277 = vadd.f32 %v1005, %v1276
        %v1278 = vpop.f32.mrb[0].mxu0
        %v1279 = vadd.f32 %v1009, %v1278
        %v1280 = vpop.f32.mrb[0].mxu0
        %v1281 = vadd.f32 %v1005, %v1280
        %v1282 = vpop.f32.mrb[0].mxu0
        %v1283 = vadd.f32 %v1009, %v1282
        %1284 = vmatprep.mubr.bf16.mxu0 %v921
        %1285 = vmatmul.mubr.bf16.gmra.mrb[0].mxu0 %v920
        %v1286 = vpop.f32.mrb[0].mxu0
        %v1287 = vadd.f32 %v1005, %v1286
        %v1288 = vpop.f32.mrb[0].mxu0
        %v1289 = vadd.f32 %v1009, %v1288
        %v1290 = vpop.f32.mrb[0].mxu0
        %v1291 = vadd.f32 %v1005, %v1290
        %v1292 = vpop.f32.mrb[0].mxu0
        %v1293 = vadd.f32 %v1009, %v1292
        %1294 = vmatprep.mubr.bf16.mxu0 %v923
        %1295 = vmatmul.mubr.bf16.gmra.mrb[0].mxu0 %v922
        %v1296 = vpop.f32.mrb[0].mxu0
        %v1297 = vadd.f32 %v1005, %v1296
        %v1298 = vpop.f32.mrb[0].mxu0
        %v1299 = vadd.f32 %v1009, %v1298
        %v1300 = vpop.f32.mrb[0].mxu0
        %v1301 = vadd.f32 %v1005, %v1300
        %v1302 = vpop.f32.mrb[0].mxu0
        %v1303 = vadd.f32 %v1009, %v1302
        %1304 = vmatprep.mubr.bf16.mxu0 %v925
        %1305 = vmatmul.mubr.bf16.gmra.mrb[0].mxu0 %v924
        %v1306 = vpop.f32.mrb[0].mxu0
        %v1307 = vadd.f32 %v1005, %v1306
        %v1308 = vpop.f32.mrb[0].mxu0
        %v1309 = vadd.f32 %v1009, %v1308
        %v1310 = vpop.f32.mrb[0].mxu0
        %v1311 = vadd.f32 %v1005, %v1310
        %v1312 = vpop.f32.mrb[0].mxu0
        %v1313 = vadd.f32 %v1009, %v1312
        %1314 = vmatprep.mubr.bf16.mxu0 %v927
        %1315 = vmatmul.mubr.bf16.gmra.mrb[0].mxu0 %v926
        %v1316 = vpop.f32.mrb[0].mxu0
        %v1317 = vadd.f32 %v1005, %v1316
        %v1318 = vpop.f32.mrb[0].mxu0
        %v1319 = vadd.f32 %v1009, %v1318
        %v1320 = vpop.f32.mrb[0].mxu0
        %v1321 = vadd.f32 %v1005, %v1320
        %v1322 = vpop.f32.mrb[0].mxu0
        %v1323 = vadd.f32 %v1009, %v1322
        %1324 = vmatprep.mubr.bf16.mxu0 %v929
        %1325 = vmatmul.mubr.bf16.gmra.mrb[0].mxu0 %v928
        %v1326 = vpop.f32.mrb[0].mxu0
        %v1327 = vadd.f32 %v1005, %v1326
        %v1328 = vpop.f32.mrb[0].mxu0
        %v1329 = vadd.f32 %v1009, %v1328
        %v1330 = vpop.f32.mrb[0].mxu0
        %v1331 = vadd.f32 %v1005, %v1330
        %v1332 = vpop.f32.mrb[0].mxu0
        %v1333 = vadd.f32 %v1009, %v1332
        %1334 = vmatprep.mubr.bf16.mxu0 %v931
        %1335 = vmatmul.mubr.bf16.gmra.mrb[0].mxu0 %v930
        %v1336 = vpop.f32.mrb[0].mxu0
        %v1337 = vadd.f32 %v1005, %v1336
        %v1338 = vpop.f32.mrb[0].mxu0
        %v1339 = vadd.f32 %v1009, %v1338
        %v1340 = vpop.f32.mrb[0].mxu0
        %v1341 = vadd.f32 %v1005, %v1340
        %v1342 = vpop.f32.mrb[0].mxu0
        %v1343 = vadd.f32 %v1009, %v1342
        %1344 = vmatprep.mubr.bf16.mxu0 %v933
        %1345 = vmatmul.mubr.bf16.gmra.mrb[0].mxu0 %v932
        %v1346 = vpop.f32.mrb[0].mxu0
        %v1347 = vadd.f32 %v1005, %v1346
        %v1348 = vpop.f32.mrb[0].mxu0
        %v1349 = vadd.f32 %v1009, %v1348
        %v1350 = vpop.f32.mrb[0].mxu0
        %v1351 = vadd.f32 %v1005, %v1350
        %v1352 = vpop.f32.mrb[0].mxu0
        %v1353 = vadd.f32 %v1009, %v1352
        %1354 = vmatprep.mubr.bf16.mxu0 %v935
        %1355 = vmatmul.mubr.bf16.gmra.mrb[0].mxu0 %v934
        %v1356 = vpop.f32.mrb[0].mxu0
        %v1357 = vadd.f32 %v1005, %v1356
        %v1358 = vpop.f32.mrb[0].mxu0
        %v1359 = vadd.f32 %v1009, %v1358
        %v1360 = vpop.f32.mrb[0].mxu0
        %v1361 = vadd.f32 %v1005, %v1360
        %v1362 = vpop.f32.mrb[0].mxu0
        %v1363 = vadd.f32 %v1009, %v1362
        %1364 = vmatprep.mubr.bf16.mxu0 %v937
        %1365 = vmatmul.mubr.bf16.gmra.mrb[0].mxu0 %v936
        %v1366 = vpop.f32.mrb[0].mxu0
        %v1367 = vadd.f32 %v1005, %v1366
        %v1368 = vpop.f32.mrb[0].mxu0
        %v1369 = vadd.f32 %v1009, %v1368
        %v1370 = vpop.f32.mrb[0].mxu0
        %v1371 = vadd.f32 %v1005, %v1370
        %v1372 = vpop.f32.mrb[0].mxu0
        %v1373 = vadd.f32 %v1009, %v1372
        %1374 = vmatprep.mubr.bf16.mxu0 %v939
        %1375 = vmatmul.mubr.bf16.gmra.mrb[0].mxu0 %v938
        %v1376 = vpop.f32.mrb[0].mxu0
        %v1377 = vadd.f32 %v1005, %v1376
        %v1378 = vpop.f32.mrb[0].mxu0
        %v1379 = vadd.f32 %v1009, %v1378
        %v1380 = vpop.f32.mrb[0].mxu0
        %v1381 = vadd.f32 %v1005, %v1380
        %v1382 = vpop.f32.mrb[0].mxu0
        %v1383 = vadd.f32 %v1009, %v1382
        %1384 = vmatprep.mubr.bf16.mxu0 %v941
        %1385 = vmatmul.mubr.bf16.gmra.mrb[0].mxu0 %v940
        %v1386 = vpop.f32.mrb[0].mxu0
        %v1387 = vadd.f32 %v1005, %v1386
        %v1388 = vpop.f32.mrb[0].mxu0
        %v1389 = vadd.f32 %v1009, %v1388
        %v1390 = vpop.f32.mrb[0].mxu0
        %v1391 = vadd.f32 %v1005, %v1390
        %v1392 = vpop.f32.mrb[0].mxu0
        %v1393 = vadd.f32 %v1009, %v1392
        %1394 = vmatprep.mubr.bf16.mxu0 %v943
        %1395 = vmatmul.mubr.bf16.gmra.mrb[0].mxu0 %v942
        %v1396 = vpop.f32.mrb[0].mxu0
        %v1397 = vadd.f32 %v1005, %v1396
        %v1398 = vpop.f32.mrb[0].mxu0
        %v1399 = vadd.f32 %v1009, %v1398
        %v1400 = vpop.f32.mrb[0].mxu0
        %v1401 = vadd.f32 %v1005, %v1400
        %v1402 = vpop.f32.mrb[0].mxu0
        %v1403 = vadd.f32 %v1009, %v1402
        %1404 = vmatprep.mubr.bf16.mxu0 %v945
        %1405 = vmatmul.mubr.bf16.gmra.mrb[0].mxu0 %v944
        %v1406 = vpop.f32.mrb[0].mxu0
        %v1407 = vadd.f32 %v1005, %v1406
        %v1408 = vpop.f32.mrb[0].mxu0
        %v1409 = vadd.f32 %v1009, %v1408
        %v1410 = vpop.f32.mrb[0].mxu0
        %v1411 = vadd.f32 %v1005, %v1410
        %v1412 = vpop.f32.mrb[0].mxu0
        %v1413 = vadd.f32 %v1009, %v1412
        %1414 = vmatprep.mubr.bf16.mxu0 %v947
        %1415 = vmatmul.mubr.bf16.gmra.mrb[0].mxu0 %v946
        %v1416 = vpop.f32.mrb[0].mxu0
        %v1417 = vadd.f32 %v1005, %v1416
        %v1418 = vpop.f32.mrb[0].mxu0
        %v1419 = vadd.f32 %v1009, %v1418
        %v1420 = vpop.f32.mrb[0].mxu0
        %v1421 = vadd.f32 %v1005, %v1420
        %v1422 = vpop.f32.mrb[0].mxu0
        %v1423 = vadd.f32 %v1009, %v1422
        %1424 = vmatprep.mubr.bf16.mxu0 %v949
        %1425 = vmatmul.mubr.bf16.gmra.mrb[0].mxu0 %v948
        %v1426 = vpop.f32.mrb[0].mxu0
        %v1427 = vadd.f32 %v1005, %v1426
        %v1428 = vpop.f32.mrb[0].mxu0
        %v1429 = vadd.f32 %v1009, %v1428
        %v1430 = vpop.f32.mrb[0].mxu0
        %v1431 = vadd.f32 %v1005, %v1430
        %v1432 = vpop.f32.mrb[0].mxu0
        %v1433 = vadd.f32 %v1009, %v1432
        %1434 = vmatprep.mubr.bf16.mxu0 %v951
        %1435 = vmatmul.mubr.bf16.gmra.mrb[0].mxu0 %v950
        %v1436 = vpop.f32.mrb[0].mxu0
        %v1437 = vadd.f32 %v1005, %v1436
        %v1438 = vpop.f32.mrb[0].mxu0
        %v1439 = vadd.f32 %v1009, %v1438
        %v1440 = vpop.f32.mrb[0].mxu0
        %v1441 = vadd.f32 %v1005, %v1440
        %v1442 = vpop.f32.mrb[0].mxu0
        %v1443 = vadd.f32 %v1009, %v1442
        %1444 = vmatprep.mubr.bf16.mxu0 %v953
        %1445 = vmatmul.mubr.bf16.gmra.mrb[0].mxu0 %v952
        %v1446 = vpop.f32.mrb[0].mxu0
        %v1447 = vadd.f32 %v1005, %v1446
        %v1448 = vpop.f32.mrb[0].mxu0
        %v1449 = vadd.f32 %v1009, %v1448
        %v1450 = vpop.f32.mrb[0].mxu0
        %v1451 = vadd.f32 %v1005, %v1450
        %v1452 = vpop.f32.mrb[0].mxu0
        %v1453 = vadd.f32 %v1009, %v1452
        %1454 = vmatprep.mubr.bf16.mxu0 %v955
        %1455 = vmatmul.mubr.bf16.gmra.mrb[0].mxu0 %v954
        %v1456 = vpop.f32.mrb[0].mxu0
        %v1457 = vadd.f32 %v1005, %v1456
        %v1458 = vpop.f32.mrb[0].mxu0
        %v1459 = vadd.f32 %v1009, %v1458
        %v1460 = vpop.f32.mrb[0].mxu0
        %v1461 = vadd.f32 %v1005, %v1460
        %v1462 = vpop.f32.mrb[0].mxu0
        %v1463 = vadd.f32 %v1009, %v1462
        %1464 = vmatprep.mubr.bf16.mxu0 %v957
        %1465 = vmatmul.mubr.bf16.gmra.mrb[0].mxu0 %v956
        %v1466 = vpop.f32.mrb[0].mxu0
        %v1467 = vadd.f32 %v1005, %v1466
        %v1468 = vpop.f32.mrb[0].mxu0
        %v1469 = vadd.f32 %v1009, %v1468
        %v1470 = vpop.f32.mrb[0].mxu0
        %v1471 = vadd.f32 %v1005, %v1470
        %v1472 = vpop.f32.mrb[0].mxu0
        %v1473 = vadd.f32 %v1009, %v1472
        %1474 = vmatprep.mubr.bf16.mxu0 %v959
        %1475 = vmatmul.mubr.bf16.gmra.mrb[0].mxu0 %v958
        %v1476 = vpop.f32.mrb[0].mxu0
        %v1477 = vadd.f32 %v1005, %v1476
        %v1478 = vpop.f32.mrb[0].mxu0
        %v1479 = vadd.f32 %v1009, %v1478
        %v1480 = vpop.f32.mrb[0].mxu0
        %v1481 = vadd.f32 %v1005, %v1480
        %v1482 = vpop.f32.mrb[0].mxu0
        %v1483 = vadd.f32 %v1009, %v1482
        %1484 = vmatprep.mubr.bf16.mxu0 %v961
        %1485 = vmatmul.mubr.bf16.gmra.mrb[0].mxu0 %v960
        %v1486 = vpop.f32.mrb[0].mxu0
        %v1487 = vadd.f32 %v1005, %v1486
        %v1488 = vpop.f32.mrb[0].mxu0
        %v1489 = vadd.f32 %v1009, %v1488
        %v1490 = vpop.f32.mrb[0].mxu0
        %v1491 = vadd.f32 %v1005, %v1490
        %v1492 = vpop.f32.mrb[0].mxu0
        %v1493 = vadd.f32 %v1009, %v1492
        %1494 = vmatprep.mubr.bf16.mxu0 %v963
        %1495 = vmatmul.mubr.bf16.gmra.mrb[0].mxu0 %v962
        %v1496 = vpop.f32.mrb[0].mxu0
        %v1497 = vadd.f32 %v1005, %v1496
        %v1498 = vpop.f32.mrb[0].mxu0
        %v1499 = vadd.f32 %v1009, %v1498
        %v1500 = vpop.f32.mrb[0].mxu0
        %v1501 = vadd.f32 %v1005, %v1500
        %v1502 = vpop.f32.mrb[0].mxu0
        %v1503 = vadd.f32 %v1009, %v1502
        %1504 = vmatprep.mubr.bf16.mxu0 %v965
        %1505 = vmatmul.mubr.bf16.gmra.mrb[0].mxu0 %v964
        %v1506 = vpop.f32.mrb[0].mxu0
        %v1507 = vadd.f32 %v1005, %v1506
        %v1508 = vpop.f32.mrb[0].mxu0
        %v1509 = vadd.f32 %v1009, %v1508
        %v1510 = vpop.f32.mrb[0].mxu0
        %v1511 = vadd.f32 %v1005, %v1510
        %v1512 = vpop.f32.mrb[0].mxu0
        %v1513 = vadd.f32 %v1009, %v1512
        %1514 = vmatprep.mubr.bf16.mxu0 %v967
        %1515 = vmatmul.mubr.bf16.gmra.mrb[0].mxu0 %v966
        %v1516 = vpop.f32.mrb[0].mxu0
        %v1517 = vadd.f32 %v1005, %v1516
        %v1518 = vpop.f32.mrb[0].mxu0
        %v1519 = vadd.f32 %v1009, %v1518
        %v1520 = vpop.f32.mrb[0].mxu0
        %v1521 = vadd.f32 %v1005, %v1520
        %v1522 = vpop.f32.mrb[0].mxu0
        %v1523 = vadd.f32 %v1009, %v1522
        %1524 = vdwg.mxu0
        %v1525 = vpack.c.bf16 %v1211, %v1207
        %v1526 = vpack.c.bf16 %v1213, %v1209
        %v1527 = vpack.c.bf16 %v1221, %v1217
        %v1528 = vpack.c.bf16 %v1223, %v1219
        %v1529 = vpack.c.bf16 %v1231, %v1227
        %v1530 = vpack.c.bf16 %v1233, %v1229
        %v1531 = vpack.c.bf16 %v1241, %v1237
        %v1532 = vpack.c.bf16 %v1243, %v1239
        %v1533 = vpack.c.bf16 %v1251, %v1247
        %v1534 = vpack.c.bf16 %v1253, %v1249
        %v1535 = vpack.c.bf16 %v1261, %v1257
        %v1536 = vpack.c.bf16 %v1263, %v1259
        %v1537 = vpack.c.bf16 %v1271, %v1267
        %v1538 = vpack.c.bf16 %v1273, %v1269
        %v1539 = vpack.c.bf16 %v1281, %v1277
        %v1540 = vpack.c.bf16 %v1283, %v1279
        %v1541 = vpack.c.bf16 %v1291, %v1287
        %v1542 = vpack.c.bf16 %v1293, %v1289
        %v1543 = vpack.c.bf16 %v1301, %v1297
        %v1544 = vpack.c.bf16 %v1303, %v1299
        %v1545 = vpack.c.bf16 %v1311, %v1307
        %v1546 = vpack.c.bf16 %v1313, %v1309
        %v1547 = vpack.c.bf16 %v1321, %v1317
        %v1548 = vpack.c.bf16 %v1323, %v1319
        %v1549 = vpack.c.bf16 %v1331, %v1327
        %v1550 = vpack.c.bf16 %v1333, %v1329
        %v1551 = vpack.c.bf16 %v1341, %v1337
        %v1552 = vpack.c.bf16 %v1343, %v1339
        %v1553 = vpack.c.bf16 %v1351, %v1347
        %v1554 = vpack.c.bf16 %v1353, %v1349
        %v1555 = vpack.c.bf16 %v1361, %v1357
        %v1556 = vpack.c.bf16 %v1363, %v1359
        %v1557 = vpack.c.bf16 %v1371, %v1367
        %v1558 = vpack.c.bf16 %v1373, %v1369
        %v1559 = vpack.c.bf16 %v1381, %v1377
        %v1560 = vpack.c.bf16 %v1383, %v1379
        %v1561 = vpack.c.bf16 %v1391, %v1387
        %v1562 = vpack.c.bf16 %v1393, %v1389
        %v1563 = vpack.c.bf16 %v1401, %v1397
        %v1564 = vpack.c.bf16 %v1403, %v1399
        %v1565 = vpack.c.bf16 %v1411, %v1407
        %v1566 = vpack.c.bf16 %v1413, %v1409
        %v1567 = vpack.c.bf16 %v1421, %v1417
        %v1568 = vpack.c.bf16 %v1423, %v1419
        %v1569 = vpack.c.bf16 %v1431, %v1427
        %v1570 = vpack.c.bf16 %v1433, %v1429
        %v1571 = vpack.c.bf16 %v1441, %v1437
        %v1572 = vpack.c.bf16 %v1443, %v1439
        %v1573 = vpack.c.bf16 %v1451, %v1447
        %v1574 = vpack.c.bf16 %v1453, %v1449
        %v1575 = vpack.c.bf16 %v1461, %v1457
        %v1576 = vpack.c.bf16 %v1463, %v1459
        %v1577 = vpack.c.bf16 %v1471, %v1467
        %v1578 = vpack.c.bf16 %v1473, %v1469
        %v1579 = vpack.c.bf16 %v1481, %v1477
        %v1580 = vpack.c.bf16 %v1483, %v1479
        %v1581 = vpack.c.bf16 %v1491, %v1487
        %v1582 = vpack.c.bf16 %v1493, %v1489
        %v1583 = vpack.c.bf16 %v1501, %v1497
        %v1584 = vpack.c.bf16 %v1503, %v1499
        %v1585 = vpack.c.bf16 %v1511, %v1507
        %v1586 = vpack.c.bf16 %v1513, %v1509
        %v1587 = vpack.c.bf16 %v1521, %v1517
        %v1588 = vpack.c.bf16 %v1523, %v1519
        %v1589 = vmax.bf16 %v1525, 0
        %v1590 = vmax.bf16 %v1526, 0
        %v1591 = vmax.bf16 %v1527, 0
        %v1592 = vmax.bf16 %v1528, 0
        %v1593 = vmax.bf16 %v1529, 0
        %v1594 = vmax.bf16 %v1530, 0
        %v1595 = vmax.bf16 %v1531, 0
        %v1596 = vmax.bf16 %v1532, 0
        %v1597 = vmax.bf16 %v1533, 0
        %v1598 = vmax.bf16 %v1534, 0
        %v1599 = vmax.bf16 %v1535, 0
        %v1600 = vmax.bf16 %v1536, 0
        %v1601 = vmax.bf16 %v1537, 0
        %v1602 = vmax.bf16 %v1538, 0
        %v1603 = vmax.bf16 %v1539, 0
        %v1604 = vmax.bf16 %v1540, 0
        %v1605 = vmax.bf16 %v1541, 0
        %v1606 = vmax.bf16 %v1542, 0
        %v1607 = vmax.bf16 %v1543, 0
        %v1608 = vmax.bf16 %v1544, 0
        %v1609 = vmax.bf16 %v1545, 0
        %v1610 = vmax.bf16 %v1546, 0
        %v1611 = vmax.bf16 %v1547, 0
        %v1612 = vmax.bf16 %v1548, 0
        %v1613 = vmax.bf16 %v1549, 0
        %v1614 = vmax.bf16 %v1550, 0
        %v1615 = vmax.bf16 %v1551, 0
        %v1616 = vmax.bf16 %v1552, 0
        %v1617 = vmax.bf16 %v1553, 0
        %v1618 = vmax.bf16 %v1554, 0
        %v1619 = vmax.bf16 %v1555, 0
        %v1620 = vmax.bf16 %v1556, 0
        %v1621 = vmax.bf16 %v1557, 0
        %v1622 = vmax.bf16 %v1558, 0
        %v1623 = vmax.bf16 %v1559, 0
        %v1624 = vmax.bf16 %v1560, 0
        %v1625 = vmax.bf16 %v1561, 0
        %v1626 = vmax.bf16 %v1562, 0
        %v1627 = vmax.bf16 %v1563, 0
        %v1628 = vmax.bf16 %v1564, 0
        %v1629 = vmax.bf16 %v1565, 0
        %v1630 = vmax.bf16 %v1566, 0
        %v1631 = vmax.bf16 %v1567, 0
        %v1632 = vmax.bf16 %v1568, 0
        %v1633 = vmax.bf16 %v1569, 0
        %v1634 = vmax.bf16 %v1570, 0
        %v1635 = vmax.bf16 %v1571, 0
        %v1636 = vmax.bf16 %v1572, 0
        %v1637 = vmax.bf16 %v1573, 0
        %v1638 = vmax.bf16 %v1574, 0
        %v1639 = vmax.bf16 %v1575, 0
        %v1640 = vmax.bf16 %v1576, 0
        %v1641 = vmax.bf16 %v1577, 0
        %v1642 = vmax.bf16 %v1578, 0
        %v1643 = vmax.bf16 %v1579, 0
        %v1644 = vmax.bf16 %v1580, 0
        %v1645 = vmax.bf16 %v1581, 0
        %v1646 = vmax.bf16 %v1582, 0
        %v1647 = vmax.bf16 %v1583, 0
        %v1648 = vmax.bf16 %v1584, 0
        %v1649 = vmax.bf16 %v1585, 0
        %v1650 = vmax.bf16 %v1586, 0
        %v1651 = vmax.bf16 %v1587, 0
        %v1652 = vmax.bf16 %v1588, 0
        %v1653 = vld [vmem:[#allocation6] sm:$0xff]
        %v1654 = vld [vmem:[#allocation6 + $0x8] sm:$0xff]
        %v1655 = vld [vmem:[#allocation6 + $0x10] sm:$0xff]
        %v1656 = vld [vmem:[#allocation6 + $0x18] sm:$0xff]
        %v1657 = vld [vmem:[#allocation6 + $0x20] sm:$0xff]
        %v1658 = vld [vmem:[#allocation6 + $0x28] sm:$0xff]
        %v1659 = vld [vmem:[#allocation6 + $0x30] sm:$0xff]
        %v1660 = vld [vmem:[#allocation6 + $0x38] sm:$0xff]
        %v1661 = vld [vmem:[#allocation6 + $0x40] sm:$0xff]
        %v1662 = vld [vmem:[#allocation6 + $0x48] sm:$0xff]
        %v1663 = vld [vmem:[#allocation6 + $0x50] sm:$0xff]
        %v1664 = vld [vmem:[#allocation6 + $0x58] sm:$0xff]
        %v1665 = vld [vmem:[#allocation6 + $0x60] sm:$0xff]
        %v1666 = vld [vmem:[#allocation6 + $0x68] sm:$0xff]
        %v1667 = vld [vmem:[#allocation6 + $0x70] sm:$0xff]
        %v1668 = vld [vmem:[#allocation6 + $0x78] sm:$0xff]
        %v1669 = vld [vmem:[#allocation6 + $0x80] sm:$0xff]
        %v1670 = vld [vmem:[#allocation6 + $0x88] sm:$0xff]
        %v1671 = vld [vmem:[#allocation6 + $0x90] sm:$0xff]
        %v1672 = vld [vmem:[#allocation6 + $0x98] sm:$0xff]
        %v1673 = vld [vmem:[#allocation6 + $0xa0] sm:$0xff]
        %v1674 = vld [vmem:[#allocation6 + $0xa8] sm:$0xff]
        %v1675 = vld [vmem:[#allocation6 + $0xb0] sm:$0xff]
        %v1676 = vld [vmem:[#allocation6 + $0xb8] sm:$0xff]
        %v1677 = vld [vmem:[#allocation6 + $0xc0] sm:$0xff]
        %v1678 = vld [vmem:[#allocation6 + $0xc8] sm:$0xff]
        %v1679 = vld [vmem:[#allocation6 + $0xd0] sm:$0xff]
        %v1680 = vld [vmem:[#allocation6 + $0xd8] sm:$0xff]
        %v1681 = vld [vmem:[#allocation6 + $0xe0] sm:$0xff]
        %v1682 = vld [vmem:[#allocation6 + $0xe8] sm:$0xff]
        %v1683 = vld [vmem:[#allocation6 + $0xf0] sm:$0xff]
        %v1684 = vld [vmem:[#allocation6 + $0xf8] sm:$0xff]
        %v1685 = vld [vmem:[%s6] sm:$0x3]
        %v1687 = vlaneseq
        %v1688 = vshrl.u32 %v1687, 7
        %v1689 = vsub.s32 0, %v1688
        %v1690 = vrot.slane %v1685, %v1689
        %v1691 = vlaneseq
        %v1692 = vshrl.u32 %v1691, 7
        %v1693 = vsub.s32 1, %v1692
        %v1694 = vrot.slane %v1685, %v1693
        %v1729 = vunpack.c.l.b16 %v1653
        %v1730 = vunpack.c.h.b16 %v1653
        %v1731 = vunpack.c.l.b16 %v1654
        %v1732 = vunpack.c.h.b16 %v1654
        %v1733 = vunpack.c.l.b16 %v1655
        %v1734 = vunpack.c.h.b16 %v1655
        %v1735 = vunpack.c.l.b16 %v1656
        %v1736 = vunpack.c.h.b16 %v1656
        %v1737 = vunpack.c.l.b16 %v1657
        %v1738 = vunpack.c.h.b16 %v1657
        %v1739 = vunpack.c.l.b16 %v1658
        %v1740 = vunpack.c.h.b16 %v1658
        %v1741 = vunpack.c.l.b16 %v1659
        %v1742 = vunpack.c.h.b16 %v1659
        %v1743 = vunpack.c.l.b16 %v1660
        %v1744 = vunpack.c.h.b16 %v1660
        %v1745 = vunpack.c.l.b16 %v1661
        %v1746 = vunpack.c.h.b16 %v1661
        %v1747 = vunpack.c.l.b16 %v1662
        %v1748 = vunpack.c.h.b16 %v1662
        %v1749 = vunpack.c.l.b16 %v1663
        %v1750 = vunpack.c.h.b16 %v1663
        %v1751 = vunpack.c.l.b16 %v1664
        %v1752 = vunpack.c.h.b16 %v1664
        %v1753 = vunpack.c.l.b16 %v1665
        %v1754 = vunpack.c.h.b16 %v1665
        %v1755 = vunpack.c.l.b16 %v1666
        %v1756 = vunpack.c.h.b16 %v1666
        %v1757 = vunpack.c.l.b16 %v1667
        %v1758 = vunpack.c.h.b16 %v1667
        %v1759 = vunpack.c.l.b16 %v1668
        %v1760 = vunpack.c.h.b16 %v1668
        %v1761 = vunpack.c.l.b16 %v1669
        %v1762 = vunpack.c.h.b16 %v1669
        %v1763 = vunpack.c.l.b16 %v1670
        %v1764 = vunpack.c.h.b16 %v1670
        %v1765 = vunpack.c.l.b16 %v1671
        %v1766 = vunpack.c.h.b16 %v1671
        %v1767 = vunpack.c.l.b16 %v1672
        %v1768 = vunpack.c.h.b16 %v1672
        %v1769 = vunpack.c.l.b16 %v1673
        %v1770 = vunpack.c.h.b16 %v1673
        %v1771 = vunpack.c.l.b16 %v1674
        %v1772 = vunpack.c.h.b16 %v1674
        %v1773 = vunpack.c.l.b16 %v1675
        %v1774 = vunpack.c.h.b16 %v1675
        %v1775 = vunpack.c.l.b16 %v1676
        %v1776 = vunpack.c.h.b16 %v1676
        %v1777 = vunpack.c.l.b16 %v1677
        %v1778 = vunpack.c.h.b16 %v1677
        %v1779 = vunpack.c.l.b16 %v1678
        %v1780 = vunpack.c.h.b16 %v1678
        %v1781 = vunpack.c.l.b16 %v1679
        %v1782 = vunpack.c.h.b16 %v1679
        %v1783 = vunpack.c.l.b16 %v1680
        %v1784 = vunpack.c.h.b16 %v1680
        %v1785 = vunpack.c.l.b16 %v1681
        %v1786 = vunpack.c.h.b16 %v1681
        %v1787 = vunpack.c.l.b16 %v1682
        %v1788 = vunpack.c.h.b16 %v1682
        %v1789 = vunpack.c.l.b16 %v1683
        %v1790 = vunpack.c.h.b16 %v1683
        %v1791 = vunpack.c.l.b16 %v1684
        %v1792 = vunpack.c.h.b16 %v1684
        %v1793 = vpack.c.b16 %v1731, %v1729
        %v1794 = vpack.c.b16 %v1732, %v1730
        %v1795 = vpack.c.b16 %v1735, %v1733
        %v1796 = vpack.c.b16 %v1736, %v1734
        %v1797 = vpack.c.b16 %v1739, %v1737
        %v1798 = vpack.c.b16 %v1740, %v1738
        %v1799 = vpack.c.b16 %v1743, %v1741
        %v1800 = vpack.c.b16 %v1744, %v1742
        %v1801 = vpack.c.b16 %v1747, %v1745
        %v1802 = vpack.c.b16 %v1748, %v1746
        %v1803 = vpack.c.b16 %v1751, %v1749
        %v1804 = vpack.c.b16 %v1752, %v1750
        %v1805 = vpack.c.b16 %v1755, %v1753
        %v1806 = vpack.c.b16 %v1756, %v1754
        %v1807 = vpack.c.b16 %v1759, %v1757
        %v1808 = vpack.c.b16 %v1760, %v1758
        %v1809 = vpack.c.b16 %v1763, %v1761
        %v1810 = vpack.c.b16 %v1764, %v1762
        %v1811 = vpack.c.b16 %v1767, %v1765
        %v1812 = vpack.c.b16 %v1768, %v1766
        %v1813 = vpack.c.b16 %v1771, %v1769
        %v1814 = vpack.c.b16 %v1772, %v1770
        %v1815 = vpack.c.b16 %v1775, %v1773
        %v1816 = vpack.c.b16 %v1776, %v1774
        %v1817 = vpack.c.b16 %v1779, %v1777
        %v1818 = vpack.c.b16 %v1780, %v1778
        %v1819 = vpack.c.b16 %v1783, %v1781
        %v1820 = vpack.c.b16 %v1784, %v1782
        %v1821 = vpack.c.b16 %v1787, %v1785
        %v1822 = vpack.c.b16 %v1788, %v1786
        %v1823 = vpack.c.b16 %v1791, %v1789
        %v1824 = vpack.c.b16 %v1792, %v1790
        %1857 = vmatprep.subr.bf16.mxu0 %v1794
        %1858 = vmatpush1.bf16.msra.mxu0 %v1793
        %1859 = vmatprep.subr.bf16.mxu0 %v1796
        %1860 = vmatpush1.bf16.msra.mxu0 %v1795
        %1861 = vmatprep.subr.bf16.mxu0 %v1798
        %1862 = vmatpush1.bf16.msra.mxu0 %v1797
        %1863 = vmatprep.subr.bf16.mxu0 %v1800
        %1864 = vmatpush1.bf16.msra.mxu0 %v1799
        %1865 = vmatprep.subr.bf16.mxu0 %v1802
        %1866 = vmatpush1.bf16.msra.mxu0 %v1801
        %1867 = vmatprep.subr.bf16.mxu0 %v1804
        %1868 = vmatpush1.bf16.msra.mxu0 %v1803
        %1869 = vmatprep.subr.bf16.mxu0 %v1806
        %1870 = vmatpush1.bf16.msra.mxu0 %v1805
        %1871 = vmatprep.subr.bf16.mxu0 %v1808
        %1872 = vmatpush1.bf16.msra.mxu0 %v1807
        %1873 = vmatprep.subr.bf16.mxu0 %v1810
        %1874 = vmatpush1.bf16.msra.mxu0 %v1809
        %1875 = vmatprep.subr.bf16.mxu0 %v1812
        %1876 = vmatpush1.bf16.msra.mxu0 %v1811
        %1877 = vmatprep.subr.bf16.mxu0 %v1814
        %1878 = vmatpush1.bf16.msra.mxu0 %v1813
        %1879 = vmatprep.subr.bf16.mxu0 %v1816
        %1880 = vmatpush1.bf16.msra.mxu0 %v1815
        %1881 = vmatprep.subr.bf16.mxu0 %v1818
        %1882 = vmatpush1.bf16.msra.mxu0 %v1817
        %1883 = vmatprep.subr.bf16.mxu0 %v1820
        %1884 = vmatpush1.bf16.msra.mxu0 %v1819
        %1885 = vmatprep.subr.bf16.mxu0 %v1822
        %1886 = vmatpush1.bf16.msra.mxu0 %v1821
        %1887 = vmatprep.subr.bf16.mxu0 %v1824
        %1888 = vmatpush1.bf16.msra.mxu0 %v1823
        %1889 = vmatprep.mubr.bf16.mxu0 %v1590
        %1890 = vmatmul.mubr.bf16.gmra.mrb[0].mxu0 %v1589
        %v1891 = vpop.f32.mrb[0].mxu0
        %v1892 = vadd.f32 %v1690, %v1891
        %v1893 = vpop.f32.mrb[0].mxu0
        %v1894 = vadd.f32 %v1694, %v1893
        %v1895 = vpop.f32.mrb[0].mxu0
        %v1896 = vadd.f32 %v1690, %v1895
        %v1897 = vpop.f32.mrb[0].mxu0
        %v1898 = vadd.f32 %v1694, %v1897
        %1899 = vmatprep.mubr.bf16.mxu0 %v1592
        %1900 = vmatmul.mubr.bf16.gmra.mrb[0].mxu0 %v1591
        %v1901 = vpop.f32.mrb[0].mxu0
        %v1902 = vadd.f32 %v1690, %v1901
        %v1903 = vpop.f32.mrb[0].mxu0
        %v1904 = vadd.f32 %v1694, %v1903
        %v1905 = vpop.f32.mrb[0].mxu0
        %v1906 = vadd.f32 %v1690, %v1905
        %v1907 = vpop.f32.mrb[0].mxu0
        %v1908 = vadd.f32 %v1694, %v1907
        %1909 = vmatprep.mubr.bf16.mxu0 %v1594
        %1910 = vmatmul.mubr.bf16.gmra.mrb[0].mxu0 %v1593
        %v1911 = vpop.f32.mrb[0].mxu0
        %v1912 = vadd.f32 %v1690, %v1911
        %v1913 = vpop.f32.mrb[0].mxu0
        %v1914 = vadd.f32 %v1694, %v1913
        %v1915 = vpop.f32.mrb[0].mxu0
        %v1916 = vadd.f32 %v1690, %v1915
        %v1917 = vpop.f32.mrb[0].mxu0
        %v1918 = vadd.f32 %v1694, %v1917
        %1919 = vmatprep.mubr.bf16.mxu0 %v1596
        %1920 = vmatmul.mubr.bf16.gmra.mrb[0].mxu0 %v1595
        %v1921 = vpop.f32.mrb[0].mxu0
        %v1922 = vadd.f32 %v1690, %v1921
        %v1923 = vpop.f32.mrb[0].mxu0
        %v1924 = vadd.f32 %v1694, %v1923
        %v1925 = vpop.f32.mrb[0].mxu0
        %v1926 = vadd.f32 %v1690, %v1925
        %v1927 = vpop.f32.mrb[0].mxu0
        %v1928 = vadd.f32 %v1694, %v1927
        %1929 = vmatprep.mubr.bf16.mxu0 %v1598
        %1930 = vmatmul.mubr.bf16.gmra.mrb[0].mxu0 %v1597
        %v1931 = vpop.f32.mrb[0].mxu0
        %v1932 = vadd.f32 %v1690, %v1931
        %v1933 = vpop.f32.mrb[0].mxu0
        %v1934 = vadd.f32 %v1694, %v1933
        %v1935 = vpop.f32.mrb[0].mxu0
        %v1936 = vadd.f32 %v1690, %v1935
        %v1937 = vpop.f32.mrb[0].mxu0
        %v1938 = vadd.f32 %v1694, %v1937
        %1939 = vmatprep.mubr.bf16.mxu0 %v1600
        %1940 = vmatmul.mubr.bf16.gmra.mrb[0].mxu0 %v1599
        %v1941 = vpop.f32.mrb[0].mxu0
        %v1942 = vadd.f32 %v1690, %v1941
        %v1943 = vpop.f32.mrb[0].mxu0
        %v1944 = vadd.f32 %v1694, %v1943
        %v1945 = vpop.f32.mrb[0].mxu0
        %v1946 = vadd.f32 %v1690, %v1945
        %v1947 = vpop.f32.mrb[0].mxu0
        %v1948 = vadd.f32 %v1694, %v1947
        %1949 = vmatprep.mubr.bf16.mxu0 %v1602
        %1950 = vmatmul.mubr.bf16.gmra.mrb[0].mxu0 %v1601
        %v1951 = vpop.f32.mrb[0].mxu0
        %v1952 = vadd.f32 %v1690, %v1951
        %v1953 = vpop.f32.mrb[0].mxu0
        %v1954 = vadd.f32 %v1694, %v1953
        %v1955 = vpop.f32.mrb[0].mxu0
        %v1956 = vadd.f32 %v1690, %v1955
        %v1957 = vpop.f32.mrb[0].mxu0
        %v1958 = vadd.f32 %v1694, %v1957
        %1959 = vmatprep.mubr.bf16.mxu0 %v1604
        %1960 = vmatmul.mubr.bf16.gmra.mrb[0].mxu0 %v1603
        %v1961 = vpop.f32.mrb[0].mxu0
        %v1962 = vadd.f32 %v1690, %v1961
        %v1963 = vpop.f32.mrb[0].mxu0
        %v1964 = vadd.f32 %v1694, %v1963
        %v1965 = vpop.f32.mrb[0].mxu0
        %v1966 = vadd.f32 %v1690, %v1965
        %v1967 = vpop.f32.mrb[0].mxu0
        %v1968 = vadd.f32 %v1694, %v1967
        %1969 = vmatprep.mubr.bf16.mxu0 %v1606
        %1970 = vmatmul.mubr.bf16.gmra.mrb[0].mxu0 %v1605
        %v1971 = vpop.f32.mrb[0].mxu0
        %v1972 = vadd.f32 %v1690, %v1971
        %v1973 = vpop.f32.mrb[0].mxu0
        %v1974 = vadd.f32 %v1694, %v1973
        %v1975 = vpop.f32.mrb[0].mxu0
        %v1976 = vadd.f32 %v1690, %v1975
        %v1977 = vpop.f32.mrb[0].mxu0
        %v1978 = vadd.f32 %v1694, %v1977
        %1979 = vmatprep.mubr.bf16.mxu0 %v1608
        %1980 = vmatmul.mubr.bf16.gmra.mrb[0].mxu0 %v1607
        %v1981 = vpop.f32.mrb[0].mxu0
        %v1982 = vadd.f32 %v1690, %v1981
        %v1983 = vpop.f32.mrb[0].mxu0
        %v1984 = vadd.f32 %v1694, %v1983
        %v1985 = vpop.f32.mrb[0].mxu0
        %v1986 = vadd.f32 %v1690, %v1985
        %v1987 = vpop.f32.mrb[0].mxu0
        %v1988 = vadd.f32 %v1694, %v1987
        %1989 = vmatprep.mubr.bf16.mxu0 %v1610
        %1990 = vmatmul.mubr.bf16.gmra.mrb[0].mxu0 %v1609
        %v1991 = vpop.f32.mrb[0].mxu0
        %v1992 = vadd.f32 %v1690, %v1991
        %v1993 = vpop.f32.mrb[0].mxu0
        %v1994 = vadd.f32 %v1694, %v1993
        %v1995 = vpop.f32.mrb[0].mxu0
        %v1996 = vadd.f32 %v1690, %v1995
        %v1997 = vpop.f32.mrb[0].mxu0
        %v1998 = vadd.f32 %v1694, %v1997
        %1999 = vmatprep.mubr.bf16.mxu0 %v1612
        %2000 = vmatmul.mubr.bf16.gmra.mrb[0].mxu0 %v1611
        %v2001 = vpop.f32.mrb[0].mxu0
        %v2002 = vadd.f32 %v1690, %v2001
        %v2003 = vpop.f32.mrb[0].mxu0
        %v2004 = vadd.f32 %v1694, %v2003
        %v2005 = vpop.f32.mrb[0].mxu0
        %v2006 = vadd.f32 %v1690, %v2005
        %v2007 = vpop.f32.mrb[0].mxu0
        %v2008 = vadd.f32 %v1694, %v2007
        %2009 = vmatprep.mubr.bf16.mxu0 %v1614
        %2010 = vmatmul.mubr.bf16.gmra.mrb[0].mxu0 %v1613
        %v2011 = vpop.f32.mrb[0].mxu0
        %v2012 = vadd.f32 %v1690, %v2011
        %v2013 = vpop.f32.mrb[0].mxu0
        %v2014 = vadd.f32 %v1694, %v2013
        %v2015 = vpop.f32.mrb[0].mxu0
        %v2016 = vadd.f32 %v1690, %v2015
        %v2017 = vpop.f32.mrb[0].mxu0
        %v2018 = vadd.f32 %v1694, %v2017
        %2019 = vmatprep.mubr.bf16.mxu0 %v1616
        %2020 = vmatmul.mubr.bf16.gmra.mrb[0].mxu0 %v1615
        %v2021 = vpop.f32.mrb[0].mxu0
        %v2022 = vadd.f32 %v1690, %v2021
        %v2023 = vpop.f32.mrb[0].mxu0
        %v2024 = vadd.f32 %v1694, %v2023
        %v2025 = vpop.f32.mrb[0].mxu0
        %v2026 = vadd.f32 %v1690, %v2025
        %v2027 = vpop.f32.mrb[0].mxu0
        %v2028 = vadd.f32 %v1694, %v2027
        %2029 = vmatprep.mubr.bf16.mxu0 %v1618
        %2030 = vmatmul.mubr.bf16.gmra.mrb[0].mxu0 %v1617
        %v2031 = vpop.f32.mrb[0].mxu0
        %v2032 = vadd.f32 %v1690, %v2031
        %v2033 = vpop.f32.mrb[0].mxu0
        %v2034 = vadd.f32 %v1694, %v2033
        %v2035 = vpop.f32.mrb[0].mxu0
        %v2036 = vadd.f32 %v1690, %v2035
        %v2037 = vpop.f32.mrb[0].mxu0
        %v2038 = vadd.f32 %v1694, %v2037
        %2039 = vmatprep.mubr.bf16.mxu0 %v1620
        %2040 = vmatmul.mubr.bf16.gmra.mrb[0].mxu0 %v1619
        %v2041 = vpop.f32.mrb[0].mxu0
        %v2042 = vadd.f32 %v1690, %v2041
        %v2043 = vpop.f32.mrb[0].mxu0
        %v2044 = vadd.f32 %v1694, %v2043
        %v2045 = vpop.f32.mrb[0].mxu0
        %v2046 = vadd.f32 %v1690, %v2045
        %v2047 = vpop.f32.mrb[0].mxu0
        %v2048 = vadd.f32 %v1694, %v2047
        %2049 = vmatprep.mubr.bf16.mxu0 %v1622
        %2050 = vmatmul.mubr.bf16.gmra.mrb[0].mxu0 %v1621
        %v2051 = vpop.f32.mrb[0].mxu0
        %v2052 = vadd.f32 %v1690, %v2051
        %v2053 = vpop.f32.mrb[0].mxu0
        %v2054 = vadd.f32 %v1694, %v2053
        %v2055 = vpop.f32.mrb[0].mxu0
        %v2056 = vadd.f32 %v1690, %v2055
        %v2057 = vpop.f32.mrb[0].mxu0
        %v2058 = vadd.f32 %v1694, %v2057
        %2059 = vmatprep.mubr.bf16.mxu0 %v1624
        %2060 = vmatmul.mubr.bf16.gmra.mrb[0].mxu0 %v1623
        %v2061 = vpop.f32.mrb[0].mxu0
        %v2062 = vadd.f32 %v1690, %v2061
        %v2063 = vpop.f32.mrb[0].mxu0
        %v2064 = vadd.f32 %v1694, %v2063
        %v2065 = vpop.f32.mrb[0].mxu0
        %v2066 = vadd.f32 %v1690, %v2065
        %v2067 = vpop.f32.mrb[0].mxu0
        %v2068 = vadd.f32 %v1694, %v2067
        %2069 = vmatprep.mubr.bf16.mxu0 %v1626
        %2070 = vmatmul.mubr.bf16.gmra.mrb[0].mxu0 %v1625
        %v2071 = vpop.f32.mrb[0].mxu0
        %v2072 = vadd.f32 %v1690, %v2071
        %v2073 = vpop.f32.mrb[0].mxu0
        %v2074 = vadd.f32 %v1694, %v2073
        %v2075 = vpop.f32.mrb[0].mxu0
        %v2076 = vadd.f32 %v1690, %v2075
        %v2077 = vpop.f32.mrb[0].mxu0
        %v2078 = vadd.f32 %v1694, %v2077
        %2079 = vmatprep.mubr.bf16.mxu0 %v1628
        %2080 = vmatmul.mubr.bf16.gmra.mrb[0].mxu0 %v1627
        %v2081 = vpop.f32.mrb[0].mxu0
        %v2082 = vadd.f32 %v1690, %v2081
        %v2083 = vpop.f32.mrb[0].mxu0
        %v2084 = vadd.f32 %v1694, %v2083
        %v2085 = vpop.f32.mrb[0].mxu0
        %v2086 = vadd.f32 %v1690, %v2085
        %v2087 = vpop.f32.mrb[0].mxu0
        %v2088 = vadd.f32 %v1694, %v2087
        %2089 = vmatprep.mubr.bf16.mxu0 %v1630
        %2090 = vmatmul.mubr.bf16.gmra.mrb[0].mxu0 %v1629
        %v2091 = vpop.f32.mrb[0].mxu0
        %v2092 = vadd.f32 %v1690, %v2091
        %v2093 = vpop.f32.mrb[0].mxu0
        %v2094 = vadd.f32 %v1694, %v2093
        %v2095 = vpop.f32.mrb[0].mxu0
        %v2096 = vadd.f32 %v1690, %v2095
        %v2097 = vpop.f32.mrb[0].mxu0
        %v2098 = vadd.f32 %v1694, %v2097
        %2099 = vmatprep.mubr.bf16.mxu0 %v1632
        %2100 = vmatmul.mubr.bf16.gmra.mrb[0].mxu0 %v1631
        %v2101 = vpop.f32.mrb[0].mxu0
        %v2102 = vadd.f32 %v1690, %v2101
        %v2103 = vpop.f32.mrb[0].mxu0
        %v2104 = vadd.f32 %v1694, %v2103
        %v2105 = vpop.f32.mrb[0].mxu0
        %v2106 = vadd.f32 %v1690, %v2105
        %v2107 = vpop.f32.mrb[0].mxu0
        %v2108 = vadd.f32 %v1694, %v2107
        %2109 = vmatprep.mubr.bf16.mxu0 %v1634
        %2110 = vmatmul.mubr.bf16.gmra.mrb[0].mxu0 %v1633
        %v2111 = vpop.f32.mrb[0].mxu0
        %v2112 = vadd.f32 %v1690, %v2111
        %v2113 = vpop.f32.mrb[0].mxu0
        %v2114 = vadd.f32 %v1694, %v2113
        %v2115 = vpop.f32.mrb[0].mxu0
        %v2116 = vadd.f32 %v1690, %v2115
        %v2117 = vpop.f32.mrb[0].mxu0
        %v2118 = vadd.f32 %v1694, %v2117
        %2119 = vmatprep.mubr.bf16.mxu0 %v1636
        %2120 = vmatmul.mubr.bf16.gmra.mrb[0].mxu0 %v1635
        %v2121 = vpop.f32.mrb[0].mxu0
        %v2122 = vadd.f32 %v1690, %v2121
        %v2123 = vpop.f32.mrb[0].mxu0
        %v2124 = vadd.f32 %v1694, %v2123
        %v2125 = vpop.f32.mrb[0].mxu0
        %v2126 = vadd.f32 %v1690, %v2125
        %v2127 = vpop.f32.mrb[0].mxu0
        %v2128 = vadd.f32 %v1694, %v2127
        %2129 = vmatprep.mubr.bf16.mxu0 %v1638
        %2130 = vmatmul.mubr.bf16.gmra.mrb[0].mxu0 %v1637
        %v2131 = vpop.f32.mrb[0].mxu0
        %v2132 = vadd.f32 %v1690, %v2131
        %v2133 = vpop.f32.mrb[0].mxu0
        %v2134 = vadd.f32 %v1694, %v2133
        %v2135 = vpop.f32.mrb[0].mxu0
        %v2136 = vadd.f32 %v1690, %v2135
        %v2137 = vpop.f32.mrb[0].mxu0
        %v2138 = vadd.f32 %v1694, %v2137
        %2139 = vmatprep.mubr.bf16.mxu0 %v1640
        %2140 = vmatmul.mubr.bf16.gmra.mrb[0].mxu0 %v1639
        %v2141 = vpop.f32.mrb[0].mxu0
        %v2142 = vadd.f32 %v1690, %v2141
        %v2143 = vpop.f32.mrb[0].mxu0
        %v2144 = vadd.f32 %v1694, %v2143
        %v2145 = vpop.f32.mrb[0].mxu0
        %v2146 = vadd.f32 %v1690, %v2145
        %v2147 = vpop.f32.mrb[0].mxu0
        %v2148 = vadd.f32 %v1694, %v2147
        %2149 = vmatprep.mubr.bf16.mxu0 %v1642
        %2150 = vmatmul.mubr.bf16.gmra.mrb[0].mxu0 %v1641
        %v2151 = vpop.f32.mrb[0].mxu0
        %v2152 = vadd.f32 %v1690, %v2151
        %v2153 = vpop.f32.mrb[0].mxu0
        %v2154 = vadd.f32 %v1694, %v2153
        %v2155 = vpop.f32.mrb[0].mxu0
        %v2156 = vadd.f32 %v1690, %v2155
        %v2157 = vpop.f32.mrb[0].mxu0
        %v2158 = vadd.f32 %v1694, %v2157
        %2159 = vmatprep.mubr.bf16.mxu0 %v1644
        %2160 = vmatmul.mubr.bf16.gmra.mrb[0].mxu0 %v1643
        %v2161 = vpop.f32.mrb[0].mxu0
        %v2162 = vadd.f32 %v1690, %v2161
        %v2163 = vpop.f32.mrb[0].mxu0
        %v2164 = vadd.f32 %v1694, %v2163
        %v2165 = vpop.f32.mrb[0].mxu0
        %v2166 = vadd.f32 %v1690, %v2165
        %v2167 = vpop.f32.mrb[0].mxu0
        %v2168 = vadd.f32 %v1694, %v2167
        %2169 = vmatprep.mubr.bf16.mxu0 %v1646
        %2170 = vmatmul.mubr.bf16.gmra.mrb[0].mxu0 %v1645
        %v2171 = vpop.f32.mrb[0].mxu0
        %v2172 = vadd.f32 %v1690, %v2171
        %v2173 = vpop.f32.mrb[0].mxu0
        %v2174 = vadd.f32 %v1694, %v2173
        %v2175 = vpop.f32.mrb[0].mxu0
        %v2176 = vadd.f32 %v1690, %v2175
        %v2177 = vpop.f32.mrb[0].mxu0
        %v2178 = vadd.f32 %v1694, %v2177
        %2179 = vmatprep.mubr.bf16.mxu0 %v1648
        %2180 = vmatmul.mubr.bf16.gmra.mrb[0].mxu0 %v1647
        %v2181 = vpop.f32.mrb[0].mxu0
        %v2182 = vadd.f32 %v1690, %v2181
        %v2183 = vpop.f32.mrb[0].mxu0
        %v2184 = vadd.f32 %v1694, %v2183
        %v2185 = vpop.f32.mrb[0].mxu0
        %v2186 = vadd.f32 %v1690, %v2185
        %v2187 = vpop.f32.mrb[0].mxu0
        %v2188 = vadd.f32 %v1694, %v2187
        %2189 = vmatprep.mubr.bf16.mxu0 %v1650
        %2190 = vmatmul.mubr.bf16.gmra.mrb[0].mxu0 %v1649
        %v2191 = vpop.f32.mrb[0].mxu0
        %v2192 = vadd.f32 %v1690, %v2191
        %v2193 = vpop.f32.mrb[0].mxu0
        %v2194 = vadd.f32 %v1694, %v2193
        %v2195 = vpop.f32.mrb[0].mxu0
        %v2196 = vadd.f32 %v1690, %v2195
        %v2197 = vpop.f32.mrb[0].mxu0
        %v2198 = vadd.f32 %v1694, %v2197
        %2199 = vmatprep.mubr.bf16.mxu0 %v1652
        %2200 = vmatmul.mubr.bf16.gmra.mrb[0].mxu0 %v1651
        %v2201 = vpop.f32.mrb[0].mxu0
        %v2202 = vadd.f32 %v1690, %v2201
        %v2203 = vpop.f32.mrb[0].mxu0
        %v2204 = vadd.f32 %v1694, %v2203
        %v2205 = vpop.f32.mrb[0].mxu0
        %v2206 = vadd.f32 %v1690, %v2205
        %v2207 = vpop.f32.mrb[0].mxu0
        %v2208 = vadd.f32 %v1694, %v2207
        %2209 = vdwg.mxu0
        %v2210 = vadd.f32 %v712, %v1892
        %v2211 = vadd.f32 %v713, %v1894
        %v2212 = vadd.f32 %v714, %v1896
        %v2213 = vadd.f32 %v715, %v1898
        %v2214 = vadd.f32 %v716, %v1902
        %v2215 = vadd.f32 %v717, %v1904
        %v2216 = vadd.f32 %v718, %v1906
        %v2217 = vadd.f32 %v719, %v1908
        %v2218 = vadd.f32 %v720, %v1912
        %v2219 = vadd.f32 %v721, %v1914
        %v2220 = vadd.f32 %v722, %v1916
        %v2221 = vadd.f32 %v723, %v1918
        %v2222 = vadd.f32 %v724, %v1922
        %v2223 = vadd.f32 %v725, %v1924
        %v2224 = vadd.f32 %v726, %v1926
        %v2225 = vadd.f32 %v727, %v1928
        %v2226 = vadd.f32 %v728, %v1932
        %v2227 = vadd.f32 %v729, %v1934
        %v2228 = vadd.f32 %v730, %v1936
        %v2229 = vadd.f32 %v731, %v1938
        %v2230 = vadd.f32 %v732, %v1942
        %v2231 = vadd.f32 %v733, %v1944
        %v2232 = vadd.f32 %v734, %v1946
        %v2233 = vadd.f32 %v735, %v1948
        %v2234 = vadd.f32 %v736, %v1952
        %v2235 = vadd.f32 %v737, %v1954
        %v2236 = vadd.f32 %v738, %v1956
        %v2237 = vadd.f32 %v739, %v1958
        %v2238 = vadd.f32 %v740, %v1962
        %v2239 = vadd.f32 %v741, %v1964
        %v2240 = vadd.f32 %v742, %v1966
        %v2241 = vadd.f32 %v743, %v1968
        %v2242 = vadd.f32 %v744, %v1972
        %v2243 = vadd.f32 %v745, %v1974
        %v2244 = vadd.f32 %v746, %v1976
        %v2245 = vadd.f32 %v747, %v1978
        %v2246 = vadd.f32 %v748, %v1982
        %v2247 = vadd.f32 %v749, %v1984
        %v2248 = vadd.f32 %v750, %v1986
        %v2249 = vadd.f32 %v751, %v1988
        %v2250 = vadd.f32 %v752, %v1992
        %v2251 = vadd.f32 %v753, %v1994
        %v2252 = vadd.f32 %v754, %v1996
        %v2253 = vadd.f32 %v755, %v1998
        %v2254 = vadd.f32 %v756, %v2002
        %v2255 = vadd.f32 %v757, %v2004
        %v2256 = vadd.f32 %v758, %v2006
        %v2257 = vadd.f32 %v759, %v2008
        %v2258 = vadd.f32 %v760, %v2012
        %v2259 = vadd.f32 %v761, %v2014
        %v2260 = vadd.f32 %v762, %v2016
        %v2261 = vadd.f32 %v763, %v2018
        %v2262 = vadd.f32 %v764, %v2022
        %v2263 = vadd.f32 %v765, %v2024
        %v2264 = vadd.f32 %v766, %v2026
        %v2265 = vadd.f32 %v767, %v2028
        %v2266 = vadd.f32 %v768, %v2032
        %v2267 = vadd.f32 %v769, %v2034
        %v2268 = vadd.f32 %v770, %v2036
        %v2269 = vadd.f32 %v771, %v2038
        %v2270 = vadd.f32 %v772, %v2042
        %v2271 = vadd.f32 %v773, %v2044
        %v2272 = vadd.f32 %v774, %v2046
        %v2273 = vadd.f32 %v775, %v2048
        %v2274 = vadd.f32 %v776, %v2052
        %v2275 = vadd.f32 %v777, %v2054
        %v2276 = vadd.f32 %v778, %v2056
        %v2277 = vadd.f32 %v779, %v2058
        %v2278 = vadd.f32 %v780, %v2062
        %v2279 = vadd.f32 %v781, %v2064
        %v2280 = vadd.f32 %v782, %v2066
        %v2281 = vadd.f32 %v783, %v2068
        %v2282 = vadd.f32 %v784, %v2072
        %v2283 = vadd.f32 %v785, %v2074
        %v2284 = vadd.f32 %v786, %v2076
        %v2285 = vadd.f32 %v787, %v2078
        %v2286 = vadd.f32 %v788, %v2082
        %v2287 = vadd.f32 %v789, %v2084
        %v2288 = vadd.f32 %v790, %v2086
        %v2289 = vadd.f32 %v791, %v2088
        %v2290 = vadd.f32 %v792, %v2092
        %v2291 = vadd.f32 %v793, %v2094
        %v2292 = vadd.f32 %v794, %v2096
        %v2293 = vadd.f32 %v795, %v2098
        %v2294 = vadd.f32 %v796, %v2102
        %v2295 = vadd.f32 %v797, %v2104
        %v2296 = vadd.f32 %v798, %v2106
        %v2297 = vadd.f32 %v799, %v2108
        %v2298 = vadd.f32 %v800, %v2112
        %v2299 = vadd.f32 %v801, %v2114
        %v2300 = vadd.f32 %v802, %v2116
        %v2301 = vadd.f32 %v803, %v2118
        %v2302 = vadd.f32 %v804, %v2122
        %v2303 = vadd.f32 %v805, %v2124
        %v2304 = vadd.f32 %v806, %v2126
        %v2305 = vadd.f32 %v807, %v2128
        %v2306 = vadd.f32 %v808, %v2132
        %v2307 = vadd.f32 %v809, %v2134
        %v2308 = vadd.f32 %v810, %v2136
        %v2309 = vadd.f32 %v811, %v2138
        %v2310 = vadd.f32 %v812, %v2142
        %v2311 = vadd.f32 %v813, %v2144
        %v2312 = vadd.f32 %v814, %v2146
        %v2313 = vadd.f32 %v815, %v2148
        %v2314 = vadd.f32 %v816, %v2152
        %v2315 = vadd.f32 %v817, %v2154
        %v2316 = vadd.f32 %v818, %v2156
        %v2317 = vadd.f32 %v819, %v2158
        %v2318 = vadd.f32 %v820, %v2162
        %v2319 = vadd.f32 %v821, %v2164
        %v2320 = vadd.f32 %v822, %v2166
        %v2321 = vadd.f32 %v823, %v2168
        %v2322 = vadd.f32 %v824, %v2172
        %v2323 = vadd.f32 %v825, %v2174
        %v2324 = vadd.f32 %v826, %v2176
        %v2325 = vadd.f32 %v827, %v2178
        %v2326 = vadd.f32 %v828, %v2182
        %v2327 = vadd.f32 %v829, %v2184
        %v2328 = vadd.f32 %v830, %v2186
        %v2329 = vadd.f32 %v831, %v2188
        %v2330 = vadd.f32 %v832, %v2192
        %v2331 = vadd.f32 %v833, %v2194
        %v2332 = vadd.f32 %v834, %v2196
        %v2333 = vadd.f32 %v835, %v2198
        %v2334 = vadd.f32 %v836, %v2202
        %v2335 = vadd.f32 %v837, %v2204
        %v2336 = vadd.f32 %v838, %v2206
        %v2337 = vadd.f32 %v839, %v2208
        %v2338 = vmax.f32 %v2210, 0.0
        %v2339 = vmax.f32 %v2211, 0.0
        %v2340 = vmax.f32 %v2212, 0.0
        %v2341 = vmax.f32 %v2213, 0.0
        %v2342 = vmax.f32 %v2214, 0.0
        %v2343 = vmax.f32 %v2215, 0.0
        %v2344 = vmax.f32 %v2216, 0.0
        %v2345 = vmax.f32 %v2217, 0.0
        %v2346 = vmax.f32 %v2218, 0.0
        %v2347 = vmax.f32 %v2219, 0.0
        %v2348 = vmax.f32 %v2220, 0.0
        %v2349 = vmax.f32 %v2221, 0.0
        %v2350 = vmax.f32 %v2222, 0.0
        %v2351 = vmax.f32 %v2223, 0.0
        %v2352 = vmax.f32 %v2224, 0.0
        %v2353 = vmax.f32 %v2225, 0.0
        %v2354 = vmax.f32 %v2226, 0.0
        %v2355 = vmax.f32 %v2227, 0.0
        %v2356 = vmax.f32 %v2228, 0.0
        %v2357 = vmax.f32 %v2229, 0.0
        %v2358 = vmax.f32 %v2230, 0.0
        %v2359 = vmax.f32 %v2231, 0.0
        %v2360 = vmax.f32 %v2232, 0.0
        %v2361 = vmax.f32 %v2233, 0.0
        %v2362 = vmax.f32 %v2234, 0.0
        %v2363 = vmax.f32 %v2235, 0.0
        %v2364 = vmax.f32 %v2236, 0.0
        %v2365 = vmax.f32 %v2237, 0.0
        %v2366 = vmax.f32 %v2238, 0.0
        %v2367 = vmax.f32 %v2239, 0.0
        %v2368 = vmax.f32 %v2240, 0.0
        %v2369 = vmax.f32 %v2241, 0.0
        %v2370 = vmax.f32 %v2242, 0.0
        %v2371 = vmax.f32 %v2243, 0.0
        %v2372 = vmax.f32 %v2244, 0.0
        %v2373 = vmax.f32 %v2245, 0.0
        %v2374 = vmax.f32 %v2246, 0.0
        %v2375 = vmax.f32 %v2247, 0.0
        %v2376 = vmax.f32 %v2248, 0.0
        %v2377 = vmax.f32 %v2249, 0.0
        %v2378 = vmax.f32 %v2250, 0.0
        %v2379 = vmax.f32 %v2251, 0.0
        %v2380 = vmax.f32 %v2252, 0.0
        %v2381 = vmax.f32 %v2253, 0.0
        %v2382 = vmax.f32 %v2254, 0.0
        %v2383 = vmax.f32 %v2255, 0.0
        %v2384 = vmax.f32 %v2256, 0.0
        %v2385 = vmax.f32 %v2257, 0.0
        %v2386 = vmax.f32 %v2258, 0.0
        %v2387 = vmax.f32 %v2259, 0.0
        %v2388 = vmax.f32 %v2260, 0.0
        %v2389 = vmax.f32 %v2261, 0.0
        %v2390 = vmax.f32 %v2262, 0.0
        %v2391 = vmax.f32 %v2263, 0.0
        %v2392 = vmax.f32 %v2264, 0.0
        %v2393 = vmax.f32 %v2265, 0.0
        %v2394 = vmax.f32 %v2266, 0.0
        %v2395 = vmax.f32 %v2267, 0.0
        %v2396 = vmax.f32 %v2268, 0.0
        %v2397 = vmax.f32 %v2269, 0.0
        %v2398 = vmax.f32 %v2270, 0.0
        %v2399 = vmax.f32 %v2271, 0.0
        %v2400 = vmax.f32 %v2272, 0.0
        %v2401 = vmax.f32 %v2273, 0.0
        %v2402 = vmax.f32 %v2274, 0.0
        %v2403 = vmax.f32 %v2275, 0.0
        %v2404 = vmax.f32 %v2276, 0.0
        %v2405 = vmax.f32 %v2277, 0.0
        %v2406 = vmax.f32 %v2278, 0.0
        %v2407 = vmax.f32 %v2279, 0.0
        %v2408 = vmax.f32 %v2280, 0.0
        %v2409 = vmax.f32 %v2281, 0.0
        %v2410 = vmax.f32 %v2282, 0.0
        %v2411 = vmax.f32 %v2283, 0.0
        %v2412 = vmax.f32 %v2284, 0.0
        %v2413 = vmax.f32 %v2285, 0.0
        %v2414 = vmax.f32 %v2286, 0.0
        %v2415 = vmax.f32 %v2287, 0.0
        %v2416 = vmax.f32 %v2288, 0.0
        %v2417 = vmax.f32 %v2289, 0.0
        %v2418 = vmax.f32 %v2290, 0.0
        %v2419 = vmax.f32 %v2291, 0.0
        %v2420 = vmax.f32 %v2292, 0.0
        %v2421 = vmax.f32 %v2293, 0.0
        %v2422 = vmax.f32 %v2294, 0.0
        %v2423 = vmax.f32 %v2295, 0.0
        %v2424 = vmax.f32 %v2296, 0.0
        %v2425 = vmax.f32 %v2297, 0.0
        %v2426 = vmax.f32 %v2298, 0.0
        %v2427 = vmax.f32 %v2299, 0.0
        %v2428 = vmax.f32 %v2300, 0.0
        %v2429 = vmax.f32 %v2301, 0.0
        %v2430 = vmax.f32 %v2302, 0.0
        %v2431 = vmax.f32 %v2303, 0.0
        %v2432 = vmax.f32 %v2304, 0.0
        %v2433 = vmax.f32 %v2305, 0.0
        %v2434 = vmax.f32 %v2306, 0.0
        %v2435 = vmax.f32 %v2307, 0.0
        %v2436 = vmax.f32 %v2308, 0.0
        %v2437 = vmax.f32 %v2309, 0.0
        %v2438 = vmax.f32 %v2310, 0.0
        %v2439 = vmax.f32 %v2311, 0.0
        %v2440 = vmax.f32 %v2312, 0.0
        %v2441 = vmax.f32 %v2313, 0.0
        %v2442 = vmax.f32 %v2314, 0.0
        %v2443 = vmax.f32 %v2315, 0.0
        %v2444 = vmax.f32 %v2316, 0.0
        %v2445 = vmax.f32 %v2317, 0.0
        %v2446 = vmax.f32 %v2318, 0.0
        %v2447 = vmax.f32 %v2319, 0.0
        %v2448 = vmax.f32 %v2320, 0.0
        %v2449 = vmax.f32 %v2321, 0.0
        %v2450 = vmax.f32 %v2322, 0.0
        %v2451 = vmax.f32 %v2323, 0.0
        %v2452 = vmax.f32 %v2324, 0.0
        %v2453 = vmax.f32 %v2325, 0.0
        %v2454 = vmax.f32 %v2326, 0.0
        %v2455 = vmax.f32 %v2327, 0.0
        %v2456 = vmax.f32 %v2328, 0.0
        %v2457 = vmax.f32 %v2329, 0.0
        %v2458 = vmax.f32 %v2330, 0.0
        %v2459 = vmax.f32 %v2331, 0.0
        %v2460 = vmax.f32 %v2332, 0.0
        %v2461 = vmax.f32 %v2333, 0.0
        %v2462 = vmax.f32 %v2334, 0.0
        %v2463 = vmax.f32 %v2335, 0.0
        %v2464 = vmax.f32 %v2336, 0.0
        %v2465 = vmax.f32 %v2337, 0.0
        %v2466 = vld [vmem:[%s7] sm:$0x3]
        %v2468 = vlaneseq
        %v2469 = vshrl.u32 %v2468, 7
        %v2470 = vsub.s32 0, %v2469
        %v2471 = vrot.slane %v2466, %v2470
        %v2472 = vlaneseq
        %v2473 = vshrl.u32 %v2472, 7
        %v2474 = vsub.s32 1, %v2473
        %v2475 = vrot.slane %v2466, %v2474
        %v2478 = vmul.f32 %v2338, %v2471
        %v2479 = vmul.f32 %v2339, %v2475
        %v2480 = vmul.f32 %v2340, %v2471
        %v2481 = vmul.f32 %v2341, %v2475
        %v2482 = vmul.f32 %v2342, %v2471
        %v2483 = vmul.f32 %v2343, %v2475
        %v2484 = vmul.f32 %v2344, %v2471
        %v2485 = vmul.f32 %v2345, %v2475
        %v2486 = vmul.f32 %v2346, %v2471
        %v2487 = vmul.f32 %v2347, %v2475
        %v2488 = vmul.f32 %v2348, %v2471
        %v2489 = vmul.f32 %v2349, %v2475
        %v2490 = vmul.f32 %v2350, %v2471
        %v2491 = vmul.f32 %v2351, %v2475
        %v2492 = vmul.f32 %v2352, %v2471
        %v2493 = vmul.f32 %v2353, %v2475
        %v2494 = vmul.f32 %v2354, %v2471
        %v2495 = vmul.f32 %v2355, %v2475
        %v2496 = vmul.f32 %v2356, %v2471
        %v2497 = vmul.f32 %v2357, %v2475
        %v2498 = vmul.f32 %v2358, %v2471
        %v2499 = vmul.f32 %v2359, %v2475
        %v2500 = vmul.f32 %v2360, %v2471
        %v2501 = vmul.f32 %v2361, %v2475
        %v2502 = vmul.f32 %v2362, %v2471
        %v2503 = vmul.f32 %v2363, %v2475
        %v2504 = vmul.f32 %v2364, %v2471
        %v2505 = vmul.f32 %v2365, %v2475
        %v2506 = vmul.f32 %v2366, %v2471
        %v2507 = vmul.f32 %v2367, %v2475
        %v2508 = vmul.f32 %v2368, %v2471
        %v2509 = vmul.f32 %v2369, %v2475
        %v2510 = vmul.f32 %v2370, %v2471
        %v2511 = vmul.f32 %v2371, %v2475
        %v2512 = vmul.f32 %v2372, %v2471
        %v2513 = vmul.f32 %v2373, %v2475
        %v2514 = vmul.f32 %v2374, %v2471
        %v2515 = vmul.f32 %v2375, %v2475
        %v2516 = vmul.f32 %v2376, %v2471
        %v2517 = vmul.f32 %v2377, %v2475
        %v2518 = vmul.f32 %v2378, %v2471
        %v2519 = vmul.f32 %v2379, %v2475
        %v2520 = vmul.f32 %v2380, %v2471
        %v2521 = vmul.f32 %v2381, %v2475
        %v2522 = vmul.f32 %v2382, %v2471
        %v2523 = vmul.f32 %v2383, %v2475
        %v2524 = vmul.f32 %v2384, %v2471
        %v2525 = vmul.f32 %v2385, %v2475
        %v2526 = vmul.f32 %v2386, %v2471
        %v2527 = vmul.f32 %v2387, %v2475
        %v2528 = vmul.f32 %v2388, %v2471
        %v2529 = vmul.f32 %v2389, %v2475
        %v2530 = vmul.f32 %v2390, %v2471
        %v2531 = vmul.f32 %v2391, %v2475
        %v2532 = vmul.f32 %v2392, %v2471
        %v2533 = vmul.f32 %v2393, %v2475
        %v2534 = vmul.f32 %v2394, %v2471
        %v2535 = vmul.f32 %v2395, %v2475
        %v2536 = vmul.f32 %v2396, %v2471
        %v2537 = vmul.f32 %v2397, %v2475
        %v2538 = vmul.f32 %v2398, %v2471
        %v2539 = vmul.f32 %v2399, %v2475
        %v2540 = vmul.f32 %v2400, %v2471
        %v2541 = vmul.f32 %v2401, %v2475
        %v2542 = vmul.f32 %v2402, %v2471
        %v2543 = vmul.f32 %v2403, %v2475
        %v2544 = vmul.f32 %v2404, %v2471
        %v2545 = vmul.f32 %v2405, %v2475
        %v2546 = vmul.f32 %v2406, %v2471
        %v2547 = vmul.f32 %v2407, %v2475
        %v2548 = vmul.f32 %v2408, %v2471
        %v2549 = vmul.f32 %v2409, %v2475
        %v2550 = vmul.f32 %v2410, %v2471
        %v2551 = vmul.f32 %v2411, %v2475
        %v2552 = vmul.f32 %v2412, %v2471
        %v2553 = vmul.f32 %v2413, %v2475
        %v2554 = vmul.f32 %v2414, %v2471
        %v2555 = vmul.f32 %v2415, %v2475
        %v2556 = vmul.f32 %v2416, %v2471
        %v2557 = vmul.f32 %v2417, %v2475
        %v2558 = vmul.f32 %v2418, %v2471
        %v2559 = vmul.f32 %v2419, %v2475
        %v2560 = vmul.f32 %v2420, %v2471
        %v2561 = vmul.f32 %v2421, %v2475
        %v2562 = vmul.f32 %v2422, %v2471
        %v2563 = vmul.f32 %v2423, %v2475
        %v2564 = vmul.f32 %v2424, %v2471
        %v2565 = vmul.f32 %v2425, %v2475
        %v2566 = vmul.f32 %v2426, %v2471
        %v2567 = vmul.f32 %v2427, %v2475
        %v2568 = vmul.f32 %v2428, %v2471
        %v2569 = vmul.f32 %v2429, %v2475
        %v2570 = vmul.f32 %v2430, %v2471
        %v2571 = vmul.f32 %v2431, %v2475
        %v2572 = vmul.f32 %v2432, %v2471
        %v2573 = vmul.f32 %v2433, %v2475
        %v2574 = vmul.f32 %v2434, %v2471
        %v2575 = vmul.f32 %v2435, %v2475
        %v2576 = vmul.f32 %v2436, %v2471
        %v2577 = vmul.f32 %v2437, %v2475
        %v2578 = vmul.f32 %v2438, %v2471
        %v2579 = vmul.f32 %v2439, %v2475
        %v2580 = vmul.f32 %v2440, %v2471
        %v2581 = vmul.f32 %v2441, %v2475
        %v2582 = vmul.f32 %v2442, %v2471
        %v2583 = vmul.f32 %v2443, %v2475
        %v2584 = vmul.f32 %v2444, %v2471
        %v2585 = vmul.f32 %v2445, %v2475
        %v2586 = vmul.f32 %v2446, %v2471
        %v2587 = vmul.f32 %v2447, %v2475
        %v2588 = vmul.f32 %v2448, %v2471
        %v2589 = vmul.f32 %v2449, %v2475
        %v2590 = vmul.f32 %v2450, %v2471
        %v2591 = vmul.f32 %v2451, %v2475
        %v2592 = vmul.f32 %v2452, %v2471
        %v2593 = vmul.f32 %v2453, %v2475
        %v2594 = vmul.f32 %v2454, %v2471
        %v2595 = vmul.f32 %v2455, %v2475
        %v2596 = vmul.f32 %v2456, %v2471
        %v2597 = vmul.f32 %v2457, %v2475
        %v2598 = vmul.f32 %v2458, %v2471
        %v2599 = vmul.f32 %v2459, %v2475
        %v2600 = vmul.f32 %v2460, %v2471
        %v2601 = vmul.f32 %v2461, %v2475
        %v2602 = vmul.f32 %v2462, %v2471
        %v2603 = vmul.f32 %v2463, %v2475
        %v2604 = vmul.f32 %v2464, %v2471
        %v2605 = vmul.f32 %v2465, %v2475
        %v2606 = vadd.f32 %v2478, %v2479
        %2607 = vadd.xlane.f32.xlu0 %v2606
        %v2608 = vpop.xlane.xlu0 %2607
        %v2609 = vadd.f32 %v2480, %v2481
        %2610 = vadd.xlane.f32.xlu0 %v2609
        %v2611 = vpop.xlane.xlu0 %2610
        %v2612 = vadd.f32 %v2482, %v2483
        %2613 = vadd.xlane.f32.xlu0 %v2612
        %v2614 = vpop.xlane.xlu0 %2613
        %v2615 = vadd.f32 %v2484, %v2485
        %2616 = vadd.xlane.f32.xlu0 %v2615
        %v2617 = vpop.xlane.xlu0 %2616
        %v2618 = vadd.f32 %v2486, %v2487
        %2619 = vadd.xlane.f32.xlu0 %v2618
        %v2620 = vpop.xlane.xlu0 %2619
        %v2621 = vadd.f32 %v2488, %v2489
        %2622 = vadd.xlane.f32.xlu0 %v2621
        %v2623 = vpop.xlane.xlu0 %2622
        %v2624 = vadd.f32 %v2490, %v2491
        %2625 = vadd.xlane.f32.xlu0 %v2624
        %v2626 = vpop.xlane.xlu0 %2625
        %v2627 = vadd.f32 %v2492, %v2493
        %2628 = vadd.xlane.f32.xlu0 %v2627
        %v2629 = vpop.xlane.xlu0 %2628
        %v2630 = vadd.f32 %v2494, %v2495
        %2631 = vadd.xlane.f32.xlu0 %v2630
        %v2632 = vpop.xlane.xlu0 %2631
        %v2633 = vadd.f32 %v2496, %v2497
        %2634 = vadd.xlane.f32.xlu0 %v2633
        %v2635 = vpop.xlane.xlu0 %2634
        %v2636 = vadd.f32 %v2498, %v2499
        %2637 = vadd.xlane.f32.xlu0 %v2636
        %v2638 = vpop.xlane.xlu0 %2637
        %v2639 = vadd.f32 %v2500, %v2501
        %2640 = vadd.xlane.f32.xlu0 %v2639
        %v2641 = vpop.xlane.xlu0 %2640
        %v2642 = vadd.f32 %v2502, %v2503
        %2643 = vadd.xlane.f32.xlu0 %v2642
        %v2644 = vpop.xlane.xlu0 %2643
        %v2645 = vadd.f32 %v2504, %v2505
        %2646 = vadd.xlane.f32.xlu0 %v2645
        %v2647 = vpop.xlane.xlu0 %2646
        %v2648 = vadd.f32 %v2506, %v2507
        %2649 = vadd.xlane.f32.xlu0 %v2648
        %v2650 = vpop.xlane.xlu0 %2649
        %v2651 = vadd.f32 %v2508, %v2509
        %2652 = vadd.xlane.f32.xlu0 %v2651
        %v2653 = vpop.xlane.xlu0 %2652
        %v2654 = vadd.f32 %v2510, %v2511
        %2655 = vadd.xlane.f32.xlu0 %v2654
        %v2656 = vpop.xlane.xlu0 %2655
        %v2657 = vadd.f32 %v2512, %v2513
        %2658 = vadd.xlane.f32.xlu0 %v2657
        %v2659 = vpop.xlane.xlu0 %2658
        %v2660 = vadd.f32 %v2514, %v2515
        %2661 = vadd.xlane.f32.xlu0 %v2660
        %v2662 = vpop.xlane.xlu0 %2661
        %v2663 = vadd.f32 %v2516, %v2517
        %2664 = vadd.xlane.f32.xlu0 %v2663
        %v2665 = vpop.xlane.xlu0 %2664
        %v2666 = vadd.f32 %v2518, %v2519
        %2667 = vadd.xlane.f32.xlu0 %v2666
        %v2668 = vpop.xlane.xlu0 %2667
        %v2669 = vadd.f32 %v2520, %v2521
        %2670 = vadd.xlane.f32.xlu0 %v2669
        %v2671 = vpop.xlane.xlu0 %2670
        %v2672 = vadd.f32 %v2522, %v2523
        %2673 = vadd.xlane.f32.xlu0 %v2672
        %v2674 = vpop.xlane.xlu0 %2673
        %v2675 = vadd.f32 %v2524, %v2525
        %2676 = vadd.xlane.f32.xlu0 %v2675
        %v2677 = vpop.xlane.xlu0 %2676
        %v2678 = vadd.f32 %v2526, %v2527
        %2679 = vadd.xlane.f32.xlu0 %v2678
        %v2680 = vpop.xlane.xlu0 %2679
        %v2681 = vadd.f32 %v2528, %v2529
        %2682 = vadd.xlane.f32.xlu0 %v2681
        %v2683 = vpop.xlane.xlu0 %2682
        %v2684 = vadd.f32 %v2530, %v2531
        %2685 = vadd.xlane.f32.xlu0 %v2684
        %v2686 = vpop.xlane.xlu0 %2685
        %v2687 = vadd.f32 %v2532, %v2533
        %2688 = vadd.xlane.f32.xlu0 %v2687
        %v2689 = vpop.xlane.xlu0 %2688
        %v2690 = vadd.f32 %v2534, %v2535
        %2691 = vadd.xlane.f32.xlu0 %v2690
        %v2692 = vpop.xlane.xlu0 %2691
        %v2693 = vadd.f32 %v2536, %v2537
        %2694 = vadd.xlane.f32.xlu0 %v2693
        %v2695 = vpop.xlane.xlu0 %2694
        %v2696 = vadd.f32 %v2538, %v2539
        %2697 = vadd.xlane.f32.xlu0 %v2696
        %v2698 = vpop.xlane.xlu0 %2697
        %v2699 = vadd.f32 %v2540, %v2541
        %2700 = vadd.xlane.f32.xlu0 %v2699
        %v2701 = vpop.xlane.xlu0 %2700
        %v2702 = vadd.f32 %v2542, %v2543
        %2703 = vadd.xlane.f32.xlu0 %v2702
        %v2704 = vpop.xlane.xlu0 %2703
        %v2705 = vadd.f32 %v2544, %v2545
        %2706 = vadd.xlane.f32.xlu0 %v2705
        %v2707 = vpop.xlane.xlu0 %2706
        %v2708 = vadd.f32 %v2546, %v2547
        %2709 = vadd.xlane.f32.xlu0 %v2708
        %v2710 = vpop.xlane.xlu0 %2709
        %v2711 = vadd.f32 %v2548, %v2549
        %2712 = vadd.xlane.f32.xlu0 %v2711
        %v2713 = vpop.xlane.xlu0 %2712
        %v2714 = vadd.f32 %v2550, %v2551
        %2715 = vadd.xlane.f32.xlu0 %v2714
        %v2716 = vpop.xlane.xlu0 %2715
        %v2717 = vadd.f32 %v2552, %v2553
        %2718 = vadd.xlane.f32.xlu0 %v2717
        %v2719 = vpop.xlane.xlu0 %2718
        %v2720 = vadd.f32 %v2554, %v2555
        %2721 = vadd.xlane.f32.xlu0 %v2720
        %v2722 = vpop.xlane.xlu0 %2721
        %v2723 = vadd.f32 %v2556, %v2557
        %2724 = vadd.xlane.f32.xlu0 %v2723
        %v2725 = vpop.xlane.xlu0 %2724
        %v2726 = vadd.f32 %v2558, %v2559
        %2727 = vadd.xlane.f32.xlu0 %v2726
        %v2728 = vpop.xlane.xlu0 %2727
        %v2729 = vadd.f32 %v2560, %v2561
        %2730 = vadd.xlane.f32.xlu0 %v2729
        %v2731 = vpop.xlane.xlu0 %2730
        %v2732 = vadd.f32 %v2562, %v2563
        %2733 = vadd.xlane.f32.xlu0 %v2732
        %v2734 = vpop.xlane.xlu0 %2733
        %v2735 = vadd.f32 %v2564, %v2565
        %2736 = vadd.xlane.f32.xlu0 %v2735
        %v2737 = vpop.xlane.xlu0 %2736
        %v2738 = vadd.f32 %v2566, %v2567
        %2739 = vadd.xlane.f32.xlu0 %v2738
        %v2740 = vpop.xlane.xlu0 %2739
        %v2741 = vadd.f32 %v2568, %v2569
        %2742 = vadd.xlane.f32.xlu0 %v2741
        %v2743 = vpop.xlane.xlu0 %2742
        %v2744 = vadd.f32 %v2570, %v2571
        %2745 = vadd.xlane.f32.xlu0 %v2744
        %v2746 = vpop.xlane.xlu0 %2745
        %v2747 = vadd.f32 %v2572, %v2573
        %2748 = vadd.xlane.f32.xlu0 %v2747
        %v2749 = vpop.xlane.xlu0 %2748
        %v2750 = vadd.f32 %v2574, %v2575
        %2751 = vadd.xlane.f32.xlu0 %v2750
        %v2752 = vpop.xlane.xlu0 %2751
        %v2753 = vadd.f32 %v2576, %v2577
        %2754 = vadd.xlane.f32.xlu0 %v2753
        %v2755 = vpop.xlane.xlu0 %2754
        %v2756 = vadd.f32 %v2578, %v2579
        %2757 = vadd.xlane.f32.xlu0 %v2756
        %v2758 = vpop.xlane.xlu0 %2757
        %v2759 = vadd.f32 %v2580, %v2581
        %2760 = vadd.xlane.f32.xlu0 %v2759
        %v2761 = vpop.xlane.xlu0 %2760
        %v2762 = vadd.f32 %v2582, %v2583
        %2763 = vadd.xlane.f32.xlu0 %v2762
        %v2764 = vpop.xlane.xlu0 %2763
        %v2765 = vadd.f32 %v2584, %v2585
        %2766 = vadd.xlane.f32.xlu0 %v2765
        %v2767 = vpop.xlane.xlu0 %2766
        %v2768 = vadd.f32 %v2586, %v2587
        %2769 = vadd.xlane.f32.xlu0 %v2768
        %v2770 = vpop.xlane.xlu0 %2769
        %v2771 = vadd.f32 %v2588, %v2589
        %2772 = vadd.xlane.f32.xlu0 %v2771
        %v2773 = vpop.xlane.xlu0 %2772
        %v2774 = vadd.f32 %v2590, %v2591
        %2775 = vadd.xlane.f32.xlu0 %v2774
        %v2776 = vpop.xlane.xlu0 %2775
        %v2777 = vadd.f32 %v2592, %v2593
        %2778 = vadd.xlane.f32.xlu0 %v2777
        %v2779 = vpop.xlane.xlu0 %2778
        %v2780 = vadd.f32 %v2594, %v2595
        %2781 = vadd.xlane.f32.xlu0 %v2780
        %v2782 = vpop.xlane.xlu0 %2781
        %v2783 = vadd.f32 %v2596, %v2597
        %2784 = vadd.xlane.f32.xlu0 %v2783
        %v2785 = vpop.xlane.xlu0 %2784
        %v2786 = vadd.f32 %v2598, %v2599
        %2787 = vadd.xlane.f32.xlu0 %v2786
        %v2788 = vpop.xlane.xlu0 %2787
        %v2789 = vadd.f32 %v2600, %v2601
        %2790 = vadd.xlane.f32.xlu0 %v2789
        %v2791 = vpop.xlane.xlu0 %2790
        %v2792 = vadd.f32 %v2602, %v2603
        %2793 = vadd.xlane.f32.xlu0 %v2792
        %v2794 = vpop.xlane.xlu0 %2793
        %v2795 = vadd.f32 %v2604, %v2605
        %2796 = vadd.xlane.f32.xlu0 %v2795
        %v2797 = vpop.xlane.xlu0 %2796
        %v2798 = vld [vmem:[#allocation2] sm:$0x1]
        %v2800 = vlaneseq
        %v2801 = vshrl.u32 %v2800, 7
        %v2802 = vsub.s32 0, %v2801
        %v2803 = vrot.slane %v2798, %v2802
        %2804 = vset.pattern.permute.xlu0 0
        %2805 = vperm.xlu0 %2804, %v2803
        %v2806 = vpop.permute.xlu0 %2805
        %v2808 = vadd.f32 %v2608, %v2806
        %v2809 = vadd.f32 %v2611, %v2806
        %v2810 = vadd.f32 %v2614, %v2806
        %v2811 = vadd.f32 %v2617, %v2806
        %v2812 = vadd.f32 %v2620, %v2806
        %v2813 = vadd.f32 %v2623, %v2806
        %v2814 = vadd.f32 %v2626, %v2806
        %v2815 = vadd.f32 %v2629, %v2806
        %v2816 = vadd.f32 %v2632, %v2806
        %v2817 = vadd.f32 %v2635, %v2806
        %v2818 = vadd.f32 %v2638, %v2806
        %v2819 = vadd.f32 %v2641, %v2806
        %v2820 = vadd.f32 %v2644, %v2806
        %v2821 = vadd.f32 %v2647, %v2806
        %v2822 = vadd.f32 %v2650, %v2806
        %v2823 = vadd.f32 %v2653, %v2806
        %v2824 = vadd.f32 %v2656, %v2806
        %v2825 = vadd.f32 %v2659, %v2806
        %v2826 = vadd.f32 %v2662, %v2806
        %v2827 = vadd.f32 %v2665, %v2806
        %v2828 = vadd.f32 %v2668, %v2806
        %v2829 = vadd.f32 %v2671, %v2806
        %v2830 = vadd.f32 %v2674, %v2806
        %v2831 = vadd.f32 %v2677, %v2806
        %v2832 = vadd.f32 %v2680, %v2806
        %v2833 = vadd.f32 %v2683, %v2806
        %v2834 = vadd.f32 %v2686, %v2806
        %v2835 = vadd.f32 %v2689, %v2806
        %v2836 = vadd.f32 %v2692, %v2806
        %v2837 = vadd.f32 %v2695, %v2806
        %v2838 = vadd.f32 %v2698, %v2806
        %v2839 = vadd.f32 %v2701, %v2806
        %v2840 = vadd.f32 %v2704, %v2806
        %v2841 = vadd.f32 %v2707, %v2806
        %v2842 = vadd.f32 %v2710, %v2806
        %v2843 = vadd.f32 %v2713, %v2806
        %v2844 = vadd.f32 %v2716, %v2806
        %v2845 = vadd.f32 %v2719, %v2806
        %v2846 = vadd.f32 %v2722, %v2806
        %v2847 = vadd.f32 %v2725, %v2806
        %v2848 = vadd.f32 %v2728, %v2806
        %v2849 = vadd.f32 %v2731, %v2806
        %v2850 = vadd.f32 %v2734, %v2806
        %v2851 = vadd.f32 %v2737, %v2806
        %v2852 = vadd.f32 %v2740, %v2806
        %v2853 = vadd.f32 %v2743, %v2806
        %v2854 = vadd.f32 %v2746, %v2806
        %v2855 = vadd.f32 %v2749, %v2806
        %v2856 = vadd.f32 %v2752, %v2806
        %v2857 = vadd.f32 %v2755, %v2806
        %v2858 = vadd.f32 %v2758, %v2806
        %v2859 = vadd.f32 %v2761, %v2806
        %v2860 = vadd.f32 %v2764, %v2806
        %v2861 = vadd.f32 %v2767, %v2806
        %v2862 = vadd.f32 %v2770, %v2806
        %v2863 = vadd.f32 %v2773, %v2806
        %v2864 = vadd.f32 %v2776, %v2806
        %v2865 = vadd.f32 %v2779, %v2806
        %v2866 = vadd.f32 %v2782, %v2806
        %v2867 = vadd.f32 %v2785, %v2806
        %v2868 = vadd.f32 %v2788, %v2806
        %v2869 = vadd.f32 %v2791, %v2806
        %v2870 = vadd.f32 %v2794, %v2806
        %v2871 = vadd.f32 %v2797, %v2806
        %v2872 = vmul.f32 %v2808, 10.0
        %v2873 = vmul.f32 %v2809, 10.0
        %v2874 = vmul.f32 %v2810, 10.0
        %v2875 = vmul.f32 %v2811, 10.0
        %v2876 = vmul.f32 %v2812, 10.0
        %v2877 = vmul.f32 %v2813, 10.0
        %v2878 = vmul.f32 %v2814, 10.0
        %v2879 = vmul.f32 %v2815, 10.0
        %v2880 = vmul.f32 %v2816, 10.0
        %v2881 = vmul.f32 %v2817, 10.0
        %v2882 = vmul.f32 %v2818, 10.0
        %v2883 = vmul.f32 %v2819, 10.0
        %v2884 = vmul.f32 %v2820, 10.0
        %v2885 = vmul.f32 %v2821, 10.0
        %v2886 = vmul.f32 %v2822, 10.0
        %v2887 = vmul.f32 %v2823, 10.0
        %v2888 = vmul.f32 %v2824, 10.0
        %v2889 = vmul.f32 %v2825, 10.0
        %v2890 = vmul.f32 %v2826, 10.0
        %v2891 = vmul.f32 %v2827, 10.0
        %v2892 = vmul.f32 %v2828, 10.0
        %v2893 = vmul.f32 %v2829, 10.0
        %v2894 = vmul.f32 %v2830, 10.0
        %v2895 = vmul.f32 %v2831, 10.0
        %v2896 = vmul.f32 %v2832, 10.0
        %v2897 = vmul.f32 %v2833, 10.0
        %v2898 = vmul.f32 %v2834, 10.0
        %v2899 = vmul.f32 %v2835, 10.0
        %v2900 = vmul.f32 %v2836, 10.0
        %v2901 = vmul.f32 %v2837, 10.0
        %v2902 = vmul.f32 %v2838, 10.0
        %v2903 = vmul.f32 %v2839, 10.0
        %v2904 = vmul.f32 %v2840, 10.0
        %v2905 = vmul.f32 %v2841, 10.0
        %v2906 = vmul.f32 %v2842, 10.0
        %v2907 = vmul.f32 %v2843, 10.0
        %v2908 = vmul.f32 %v2844, 10.0
        %v2909 = vmul.f32 %v2845, 10.0
        %v2910 = vmul.f32 %v2846, 10.0
        %v2911 = vmul.f32 %v2847, 10.0
        %v2912 = vmul.f32 %v2848, 10.0
        %v2913 = vmul.f32 %v2849, 10.0
        %v2914 = vmul.f32 %v2850, 10.0
        %v2915 = vmul.f32 %v2851, 10.0
        %v2916 = vmul.f32 %v2852, 10.0
        %v2917 = vmul.f32 %v2853, 10.0
        %v2918 = vmul.f32 %v2854, 10.0
        %v2919 = vmul.f32 %v2855, 10.0
        %v2920 = vmul.f32 %v2856, 10.0
        %v2921 = vmul.f32 %v2857, 10.0
        %v2922 = vmul.f32 %v2858, 10.0
        %v2923 = vmul.f32 %v2859, 10.0
        %v2924 = vmul.f32 %v2860, 10.0
        %v2925 = vmul.f32 %v2861, 10.0
        %v2926 = vmul.f32 %v2862, 10.0
        %v2927 = vmul.f32 %v2863, 10.0
        %v2928 = vmul.f32 %v2864, 10.0
        %v2929 = vmul.f32 %v2865, 10.0
        %v2930 = vmul.f32 %v2866, 10.0
        %v2931 = vmul.f32 %v2867, 10.0
        %v2932 = vmul.f32 %v2868, 10.0
        %v2933 = vmul.f32 %v2869, 10.0
        %v2934 = vmul.f32 %v2870, 10.0
        %v2935 = vmul.f32 %v2871, 10.0
        %v2936 = vxor.u32 %v2872, 2147483648
        %v2937 = vxor.u32 %v2873, 2147483648
        %v2938 = vxor.u32 %v2874, 2147483648
        %v2939 = vxor.u32 %v2875, 2147483648
        %v2940 = vxor.u32 %v2876, 2147483648
        %v2941 = vxor.u32 %v2877, 2147483648
        %v2942 = vxor.u32 %v2878, 2147483648
        %v2943 = vxor.u32 %v2879, 2147483648
        %v2944 = vxor.u32 %v2880, 2147483648
        %v2945 = vxor.u32 %v2881, 2147483648
        %v2946 = vxor.u32 %v2882, 2147483648
        %v2947 = vxor.u32 %v2883, 2147483648
        %v2948 = vxor.u32 %v2884, 2147483648
        %v2949 = vxor.u32 %v2885, 2147483648
        %v2950 = vxor.u32 %v2886, 2147483648
        %v2951 = vxor.u32 %v2887, 2147483648
        %v2952 = vxor.u32 %v2888, 2147483648
        %v2953 = vxor.u32 %v2889, 2147483648
        %v2954 = vxor.u32 %v2890, 2147483648
        %v2955 = vxor.u32 %v2891, 2147483648
        %v2956 = vxor.u32 %v2892, 2147483648
        %v2957 = vxor.u32 %v2893, 2147483648
        %v2958 = vxor.u32 %v2894, 2147483648
        %v2959 = vxor.u32 %v2895, 2147483648
        %v2960 = vxor.u32 %v2896, 2147483648
        %v2961 = vxor.u32 %v2897, 2147483648
        %v2962 = vxor.u32 %v2898, 2147483648
        %v2963 = vxor.u32 %v2899, 2147483648
        %v2964 = vxor.u32 %v2900, 2147483648
        %v2965 = vxor.u32 %v2901, 2147483648
        %v2966 = vxor.u32 %v2902, 2147483648
        %v2967 = vxor.u32 %v2903, 2147483648
        %v2968 = vxor.u32 %v2904, 2147483648
        %v2969 = vxor.u32 %v2905, 2147483648
        %v2970 = vxor.u32 %v2906, 2147483648
        %v2971 = vxor.u32 %v2907, 2147483648
        %v2972 = vxor.u32 %v2908, 2147483648
        %v2973 = vxor.u32 %v2909, 2147483648
        %v2974 = vxor.u32 %v2910, 2147483648
        %v2975 = vxor.u32 %v2911, 2147483648
        %v2976 = vxor.u32 %v2912, 2147483648
        %v2977 = vxor.u32 %v2913, 2147483648
        %v2978 = vxor.u32 %v2914, 2147483648
        %v2979 = vxor.u32 %v2915, 2147483648
        %v2980 = vxor.u32 %v2916, 2147483648
        %v2981 = vxor.u32 %v2917, 2147483648
        %v2982 = vxor.u32 %v2918, 2147483648
        %v2983 = vxor.u32 %v2919, 2147483648
        %v2984 = vxor.u32 %v2920, 2147483648
        %v2985 = vxor.u32 %v2921, 2147483648
        %v2986 = vxor.u32 %v2922, 2147483648
        %v2987 = vxor.u32 %v2923, 2147483648
        %v2988 = vxor.u32 %v2924, 2147483648
        %v2989 = vxor.u32 %v2925, 2147483648
        %v2990 = vxor.u32 %v2926, 2147483648
        %v2991 = vxor.u32 %v2927, 2147483648
        %v2992 = vxor.u32 %v2928, 2147483648
        %v2993 = vxor.u32 %v2929, 2147483648
        %v2994 = vxor.u32 %v2930, 2147483648
        %v2995 = vxor.u32 %v2931, 2147483648
        %v2996 = vxor.u32 %v2932, 2147483648
        %v2997 = vxor.u32 %v2933, 2147483648
        %v2998 = vxor.u32 %v2934, 2147483648
        %v2999 = vxor.u32 %v2935, 2147483648
        %v3000 = vmul.f32 %v2936, 1.442695
        %v3001 = vpow.pop %v3000
        %v3002 = vmul.f32 %v2937, 1.442695
        %v3003 = vpow.pop %v3002
        %v3004 = vmul.f32 %v2938, 1.442695
        %v3005 = vpow.pop %v3004
        %v3006 = vmul.f32 %v2939, 1.442695
        %v3007 = vpow.pop %v3006
        %v3008 = vmul.f32 %v2940, 1.442695
        %v3009 = vpow.pop %v3008
        %v3010 = vmul.f32 %v2941, 1.442695
        %v3011 = vpow.pop %v3010
        %v3012 = vmul.f32 %v2942, 1.442695
        %v3013 = vpow.pop %v3012
        %v3014 = vmul.f32 %v2943, 1.442695
        %v3015 = vpow.pop %v3014
        %v3016 = vmul.f32 %v2944, 1.442695
        %v3017 = vpow.pop %v3016
        %v3018 = vmul.f32 %v2945, 1.442695
        %v3019 = vpow.pop %v3018
        %v3020 = vmul.f32 %v2946, 1.442695
        %v3021 = vpow.pop %v3020
        %v3022 = vmul.f32 %v2947, 1.442695
        %v3023 = vpow.pop %v3022
        %v3024 = vmul.f32 %v2948, 1.442695
        %v3025 = vpow.pop %v3024
        %v3026 = vmul.f32 %v2949, 1.442695
        %v3027 = vpow.pop %v3026
        %v3028 = vmul.f32 %v2950, 1.442695
        %v3029 = vpow.pop %v3028
        %v3030 = vmul.f32 %v2951, 1.442695
        %v3031 = vpow.pop %v3030
        %v3032 = vmul.f32 %v2952, 1.442695
        %v3033 = vpow.pop %v3032
        %v3034 = vmul.f32 %v2953, 1.442695
        %v3035 = vpow.pop %v3034
        %v3036 = vmul.f32 %v2954, 1.442695
        %v3037 = vpow.pop %v3036
        %v3038 = vmul.f32 %v2955, 1.442695
        %v3039 = vpow.pop %v3038
        %v3040 = vmul.f32 %v2956, 1.442695
        %v3041 = vpow.pop %v3040
        %v3042 = vmul.f32 %v2957, 1.442695
        %v3043 = vpow.pop %v3042
        %v3044 = vmul.f32 %v2958, 1.442695
        %v3045 = vpow.pop %v3044
        %v3046 = vmul.f32 %v2959, 1.442695
        %v3047 = vpow.pop %v3046
        %v3048 = vmul.f32 %v2960, 1.442695
        %v3049 = vpow.pop %v3048
        %v3050 = vmul.f32 %v2961, 1.442695
        %v3051 = vpow.pop %v3050
        %v3052 = vmul.f32 %v2962, 1.442695
        %v3053 = vpow.pop %v3052
        %v3054 = vmul.f32 %v2963, 1.442695
        %v3055 = vpow.pop %v3054
        %v3056 = vmul.f32 %v2964, 1.442695
        %v3057 = vpow.pop %v3056
        %v3058 = vmul.f32 %v2965, 1.442695
        %v3059 = vpow.pop %v3058
        %v3060 = vmul.f32 %v2966, 1.442695
        %v3061 = vpow.pop %v3060
        %v3062 = vmul.f32 %v2967, 1.442695
        %v3063 = vpow.pop %v3062
        %v3064 = vmul.f32 %v2968, 1.442695
        %v3065 = vpow.pop %v3064
        %v3066 = vmul.f32 %v2969, 1.442695
        %v3067 = vpow.pop %v3066
        %v3068 = vmul.f32 %v2970, 1.442695
        %v3069 = vpow.pop %v3068
        %v3070 = vmul.f32 %v2971, 1.442695
        %v3071 = vpow.pop %v3070
        %v3072 = vmul.f32 %v2972, 1.442695
        %v3073 = vpow.pop %v3072
        %v3074 = vmul.f32 %v2973, 1.442695
        %v3075 = vpow.pop %v3074
        %v3076 = vmul.f32 %v2974, 1.442695
        %v3077 = vpow.pop %v3076
        %v3078 = vmul.f32 %v2975, 1.442695
        %v3079 = vpow.pop %v3078
        %v3080 = vmul.f32 %v2976, 1.442695
        %v3081 = vpow.pop %v3080
        %v3082 = vmul.f32 %v2977, 1.442695
        %v3083 = vpow.pop %v3082
        %v3084 = vmul.f32 %v2978, 1.442695
        %v3085 = vpow.pop %v3084
        %v3086 = vmul.f32 %v2979, 1.442695
        %v3087 = vpow.pop %v3086
        %v3088 = vmul.f32 %v2980, 1.442695
        %v3089 = vpow.pop %v3088
        %v3090 = vmul.f32 %v2981, 1.442695
        %v3091 = vpow.pop %v3090
        %v3092 = vmul.f32 %v2982, 1.442695
        %v3093 = vpow.pop %v3092
        %v3094 = vmul.f32 %v2983, 1.442695
        %v3095 = vpow.pop %v3094
        %v3096 = vmul.f32 %v2984, 1.442695
        %v3097 = vpow.pop %v3096
        %v3098 = vmul.f32 %v2985, 1.442695
        %v3099 = vpow.pop %v3098
        %v3100 = vmul.f32 %v2986, 1.442695
        %v3101 = vpow.pop %v3100
        %v3102 = vmul.f32 %v2987, 1.442695
        %v3103 = vpow.pop %v3102
        %v3104 = vmul.f32 %v2988, 1.442695
        %v3105 = vpow.pop %v3104
        %v3106 = vmul.f32 %v2989, 1.442695
        %v3107 = vpow.pop %v3106
        %v3108 = vmul.f32 %v2990, 1.442695
        %v3109 = vpow.pop %v3108
        %v3110 = vmul.f32 %v2991, 1.442695
        %v3111 = vpow.pop %v3110
        %v3112 = vmul.f32 %v2992, 1.442695
        %v3113 = vpow.pop %v3112
        %v3114 = vmul.f32 %v2993, 1.442695
        %v3115 = vpow.pop %v3114
        %v3116 = vmul.f32 %v2994, 1.442695
        %v3117 = vpow.pop %v3116
        %v3118 = vmul.f32 %v2995, 1.442695
        %v3119 = vpow.pop %v3118
        %v3120 = vmul.f32 %v2996, 1.442695
        %v3121 = vpow.pop %v3120
        %v3122 = vmul.f32 %v2997, 1.442695
        %v3123 = vpow.pop %v3122
        %v3124 = vmul.f32 %v2998, 1.442695
        %v3125 = vpow.pop %v3124
        %v3126 = vmul.f32 %v2999, 1.442695
        %v3127 = vpow.pop %v3126
        %v3128 = vadd.f32 %v3001, 1.0
        %v3129 = vadd.f32 %v3003, 1.0
        %v3130 = vadd.f32 %v3005, 1.0
        %v3131 = vadd.f32 %v3007, 1.0
        %v3132 = vadd.f32 %v3009, 1.0
        %v3133 = vadd.f32 %v3011, 1.0
        %v3134 = vadd.f32 %v3013, 1.0
        %v3135 = vadd.f32 %v3015, 1.0
        %v3136 = vadd.f32 %v3017, 1.0
        %v3137 = vadd.f32 %v3019, 1.0
        %v3138 = vadd.f32 %v3021, 1.0
        %v3139 = vadd.f32 %v3023, 1.0
        %v3140 = vadd.f32 %v3025, 1.0
        %v3141 = vadd.f32 %v3027, 1.0
        %v3142 = vadd.f32 %v3029, 1.0
        %v3143 = vadd.f32 %v3031, 1.0
        %v3144 = vadd.f32 %v3033, 1.0
        %v3145 = vadd.f32 %v3035, 1.0
        %v3146 = vadd.f32 %v3037, 1.0
        %v3147 = vadd.f32 %v3039, 1.0
        %v3148 = vadd.f32 %v3041, 1.0
        %v3149 = vadd.f32 %v3043, 1.0
        %v3150 = vadd.f32 %v3045, 1.0
        %v3151 = vadd.f32 %v3047, 1.0
        %v3152 = vadd.f32 %v3049, 1.0
        %v3153 = vadd.f32 %v3051, 1.0
        %v3154 = vadd.f32 %v3053, 1.0
        %v3155 = vadd.f32 %v3055, 1.0
        %v3156 = vadd.f32 %v3057, 1.0
        %v3157 = vadd.f32 %v3059, 1.0
        %v3158 = vadd.f32 %v3061, 1.0
        %v3159 = vadd.f32 %v3063, 1.0
        %v3160 = vadd.f32 %v3065, 1.0
        %v3161 = vadd.f32 %v3067, 1.0
        %v3162 = vadd.f32 %v3069, 1.0
        %v3163 = vadd.f32 %v3071, 1.0
        %v3164 = vadd.f32 %v3073, 1.0
        %v3165 = vadd.f32 %v3075, 1.0
        %v3166 = vadd.f32 %v3077, 1.0
        %v3167 = vadd.f32 %v3079, 1.0
        %v3168 = vadd.f32 %v3081, 1.0
        %v3169 = vadd.f32 %v3083, 1.0
        %v3170 = vadd.f32 %v3085, 1.0
        %v3171 = vadd.f32 %v3087, 1.0
        %v3172 = vadd.f32 %v3089, 1.0
        %v3173 = vadd.f32 %v3091, 1.0
        %v3174 = vadd.f32 %v3093, 1.0
        %v3175 = vadd.f32 %v3095, 1.0
        %v3176 = vadd.f32 %v3097, 1.0
        %v3177 = vadd.f32 %v3099, 1.0
        %v3178 = vadd.f32 %v3101, 1.0
        %v3179 = vadd.f32 %v3103, 1.0
        %v3180 = vadd.f32 %v3105, 1.0
        %v3181 = vadd.f32 %v3107, 1.0
        %v3182 = vadd.f32 %v3109, 1.0
        %v3183 = vadd.f32 %v3111, 1.0
        %v3184 = vadd.f32 %v3113, 1.0
        %v3185 = vadd.f32 %v3115, 1.0
        %v3186 = vadd.f32 %v3117, 1.0
        %v3187 = vadd.f32 %v3119, 1.0
        %v3188 = vadd.f32 %v3121, 1.0
        %v3189 = vadd.f32 %v3123, 1.0
        %v3190 = vadd.f32 %v3125, 1.0
        %v3191 = vadd.f32 %v3127, 1.0
        %v3192 = vrcp.pop %v3128
        %v3193 = vmul.f32 1.0, %v3192
        %v3194 = vrcp.pop %v3129
        %v3195 = vmul.f32 1.0, %v3194
        %v3196 = vrcp.pop %v3130
        %v3197 = vmul.f32 1.0, %v3196
        %v3198 = vrcp.pop %v3131
        %v3199 = vmul.f32 1.0, %v3198
        %v3200 = vrcp.pop %v3132
        %v3201 = vmul.f32 1.0, %v3200
        %v3202 = vrcp.pop %v3133
        %v3203 = vmul.f32 1.0, %v3202
        %v3204 = vrcp.pop %v3134
        %v3205 = vmul.f32 1.0, %v3204
        %v3206 = vrcp.pop %v3135
        %v3207 = vmul.f32 1.0, %v3206
        %v3208 = vrcp.pop %v3136
        %v3209 = vmul.f32 1.0, %v3208
        %v3210 = vrcp.pop %v3137
        %v3211 = vmul.f32 1.0, %v3210
        %v3212 = vrcp.pop %v3138
        %v3213 = vmul.f32 1.0, %v3212
        %v3214 = vrcp.pop %v3139
        %v3215 = vmul.f32 1.0, %v3214
        %v3216 = vrcp.pop %v3140
        %v3217 = vmul.f32 1.0, %v3216
        %v3218 = vrcp.pop %v3141
        %v3219 = vmul.f32 1.0, %v3218
        %v3220 = vrcp.pop %v3142
        %v3221 = vmul.f32 1.0, %v3220
        %v3222 = vrcp.pop %v3143
        %v3223 = vmul.f32 1.0, %v3222
        %v3224 = vrcp.pop %v3144
        %v3225 = vmul.f32 1.0, %v3224
        %v3226 = vrcp.pop %v3145
        %v3227 = vmul.f32 1.0, %v3226
        %v3228 = vrcp.pop %v3146
        %v3229 = vmul.f32 1.0, %v3228
        %v3230 = vrcp.pop %v3147
        %v3231 = vmul.f32 1.0, %v3230
        %v3232 = vrcp.pop %v3148
        %v3233 = vmul.f32 1.0, %v3232
        %v3234 = vrcp.pop %v3149
        %v3235 = vmul.f32 1.0, %v3234
        %v3236 = vrcp.pop %v3150
        %v3237 = vmul.f32 1.0, %v3236
        %v3238 = vrcp.pop %v3151
        %v3239 = vmul.f32 1.0, %v3238
        %v3240 = vrcp.pop %v3152
        %v3241 = vmul.f32 1.0, %v3240
        %v3242 = vrcp.pop %v3153
        %v3243 = vmul.f32 1.0, %v3242
        %v3244 = vrcp.pop %v3154
        %v3245 = vmul.f32 1.0, %v3244
        %v3246 = vrcp.pop %v3155
        %v3247 = vmul.f32 1.0, %v3246
        %v3248 = vrcp.pop %v3156
        %v3249 = vmul.f32 1.0, %v3248
        %v3250 = vrcp.pop %v3157
        %v3251 = vmul.f32 1.0, %v3250
        %v3252 = vrcp.pop %v3158
        %v3253 = vmul.f32 1.0, %v3252
        %v3254 = vrcp.pop %v3159
        %v3255 = vmul.f32 1.0, %v3254
        %v3256 = vrcp.pop %v3160
        %v3257 = vmul.f32 1.0, %v3256
        %v3258 = vrcp.pop %v3161
        %v3259 = vmul.f32 1.0, %v3258
        %v3260 = vrcp.pop %v3162
        %v3261 = vmul.f32 1.0, %v3260
        %v3262 = vrcp.pop %v3163
        %v3263 = vmul.f32 1.0, %v3262
        %v3264 = vrcp.pop %v3164
        %v3265 = vmul.f32 1.0, %v3264
        %v3266 = vrcp.pop %v3165
        %v3267 = vmul.f32 1.0, %v3266
        %v3268 = vrcp.pop %v3166
        %v3269 = vmul.f32 1.0, %v3268
        %v3270 = vrcp.pop %v3167
        %v3271 = vmul.f32 1.0, %v3270
        %v3272 = vrcp.pop %v3168
        %v3273 = vmul.f32 1.0, %v3272
        %v3274 = vrcp.pop %v3169
        %v3275 = vmul.f32 1.0, %v3274
        %v3276 = vrcp.pop %v3170
        %v3277 = vmul.f32 1.0, %v3276
        %v3278 = vrcp.pop %v3171
        %v3279 = vmul.f32 1.0, %v3278
        %v3280 = vrcp.pop %v3172
        %v3281 = vmul.f32 1.0, %v3280
        %v3282 = vrcp.pop %v3173
        %v3283 = vmul.f32 1.0, %v3282
        %v3284 = vrcp.pop %v3174
        %v3285 = vmul.f32 1.0, %v3284
        %v3286 = vrcp.pop %v3175
        %v3287 = vmul.f32 1.0, %v3286
        %v3288 = vrcp.pop %v3176
        %v3289 = vmul.f32 1.0, %v3288
        %v3290 = vrcp.pop %v3177
        %v3291 = vmul.f32 1.0, %v3290
        %v3292 = vrcp.pop %v3178
        %v3293 = vmul.f32 1.0, %v3292
        %v3294 = vrcp.pop %v3179
        %v3295 = vmul.f32 1.0, %v3294
        %v3296 = vrcp.pop %v3180
        %v3297 = vmul.f32 1.0, %v3296
        %v3298 = vrcp.pop %v3181
        %v3299 = vmul.f32 1.0, %v3298
        %v3300 = vrcp.pop %v3182
        %v3301 = vmul.f32 1.0, %v3300
        %v3302 = vrcp.pop %v3183
        %v3303 = vmul.f32 1.0, %v3302
        %v3304 = vrcp.pop %v3184
        %v3305 = vmul.f32 1.0, %v3304
        %v3306 = vrcp.pop %v3185
        %v3307 = vmul.f32 1.0, %v3306
        %v3308 = vrcp.pop %v3186
        %v3309 = vmul.f32 1.0, %v3308
        %v3310 = vrcp.pop %v3187
        %v3311 = vmul.f32 1.0, %v3310
        %v3312 = vrcp.pop %v3188
        %v3313 = vmul.f32 1.0, %v3312
        %v3314 = vrcp.pop %v3189
        %v3315 = vmul.f32 1.0, %v3314
        %v3316 = vrcp.pop %v3190
        %v3317 = vmul.f32 1.0, %v3316
        %v3318 = vrcp.pop %v3191
        %v3319 = vmul.f32 1.0, %v3318
        %v3384 = vlaneseq
        %v3385 = vand.u32 %v3384, 127
        %v3386 = vlaneseq
        %v3387 = vshrl.u32 %v3386, 7
        %v3388 = vsub.s32 %v3385, %v3387
        %v3389 = vrot.slane %v3193, %v3388
        %v3390 = vadd.s32 %v3385, 4294967288
        %v3391 = vlaneseq
        %v3392 = vshrl.u32 %v3391, 7
        %v3393 = vsub.s32 %v3390, %v3392
        %v3394 = vrot.slane %v3195, %v3393
        %vm3395 = vcmask 130112
        %v3396 = vsel %vm3395, %v3394, %v3389
        %v3397 = vadd.s32 %v3385, 4294967280
        %v3398 = vlaneseq
        %v3399 = vshrl.u32 %v3398, 7
        %v3400 = vsub.s32 %v3397, %v3399
        %v3401 = vrot.slane %v3197, %v3400
        %vm3402 = vcmask 195712
        %v3403 = vsel %vm3402, %v3401, %v3396
        %v3404 = vadd.s32 %v3385, 4294967272
        %v3405 = vlaneseq
        %v3406 = vshrl.u32 %v3405, 7
        %v3407 = vsub.s32 %v3404, %v3406
        %v3408 = vrot.slane %v3199, %v3407
        %vm3409 = vcmask 261312
        %v3410 = vsel %vm3409, %v3408, %v3403
        %v3411 = vadd.s32 %v3385, 4294967264
        %v3412 = vlaneseq
        %v3413 = vshrl.u32 %v3412, 7
        %v3414 = vsub.s32 %v3411, %v3413
        %v3415 = vrot.slane %v3201, %v3414
        %vm3416 = vcmask 326912
        %v3417 = vsel %vm3416, %v3415, %v3410
        %v3418 = vadd.s32 %v3385, 4294967256
        %v3419 = vlaneseq
        %v3420 = vshrl.u32 %v3419, 7
        %v3421 = vsub.s32 %v3418, %v3420
        %v3422 = vrot.slane %v3203, %v3421
        %vm3423 = vcmask 392512
        %v3424 = vsel %vm3423, %v3422, %v3417
        %v3425 = vadd.s32 %v3385, 4294967248
        %v3426 = vlaneseq
        %v3427 = vshrl.u32 %v3426, 7
        %v3428 = vsub.s32 %v3425, %v3427
        %v3429 = vrot.slane %v3205, %v3428
        %vm3430 = vcmask 458112
        %v3431 = vsel %vm3430, %v3429, %v3424
        %v3432 = vadd.s32 %v3385, 4294967240
        %v3433 = vlaneseq
        %v3434 = vshrl.u32 %v3433, 7
        %v3435 = vsub.s32 %v3432, %v3434
        %v3436 = vrot.slane %v3207, %v3435
        %vm3437 = vcmask 523712
        %v3438 = vsel %vm3437, %v3436, %v3431
        %v3439 = vadd.s32 %v3385, 4294967232
        %v3440 = vlaneseq
        %v3441 = vshrl.u32 %v3440, 7
        %v3442 = vsub.s32 %v3439, %v3441
        %v3443 = vrot.slane %v3209, %v3442
        %vm3444 = vcmask 589312
        %v3445 = vsel %vm3444, %v3443, %v3438
        %v3446 = vadd.s32 %v3385, 4294967224
        %v3447 = vlaneseq
        %v3448 = vshrl.u32 %v3447, 7
        %v3449 = vsub.s32 %v3446, %v3448
        %v3450 = vrot.slane %v3211, %v3449
        %vm3451 = vcmask 654912
        %v3452 = vsel %vm3451, %v3450, %v3445
        %v3453 = vadd.s32 %v3385, 4294967216
        %v3454 = vlaneseq
        %v3455 = vshrl.u32 %v3454, 7
        %v3456 = vsub.s32 %v3453, %v3455
        %v3457 = vrot.slane %v3213, %v3456
        %vm3458 = vcmask 720512
        %v3459 = vsel %vm3458, %v3457, %v3452
        %v3460 = vadd.s32 %v3385, 4294967208
        %v3461 = vlaneseq
        %v3462 = vshrl.u32 %v3461, 7
        %v3463 = vsub.s32 %v3460, %v3462
        %v3464 = vrot.slane %v3215, %v3463
        %vm3465 = vcmask 786112
        %v3466 = vsel %vm3465, %v3464, %v3459
        %v3467 = vadd.s32 %v3385, 4294967200
        %v3468 = vlaneseq
        %v3469 = vshrl.u32 %v3468, 7
        %v3470 = vsub.s32 %v3467, %v3469
        %v3471 = vrot.slane %v3217, %v3470
        %vm3472 = vcmask 851712
        %v3473 = vsel %vm3472, %v3471, %v3466
        %v3474 = vadd.s32 %v3385, 4294967192
        %v3475 = vlaneseq
        %v3476 = vshrl.u32 %v3475, 7
        %v3477 = vsub.s32 %v3474, %v3476
        %v3478 = vrot.slane %v3219, %v3477
        %vm3479 = vcmask 917312
        %v3480 = vsel %vm3479, %v3478, %v3473
        %v3481 = vadd.s32 %v3385, 4294967184
        %v3482 = vlaneseq
        %v3483 = vshrl.u32 %v3482, 7
        %v3484 = vsub.s32 %v3481, %v3483
        %v3485 = vrot.slane %v3221, %v3484
        %vm3486 = vcmask 982912
        %v3487 = vsel %vm3486, %v3485, %v3480
        %v3488 = vadd.s32 %v3385, 4294967176
        %v3489 = vlaneseq
        %v3490 = vshrl.u32 %v3489, 7
        %v3491 = vsub.s32 %v3488, %v3490
        %v3492 = vrot.slane %v3223, %v3491
        %vm3493 = vcmask 1048512
        %v3494 = vsel %vm3493, %v3492, %v3487
        %v3495 = vlaneseq
        %v3496 = vshrl.u32 %v3495, 7
        %v3497 = vsub.s32 %v3385, %v3496
        %v3498 = vrot.slane %v3225, %v3497
        %v3499 = vlaneseq
        %v3500 = vshrl.u32 %v3499, 7
        %v3501 = vsub.s32 %v3390, %v3500
        %v3502 = vrot.slane %v3227, %v3501
        %v3503 = vsel %vm3395, %v3502, %v3498
        %v3504 = vlaneseq
        %v3505 = vshrl.u32 %v3504, 7
        %v3506 = vsub.s32 %v3397, %v3505
        %v3507 = vrot.slane %v3229, %v3506
        %v3508 = vsel %vm3402, %v3507, %v3503
        %v3509 = vlaneseq
        %v3510 = vshrl.u32 %v3509, 7
        %v3511 = vsub.s32 %v3404, %v3510
        %v3512 = vrot.slane %v3231, %v3511
        %v3513 = vsel %vm3409, %v3512, %v3508
        %v3514 = vlaneseq
        %v3515 = vshrl.u32 %v3514, 7
        %v3516 = vsub.s32 %v3411, %v3515
        %v3517 = vrot.slane %v3233, %v3516
        %v3518 = vsel %vm3416, %v3517, %v3513
        %v3519 = vlaneseq
        %v3520 = vshrl.u32 %v3519, 7
        %v3521 = vsub.s32 %v3418, %v3520
        %v3522 = vrot.slane %v3235, %v3521
        %v3523 = vsel %vm3423, %v3522, %v3518
        %v3524 = vlaneseq
        %v3525 = vshrl.u32 %v3524, 7
        %v3526 = vsub.s32 %v3425, %v3525
        %v3527 = vrot.slane %v3237, %v3526
        %v3528 = vsel %vm3430, %v3527, %v3523
        %v3529 = vlaneseq
        %v3530 = vshrl.u32 %v3529, 7
        %v3531 = vsub.s32 %v3432, %v3530
        %v3532 = vrot.slane %v3239, %v3531
        %v3533 = vsel %vm3437, %v3532, %v3528
        %v3534 = vlaneseq
        %v3535 = vshrl.u32 %v3534, 7
        %v3536 = vsub.s32 %v3439, %v3535
        %v3537 = vrot.slane %v3241, %v3536
        %v3538 = vsel %vm3444, %v3537, %v3533
        %v3539 = vlaneseq
        %v3540 = vshrl.u32 %v3539, 7
        %v3541 = vsub.s32 %v3446, %v3540
        %v3542 = vrot.slane %v3243, %v3541
        %v3543 = vsel %vm3451, %v3542, %v3538
        %v3544 = vlaneseq
        %v3545 = vshrl.u32 %v3544, 7
        %v3546 = vsub.s32 %v3453, %v3545
        %v3547 = vrot.slane %v3245, %v3546
        %v3548 = vsel %vm3458, %v3547, %v3543
        %v3549 = vlaneseq
        %v3550 = vshrl.u32 %v3549, 7
        %v3551 = vsub.s32 %v3460, %v3550
        %v3552 = vrot.slane %v3247, %v3551
        %v3553 = vsel %vm3465, %v3552, %v3548
        %v3554 = vlaneseq
        %v3555 = vshrl.u32 %v3554, 7
        %v3556 = vsub.s32 %v3467, %v3555
        %v3557 = vrot.slane %v3249, %v3556
        %v3558 = vsel %vm3472, %v3557, %v3553
        %v3559 = vlaneseq
        %v3560 = vshrl.u32 %v3559, 7
        %v3561 = vsub.s32 %v3474, %v3560
        %v3562 = vrot.slane %v3251, %v3561
        %v3563 = vsel %vm3479, %v3562, %v3558
        %v3564 = vlaneseq
        %v3565 = vshrl.u32 %v3564, 7
        %v3566 = vsub.s32 %v3481, %v3565
        %v3567 = vrot.slane %v3253, %v3566
        %v3568 = vsel %vm3486, %v3567, %v3563
        %v3569 = vlaneseq
        %v3570 = vshrl.u32 %v3569, 7
        %v3571 = vsub.s32 %v3488, %v3570
        %v3572 = vrot.slane %v3255, %v3571
        %v3573 = vsel %vm3493, %v3572, %v3568
        %v3574 = vlaneseq
        %v3575 = vshrl.u32 %v3574, 7
        %v3576 = vsub.s32 %v3385, %v3575
        %v3577 = vrot.slane %v3257, %v3576
        %v3578 = vlaneseq
        %v3579 = vshrl.u32 %v3578, 7
        %v3580 = vsub.s32 %v3390, %v3579
        %v3581 = vrot.slane %v3259, %v3580
        %v3582 = vsel %vm3395, %v3581, %v3577
        %v3583 = vlaneseq
        %v3584 = vshrl.u32 %v3583, 7
        %v3585 = vsub.s32 %v3397, %v3584
        %v3586 = vrot.slane %v3261, %v3585
        %v3587 = vsel %vm3402, %v3586, %v3582
        %v3588 = vlaneseq
        %v3589 = vshrl.u32 %v3588, 7
        %v3590 = vsub.s32 %v3404, %v3589
        %v3591 = vrot.slane %v3263, %v3590
        %v3592 = vsel %vm3409, %v3591, %v3587
        %v3593 = vlaneseq
        %v3594 = vshrl.u32 %v3593, 7
        %v3595 = vsub.s32 %v3411, %v3594
        %v3596 = vrot.slane %v3265, %v3595
        %v3597 = vsel %vm3416, %v3596, %v3592
        %v3598 = vlaneseq
        %v3599 = vshrl.u32 %v3598, 7
        %v3600 = vsub.s32 %v3418, %v3599
        %v3601 = vrot.slane %v3267, %v3600
        %v3602 = vsel %vm3423, %v3601, %v3597
        %v3603 = vlaneseq
        %v3604 = vshrl.u32 %v3603, 7
        %v3605 = vsub.s32 %v3425, %v3604
        %v3606 = vrot.slane %v3269, %v3605
        %v3607 = vsel %vm3430, %v3606, %v3602
        %v3608 = vlaneseq
        %v3609 = vshrl.u32 %v3608, 7
        %v3610 = vsub.s32 %v3432, %v3609
        %v3611 = vrot.slane %v3271, %v3610
        %v3612 = vsel %vm3437, %v3611, %v3607
        %v3613 = vlaneseq
        %v3614 = vshrl.u32 %v3613, 7
        %v3615 = vsub.s32 %v3439, %v3614
        %v3616 = vrot.slane %v3273, %v3615
        %v3617 = vsel %vm3444, %v3616, %v3612
        %v3618 = vlaneseq
        %v3619 = vshrl.u32 %v3618, 7
        %v3620 = vsub.s32 %v3446, %v3619
        %v3621 = vrot.slane %v3275, %v3620
        %v3622 = vsel %vm3451, %v3621, %v3617
        %v3623 = vlaneseq
        %v3624 = vshrl.u32 %v3623, 7
        %v3625 = vsub.s32 %v3453, %v3624
        %v3626 = vrot.slane %v3277, %v3625
        %v3627 = vsel %vm3458, %v3626, %v3622
        %v3628 = vlaneseq
        %v3629 = vshrl.u32 %v3628, 7
        %v3630 = vsub.s32 %v3460, %v3629
        %v3631 = vrot.slane %v3279, %v3630
        %v3632 = vsel %vm3465, %v3631, %v3627
        %v3633 = vlaneseq
        %v3634 = vshrl.u32 %v3633, 7
        %v3635 = vsub.s32 %v3467, %v3634
        %v3636 = vrot.slane %v3281, %v3635
        %v3637 = vsel %vm3472, %v3636, %v3632
        %v3638 = vlaneseq
        %v3639 = vshrl.u32 %v3638, 7
        %v3640 = vsub.s32 %v3474, %v3639
        %v3641 = vrot.slane %v3283, %v3640
        %v3642 = vsel %vm3479, %v3641, %v3637
        %v3643 = vlaneseq
        %v3644 = vshrl.u32 %v3643, 7
        %v3645 = vsub.s32 %v3481, %v3644
        %v3646 = vrot.slane %v3285, %v3645
        %v3647 = vsel %vm3486, %v3646, %v3642
        %v3648 = vlaneseq
        %v3649 = vshrl.u32 %v3648, 7
        %v3650 = vsub.s32 %v3488, %v3649
        %v3651 = vrot.slane %v3287, %v3650
        %v3652 = vsel %vm3493, %v3651, %v3647
        %v3653 = vlaneseq
        %v3654 = vshrl.u32 %v3653, 7
        %v3655 = vsub.s32 %v3385, %v3654
        %v3656 = vrot.slane %v3289, %v3655
        %v3657 = vlaneseq
        %v3658 = vshrl.u32 %v3657, 7
        %v3659 = vsub.s32 %v3390, %v3658
        %v3660 = vrot.slane %v3291, %v3659
        %v3661 = vsel %vm3395, %v3660, %v3656
        %v3662 = vlaneseq
        %v3663 = vshrl.u32 %v3662, 7
        %v3664 = vsub.s32 %v3397, %v3663
        %v3665 = vrot.slane %v3293, %v3664
        %v3666 = vsel %vm3402, %v3665, %v3661
        %v3667 = vlaneseq
        %v3668 = vshrl.u32 %v3667, 7
        %v3669 = vsub.s32 %v3404, %v3668
        %v3670 = vrot.slane %v3295, %v3669
        %v3671 = vsel %vm3409, %v3670, %v3666
        %v3672 = vlaneseq
        %v3673 = vshrl.u32 %v3672, 7
        %v3674 = vsub.s32 %v3411, %v3673
        %v3675 = vrot.slane %v3297, %v3674
        %v3676 = vsel %vm3416, %v3675, %v3671
        %v3677 = vlaneseq
        %v3678 = vshrl.u32 %v3677, 7
        %v3679 = vsub.s32 %v3418, %v3678
        %v3680 = vrot.slane %v3299, %v3679
        %v3681 = vsel %vm3423, %v3680, %v3676
        %v3682 = vlaneseq
        %v3683 = vshrl.u32 %v3682, 7
        %v3684 = vsub.s32 %v3425, %v3683
        %v3685 = vrot.slane %v3301, %v3684
        %v3686 = vsel %vm3430, %v3685, %v3681
        %v3687 = vlaneseq
        %v3688 = vshrl.u32 %v3687, 7
        %v3689 = vsub.s32 %v3432, %v3688
        %v3690 = vrot.slane %v3303, %v3689
        %v3691 = vsel %vm3437, %v3690, %v3686
        %v3692 = vlaneseq
        %v3693 = vshrl.u32 %v3692, 7
        %v3694 = vsub.s32 %v3439, %v3693
        %v3695 = vrot.slane %v3305, %v3694
        %v3696 = vsel %vm3444, %v3695, %v3691
        %v3697 = vlaneseq
        %v3698 = vshrl.u32 %v3697, 7
        %v3699 = vsub.s32 %v3446, %v3698
        %v3700 = vrot.slane %v3307, %v3699
        %v3701 = vsel %vm3451, %v3700, %v3696
        %v3702 = vlaneseq
        %v3703 = vshrl.u32 %v3702, 7
        %v3704 = vsub.s32 %v3453, %v3703
        %v3705 = vrot.slane %v3309, %v3704
        %v3706 = vsel %vm3458, %v3705, %v3701
        %v3707 = vlaneseq
        %v3708 = vshrl.u32 %v3707, 7
        %v3709 = vsub.s32 %v3460, %v3708
        %v3710 = vrot.slane %v3311, %v3709
        %v3711 = vsel %vm3465, %v3710, %v3706
        %v3712 = vlaneseq
        %v3713 = vshrl.u32 %v3712, 7
        %v3714 = vsub.s32 %v3467, %v3713
        %v3715 = vrot.slane %v3313, %v3714
        %v3716 = vsel %vm3472, %v3715, %v3711
        %v3717 = vlaneseq
        %v3718 = vshrl.u32 %v3717, 7
        %v3719 = vsub.s32 %v3474, %v3718
        %v3720 = vrot.slane %v3315, %v3719
        %v3721 = vsel %vm3479, %v3720, %v3716
        %v3722 = vlaneseq
        %v3723 = vshrl.u32 %v3722, 7
        %v3724 = vsub.s32 %v3481, %v3723
        %v3725 = vrot.slane %v3317, %v3724
        %v3726 = vsel %vm3486, %v3725, %v3721
        %v3727 = vlaneseq
        %v3728 = vshrl.u32 %v3727, 7
        %v3729 = vsub.s32 %v3488, %v3728
        %v3730 = vrot.slane %v3319, %v3729
        %v3731 = vsel %vm3493, %v3730, %v3726
        %vm3732 = vcmask 1041409
        %v3733 = vsel %vm3732, %v3573, %v3494
        %vm3734 = vcmask 1042434
        %v3735 = vsel %vm3734, %v3652, %v3733
        %vm3736 = vcmask 1043459
        %v3737 = vsel %vm3736, %v3731, %v3735
        %3739 = vst [vmem:[%s395] sm:$0xf] %v3737
        %s3740 = sand.u32 %s250, 1
        %s3741 = scalar_lea.sflag [#allocation5], %s3740
        %s3742 = sand.u32 %s250, 1
        %s3743 = smul.addr %s3742, 4
        %s3744 = scalar_lea.vmem [#allocation8], %s3743
        // Predicated region
        $region65: #{tpu_custom_call.1} parent=55 // pred_check
          %p3745 = pneg %p260
        $region66: #{tpu_custom_call.1} parent=55 // pred_check_branch
          %3747 = sbr.rel (%p3745) target = $region68
        $region67: #{tpu_custom_call.1} parent=55 // pred_region
          %s3749 = ssub.s32 64, 64
          %3750 = vsyncadd %s3741, %s3749
          %s3751 = sadd.s32 %s32, %s31
          %s3752 = smul.addr %s3751, 64
          %s3753 = scalar_lea.hbm %s9, %s3752
          %s3755 = sshll.u32 %s3744, 4
          %s3756 = int_to_ptr.vmem [resolvable:$true] %s3755
          %3758 = dma.vmem_to_hbm [thread:$0]  %s3756, 64, %s3753, %s3741
        $region68: #{tpu_custom_call.1} parent=55 // pred_fallthru
          _
      $region56: #{tpu_custom_call.1} parent=5 // pred_fallthru
        _
      %p3759 = scmp.le.s32.totalorder 2, %s22
      // Predicated region
      $region69: #{tpu_custom_call.1} parent=5 // pred_check
        %p3760 = pneg %p3759
      $region70: #{tpu_custom_call.1} parent=5 // pred_check_branch
        %3762 = sbr.rel (%p3760) target = $region72
      $region71: #{tpu_custom_call.1} parent=5 // pred_region
        %s3763 = ssub.s32 %s22, 2
        // Predicated region
        $region73: #{tpu_custom_call.1} parent=71 // pred_check
          %p3764 = pneg %p266
        $region74: #{tpu_custom_call.1} parent=71 // pred_check_branch
          %3766 = sbr.rel (%p3764) target = $region76
        $region75: #{tpu_custom_call.1} parent=71 // pred_region
          %s3767 = sand.u32 %s251, 1
          %s3768 = scalar_lea.sflag [#allocation5], %s3767
          %s3769 = sand.u32 %s251, 1
          %s3770 = smul.addr %s3769, 4
          %s3771 = scalar_lea.vmem [#allocation8], %s3770
          %3772 = dma.done %s3768, 64
        $region76: #{tpu_custom_call.1} parent=71 // pred_fallthru
          _
      $region72: #{tpu_custom_call.1} parent=5 // pred_fallthru
        _
    $region6: #{tpu_custom_call.1} parent=1 // loop_footer
      %s26 = sadd.s32 1, %s22
    $region7: #{tpu_custom_call.1} parent=1 // loop_footer_branch
      %21 = sbr.rel target = $region3
    $region8: #{tpu_custom_call.1} parent=1 // loop_exit
      _
    %3773 = vsyncpa [#allocation4], 1
    %s3774 = scalar_lea.sflag [#allocation4], 1
    %3775 = vsyncpa %s3774, 1
    %3776 = vsyncpa [#allocation7], 1
    %3777 = vsyncpa [#allocation5], 1
    %s3778 = scalar_lea.sflag [#allocation5], 1
    %3779 = vsyncpa %s3778, 1

</llo_original>
